<compile_context>
chip_gen: v5e
topology: v5e:2x2
jax: 0.10.0
libtpu: 0.0.40
codegen_flags: <defaults>
</compile_context>

<pallas_src>
import math
import jax
import jax.numpy as jnp
from jax.experimental import pallas as pl
from jax.experimental.pallas import tpu as pltpu

# ----------------------- small config (structure-consistent) ------------------
BATCH = 2
CONTEXT_LEN = 128
INPUT_PATCH_LEN = 16                 # module default 32
MODEL_DIMS = 128                     # module default 1280 (lane-dense toy size)
NUM_LAYERS = 2                       # module default 20
NUM_HEADS = 4                        # module default 16
HORIZON_LEN = 16                     # module default 128
NUM_OUTPUTS = 8                      # module default 10 ; horizon*outputs == model_dims
NUM_PATCHES = CONTEXT_LEN // INPUT_PATCH_LEN
HEAD_DIM = MODEL_DIMS // NUM_HEADS
FF_HIDDEN = MODEL_DIMS               # Transformer hidden_dim = model_dims

assert HORIZON_LEN * NUM_OUTPUTS == MODEL_DIMS
assert MODEL_DIMS % NUM_HEADS == 0

_VMEM_LIMIT = 64 * 1024 * 1024


# ----------------------------- ResidualBlock kernels --------------------------
def _residual_core(x_f32, wcat_ref, bcat_ref, wout_ref, bout_ref):
    """out = Linear(SiLU(Linear(x))) + Linear(x), with [w_hidden|w_res] fused."""
    hid = wout_ref.shape[0]
    comb = jnp.dot(x_f32.astype(jnp.bfloat16), wcat_ref[...],
                   preferred_element_type=jnp.float32) + bcat_ref[...]
    hidden = comb[:, :hid]
    res = comb[:, hid:]
    hidden = hidden * jax.nn.sigmoid(hidden)          # SiLU
    out = jnp.dot(hidden.astype(jnp.bfloat16), wout_ref[...],
                  preferred_element_type=jnp.float32) + bout_ref[...]
    return out + res


def input_ff_kernel(x_ref, wcat_ref, bcat_ref, wout_ref, bout_ref, pe_ref, out_ref):
    """Input ResidualBlock fused with positional + frequency embedding add."""
    y = _residual_core(x_ref[...], wcat_ref, bcat_ref, wout_ref, bout_ref)
    out_ref[...] = (y + pe_ref[...]).astype(out_ref.dtype)


def input_ff_block(x, pos_freq, p):
    B, N, F = x.shape
    D = p["w_out"].shape[1]
    full = lambda arr: pl.BlockSpec(arr.shape, lambda b: (0, 0))
    return pl.pallas_call(
        input_ff_kernel,
        out_shape=jax.ShapeDtypeStruct((B, N, D), jnp.float32),
        grid_spec=pltpu.PrefetchScalarGridSpec(
            num_scalar_prefetch=0,
            grid=(B,),
            in_specs=[
                pl.BlockSpec((pl.Squeezed(), N, F), lambda b: (b, 0, 0)),
                full(p["w_cat"]), full(p["b_cat"]),
                full(p["w_out"]), full(p["b_out"]),
                full(pos_freq),
            ],
            out_specs=pl.BlockSpec((pl.Squeezed(), N, D), lambda b: (b, 0, 0)),
        ),
        compiler_params=pltpu.CompilerParams(dimension_semantics=("parallel",)),
    )(x, p["w_cat"], p["b_cat"], p["w_out"], p["b_out"], pos_freq)


def horizon_ff_kernel(x_ref, wcat_ref, bcat_ref, wout_ref, bout_ref, stats_ref,
                      out_ref):
    """Horizon ResidualBlock fused with reverse_transform (per-batch mu/sigma)."""
    b = pl.program_id(0)
    mu = stats_ref[b, 0]
    sigma = stats_ref[b, 1]
    y = _residual_core(x_ref[...], wcat_ref, bcat_ref, wout_ref, bout_ref)
    out_ref[...] = (y * sigma + mu).astype(out_ref.dtype)


def horizon_ff_block(x, stats, p):
    B, N, D = x.shape
    full = lambda arr: pl.BlockSpec(arr.shape, lambda b: (0, 0))
    return pl.pallas_call(
        horizon_ff_kernel,
        out_shape=jax.ShapeDtypeStruct((B, N, D), jnp.float32),
        grid_spec=pltpu.PrefetchScalarGridSpec(
            num_scalar_prefetch=0,
            grid=(B,),
            in_specs=[
                pl.BlockSpec((pl.Squeezed(), N, D), lambda b: (b, 0, 0)),
                full(p["w_cat"]), full(p["b_cat"]),
                full(p["w_out"]), full(p["b_out"]),
                pl.BlockSpec(memory_space=pltpu.MemorySpace.SMEM),   # (B, 2) stats
            ],
            out_specs=pl.BlockSpec((pl.Squeezed(), N, D), lambda b: (b, 0, 0)),
        ),
        compiler_params=pltpu.CompilerParams(dimension_semantics=("parallel",)),
    )(x, p["w_cat"], p["b_cat"], p["w_out"], p["b_out"], stats)


# -------------------------- transformer stack kernel ---------------------------
def transformer_stack_kernel(x_ref,
                             ln1s_ref, ln1b_ref,
                             wq_ref, bq_ref, wk_ref, bk_ref, wv_ref, bv_ref,
                             wo_ref, bo_ref,
                             ln2s_ref, ln2b_ref,
                             wf1_ref, bf1_ref, wf2_ref, bf2_ref,
                             out_ref):
    """All NUM_LAYERS pre-LN decoder layers; grid=(batch, layer), activations
    stay resident in the output block across the layer ("arbitrary") axis."""
    layer = pl.program_id(1)

    @pl.when(layer == 0)
    def _():
        out_ref[...] = x_ref[...]

    x = out_ref[...].astype(jnp.float32)          # (S, D) resident activations
    S, D = x.shape

    def layer_norm(v, s_ref, b_ref):
        mean = jnp.mean(v, axis=-1, keepdims=True)
        var = jnp.mean((v - mean) ** 2, axis=-1, keepdims=True)
        return (v - mean) * jax.lax.rsqrt(var + 1e-6) * s_ref[...] + b_ref[...]

    # --- causal multi-head self-attention, batched over heads (no head loop) ---
    h = layer_norm(x, ln1s_ref, ln1b_ref)
    hb = jnp.broadcast_to(h.astype(jnp.bfloat16)[None], (NUM_HEADS, S, D))

    q = jnp.einsum("hsd,hde->hse", hb, wq_ref[...],
                   preferred_element_type=jnp.float32) + bq_ref[...]
    k = jnp.einsum("hsd,hde->hse", hb, wk_ref[...],
                   preferred_element_type=jnp.float32) + bk_ref[...]
    v = jnp.einsum("hsd,hde->hse", hb, wv_ref[...],
                   preferred_element_type=jnp.float32) + bv_ref[...]

    scale = 1.0 / math.sqrt(HEAD_DIM)
    scores = jnp.einsum("hse,hte->hst", q.astype(jnp.bfloat16),
                        k.astype(jnp.bfloat16),
                        preferred_element_type=jnp.float32) * scale
    row = jax.lax.broadcasted_iota(jnp.int32, (S, S), 0)
    col = jax.lax.broadcasted_iota(jnp.int32, (S, S), 1)
    scores = jnp.where((row >= col)[None], scores, -1e30)   # scores stay f32
    scores = scores - jnp.max(scores, axis=-1, keepdims=True)
    probs = jnp.exp(scores)
    probs = probs * pl.reciprocal(jnp.sum(probs, axis=-1, keepdims=True),
                                  approx=True)
    ctx = jnp.einsum("hst,hte->hse", probs.astype(jnp.bfloat16),
                     v.astype(jnp.bfloat16),
                     preferred_element_type=jnp.float32)     # (H, S, Dh)
    attn = jnp.sum(
        jnp.einsum("hse,hed->hsd", ctx.astype(jnp.bfloat16), wo_ref[...],
                   preferred_element_type=jnp.float32),
        axis=0) + bo_ref[...]
    x = x + attn

    # --- feed-forward (ReLU) ---
    h2 = layer_norm(x, ln2s_ref, ln2b_ref)
    f = jnp.dot(h2.astype(jnp.bfloat16), wf1_ref[...],
                preferred_element_type=jnp.float32) + bf1_ref[...]
    f = jnp.maximum(f, 0.0)
    f = jnp.dot(f.astype(jnp.bfloat16), wf2_ref[...],
                preferred_element_type=jnp.float32) + bf2_ref[...]
    x = x + f

    out_ref[...] = x.astype(out_ref.dtype)


_LAYER_PARAM_ORDER = ("ln1_s", "ln1_b", "wq", "bq", "wk", "bk", "wv", "bv",
                      "wo", "bo", "ln2_s", "ln2_b", "w_ff1", "b_ff1",
                      "w_ff2", "b_ff2")


def transformer_stack(x, stacked):
    B, S, D = x.shape
    L = stacked["wq"].shape[0]

    def stacked_spec(arr):
        zeros = (0,) * (arr.ndim - 1)
        return pl.BlockSpec((pl.Squeezed(),) + arr.shape[1:],
                            lambda b, l, _z=zeros: (l,) + _z)

    in_specs = [pl.BlockSpec((pl.Squeezed(), S, D), lambda b, l: (b, 0, 0))]
    in_specs += [stacked_spec(stacked[name]) for name in _LAYER_PARAM_ORDER]

    return pl.pallas_call(
        transformer_stack_kernel,
        out_shape=jax.ShapeDtypeStruct((B, S, D), jnp.float32),
        grid_spec=pltpu.PrefetchScalarGridSpec(
            num_scalar_prefetch=0,
            grid=(B, L),                      # layer axis last -> resident acc
            in_specs=in_specs,
            out_specs=pl.BlockSpec((pl.Squeezed(), S, D), lambda b, l: (b, 0, 0)),
        ),
        compiler_params=pltpu.CompilerParams(
            dimension_semantics=("parallel", "arbitrary"),
            vmem_limit_bytes=_VMEM_LIMIT),
    )(x, *[stacked[name] for name in _LAYER_PARAM_ORDER])


# ------------------------------- glue (JAX) -----------------------------------
def positional_embedding(seq_len, dims):
    positions = jnp.arange(seq_len, dtype=jnp.float32)
    num_timescales = dims // 2
    log_inc = math.log(10000.0) / max(num_timescales - 1, 1)
    inv = jnp.exp(jnp.arange(num_timescales, dtype=jnp.float32) * -log_inc)
    scaled = positions[:, None] * inv[None, :]
    return jnp.concatenate([jnp.sin(scaled), jnp.cos(scaled)], axis=1)   # (seq, dims)


def init_residual_block(key, in_dims, hidden_dims, out_dims):
    ks = jax.random.split(key, 3)
    s = 0.02
    w_hidden = jax.random.normal(ks[0], (in_dims, hidden_dims), jnp.float32) * s
    w_out = jax.random.normal(ks[1], (hidden_dims, out_dims), jnp.float32) * s
    w_res = jax.random.normal(ks[2], (in_dims, out_dims), jnp.float32) * s
    return {
        "w_cat": jnp.concatenate([w_hidden, w_res], axis=-1).astype(jnp.bfloat16),
        "b_cat": jnp.zeros((1, hidden_dims + out_dims), jnp.float32),
        "w_out": w_out.astype(jnp.bfloat16),
        "b_out": jnp.zeros((1, out_dims), jnp.float32),
    }


def init_layer(key, d, heads, head_dim, ff):
    ks = jax.random.split(key, 6)
    s = 0.02
    w = lambda k, shape: (jax.random.normal(k, shape, jnp.float32) * s).astype(jnp.bfloat16)
    return {
        "ln1_s": jnp.ones((1, d), jnp.float32), "ln1_b": jnp.zeros((1, d), jnp.float32),
        "wq": w(ks[0], (heads, d, head_dim)), "bq": jnp.zeros((heads, 1, head_dim), jnp.float32),
        "wk": w(ks[1], (heads, d, head_dim)), "bk": jnp.zeros((heads, 1, head_dim), jnp.float32),
        "wv": w(ks[2], (heads, d, head_dim)), "bv": jnp.zeros((heads, 1, head_dim), jnp.float32),
        "wo": w(ks[3], (heads, head_dim, d)), "bo": jnp.zeros((1, d), jnp.float32),
        "ln2_s": jnp.ones((1, d), jnp.float32), "ln2_b": jnp.zeros((1, d), jnp.float32),
        "w_ff1": w(ks[4], (d, ff)), "b_ff1": jnp.zeros((1, ff), jnp.float32),
        "w_ff2": w(ks[5], (ff, d)), "b_ff2": jnp.zeros((1, d), jnp.float32),
    }


def init_params(key):
    k_freq, k_in, k_hor, k_layers = jax.random.split(key, 4)
    layer_keys = jax.random.split(k_layers, NUM_LAYERS)
    layers = [init_layer(layer_keys[i], MODEL_DIMS, NUM_HEADS, HEAD_DIM, FF_HIDDEN)
              for i in range(NUM_LAYERS)]
    stacked = {name: jnp.stack([lay[name] for lay in layers], axis=0)
               for name in _LAYER_PARAM_ORDER}
    return {
        "freq_emb": jax.random.normal(k_freq, (3, MODEL_DIMS), jnp.float32) * 0.02,
        "input_ff": init_residual_block(k_in, 2 * INPUT_PATCH_LEN, MODEL_DIMS, MODEL_DIMS),
        "horizon_ff": init_residual_block(k_hor, MODEL_DIMS, MODEL_DIMS, MODEL_DIMS),
        "layers": stacked,
    }


def timesfm_forward(input_ts, params):
    bs = input_ts.shape[0]
    patched = input_ts.reshape(bs, -1, INPUT_PATCH_LEN)              # (bs, N, P)
    patched_pads = jnp.zeros_like(patched)

    # forward_transform: per-series normalization, stats = (mu, sigma)
    mu = jnp.mean(patched, axis=(1, 2), keepdims=True)
    sigma = jnp.std(patched, axis=(1, 2), keepdims=True)
    sigma = jnp.where(sigma < 1e-6, 1.0, sigma)
    patched_n = (patched - mu) / sigma
    concat_inputs = jnp.concatenate([patched_n, patched_pads], axis=-1)  # (bs, N, 2P)

    # positional + frequency(id=0) embedding, added inside the input-FF kernel
    pos_freq = positional_embedding(NUM_PATCHES, MODEL_DIMS) \
        + params["freq_emb"][0][None, :]                              # (N, D)

    model_input = input_ff_block(concat_inputs, pos_freq, params["input_ff"])

    x = transformer_stack(model_input, params["layers"])

    # reverse_transform happens inside the horizon-FF kernel (stats in SMEM)
    stats = jnp.concatenate([mu.reshape(bs, 1), sigma.reshape(bs, 1)], axis=-1)
    out = horizon_ff_block(x, stats, params["horizon_ff"])           # (bs, N, D)
    return out.reshape(bs, NUM_PATCHES, HORIZON_LEN, NUM_OUTPUTS)


# ----------------------------------- main -------------------------------------
if __name__ == "__main__":
    key = jax.random.PRNGKey(0)
    k_x, k_p = jax.random.split(key)
    input_ts = jax.random.normal(k_x, (BATCH, CONTEXT_LEN), jnp.float32)
    params = init_params(k_p)

    out = jax.jit(timesfm_forward)(input_ts, params)
    out = jax.block_until_ready(out)
    assert out.shape == (BATCH, NUM_PATCHES, HORIZON_LEN, NUM_OUTPUTS)
    assert bool(jnp.all(jnp.isfinite(out)))
    print("KERNEL_OK")
</pallas_src>

<mosaic_0001>
module attributes {stable_mosaic.version = 11 : i64} {
  func.func @input_ff_kernel(%arg0: i32, %arg1: memref<1x8x32xf32, #tpu.memory_space<vmem>>, %arg2: memref<32x256xbf16, #tpu.memory_space<vmem>>, %arg3: memref<1x256xf32, #tpu.memory_space<vmem>>, %arg4: memref<128x128xbf16, #tpu.memory_space<vmem>>, %arg5: memref<1x128xf32, #tpu.memory_space<vmem>>, %arg6: memref<8x128xf32, #tpu.memory_space<vmem>>, %arg7: memref<1x8x128xf32, #tpu.memory_space<vmem>>) attributes {dimension_semantics = [#tpu.dimension_semantics<parallel>], iteration_bounds = array<i64: 2>, scalar_prefetch = 0 : i64, scratch_operands = 0 : i64, tpu.core_type = #tpu.core_type<tc>, window_params = [{transform_indices = @transform_0, window_bounds = array<i64: 1, 8, 32>}, {pipeline_mode = #tpu.pipeline_mode<synchronous>, transform_indices = @transform_1, window_bounds = array<i64: 32, 256>}, {pipeline_mode = #tpu.pipeline_mode<synchronous>, transform_indices = @transform_2, window_bounds = array<i64: 1, 256>}, {pipeline_mode = #tpu.pipeline_mode<synchronous>, transform_indices = @transform_3, window_bounds = array<i64: 128, 128>}, {pipeline_mode = #tpu.pipeline_mode<synchronous>, transform_indices = @transform_4, window_bounds = array<i64: 1, 128>}, {pipeline_mode = #tpu.pipeline_mode<synchronous>, transform_indices = @transform_5, window_bounds = array<i64: 8, 128>}, {transform_indices = @transform_6, window_bounds = array<i64: 1, 8, 128>}]} {
    %c0 = arith.constant 0 : index
    %c0_0 = arith.constant 0 : index
    %c0_1 = arith.constant 0 : index
    %0 = vector.load %arg1[%c0, %c0_0, %c0_1] : memref<1x8x32xf32, #tpu.memory_space<vmem>>, vector<1x8x32xf32>
    %1 = vector.shape_cast %0 : vector<1x8x32xf32> to vector<8x32xf32>
    %2 = arith.truncf %1 : vector<8x32xf32> to vector<8x32xbf16>
    %c0_2 = arith.constant 0 : index
    %c0_3 = arith.constant 0 : index
    %3 = vector.load %arg2[%c0_2, %c0_3] : memref<32x256xbf16, #tpu.memory_space<vmem>>, vector<32x256xbf16>
    %cst = arith.constant dense<0.000000e+00> : vector<8x256xf32>
    %4 = tpu.matmul %2, %3, %cst {dimension_numbers = #tpu.dot_dimension_numbers<[1], [0], [0], [1], [0, 0, 1, 1], [], []>} : vector<8x32xbf16>, vector<32x256xbf16>, vector<8x256xf32> -> vector<8x256xf32>
    %c0_4 = arith.constant 0 : index
    %c0_5 = arith.constant 0 : index
    %5 = vector.load %arg3[%c0_4, %c0_5] : memref<1x256xf32, #tpu.memory_space<vmem>>, vector<1x256xf32>
    %6 = vector.broadcast %5 : vector<1x256xf32> to vector<8x256xf32>
    %7 = arith.addf %4, %6 : vector<8x256xf32>
    %8 = vector.extract_strided_slice %7 {offsets = [0, 0], sizes = [8, 128], strides = [1, 1]} : vector<8x256xf32> to vector<8x128xf32>
    %9 = vector.extract_strided_slice %7 {offsets = [0, 128], sizes = [8, 128], strides = [1, 1]} : vector<8x256xf32> to vector<8x128xf32>
    %10 = arith.negf %8 : vector<8x128xf32>
    %11 = math.exp %10 : vector<8x128xf32>
    %cst_6 = arith.constant 1.000000e+00 : f32
    %12 = vector.broadcast %cst_6 : f32 to vector<8x128xf32>
    %13 = arith.addf %12, %11 : vector<8x128xf32>
    %14 = arith.divf %12, %13 : vector<8x128xf32>
    %15 = arith.mulf %8, %14 : vector<8x128xf32>
    %16 = arith.truncf %15 : vector<8x128xf32> to vector<8x128xbf16>
    %c0_7 = arith.constant 0 : index
    %c0_8 = arith.constant 0 : index
    %17 = vector.load %arg4[%c0_7, %c0_8] : memref<128x128xbf16, #tpu.memory_space<vmem>>, vector<128x128xbf16>
    %cst_9 = arith.constant dense<0.000000e+00> : vector<8x128xf32>
    %18 = tpu.matmul %16, %17, %cst_9 {dimension_numbers = #tpu.dot_dimension_numbers<[1], [0], [0], [1], [0, 0, 1, 1], [], []>} : vector<8x128xbf16>, vector<128x128xbf16>, vector<8x128xf32> -> vector<8x128xf32>
    %c0_10 = arith.constant 0 : index
    %c0_11 = arith.constant 0 : index
    %19 = vector.load %arg5[%c0_10, %c0_11] : memref<1x128xf32, #tpu.memory_space<vmem>>, vector<1x128xf32>
    %20 = vector.broadcast %19 : vector<1x128xf32> to vector<8x128xf32>
    %21 = arith.addf %18, %20 : vector<8x128xf32>
    %22 = arith.addf %21, %9 : vector<8x128xf32>
    %c0_12 = arith.constant 0 : index
    %c0_13 = arith.constant 0 : index
    %23 = vector.load %arg6[%c0_12, %c0_13] : memref<8x128xf32, #tpu.memory_space<vmem>>, vector<8x128xf32>
    %24 = arith.addf %22, %23 : vector<8x128xf32>
    %c0_14 = arith.constant 0 : index
    %c0_15 = arith.constant 0 : index
    %c0_16 = arith.constant 0 : index
    %25 = vector.load %arg7[%c0_14, %c0_15, %c0_16] : memref<1x8x128xf32, #tpu.memory_space<vmem>>, vector<1x8x128xf32>
    %26 = vector.shape_cast %25 : vector<1x8x128xf32> to vector<8x128xf32>
    %27 = vector.shape_cast %24 : vector<8x128xf32> to vector<1x8x128xf32>
    tpu.vector_store %arg7[%c0_14, %c0_15, %c0_16], %27 {strides = array<i32>} : memref<1x8x128xf32, #tpu.memory_space<vmem>>, vector<1x8x128xf32>,
    return
  }
  func.func @transform_0(%arg0: i32) -> (i32, i32, i32) {
    %c0_i32 = arith.constant 0 : i32
    %c0_i32_0 = arith.constant 0 : i32
    %c0_i32_1 = arith.constant 0 : i32
    return %arg0, %c0_i32, %c0_i32_0 : i32, i32, i32
  }
  func.func @transform_1(%arg0: i32) -> (i32, i32) {
    %c0_i32 = arith.constant 0 : i32
    %c0_i32_0 = arith.constant 0 : i32
    %c0_i32_1 = arith.constant 0 : i32
    return %c0_i32, %c0_i32_0 : i32, i32
  }
  func.func @transform_2(%arg0: i32) -> (i32, i32) {
    %c0_i32 = arith.constant 0 : i32
    %c0_i32_0 = arith.constant 0 : i32
    %c0_i32_1 = arith.constant 0 : i32
    return %c0_i32, %c0_i32_0 : i32, i32
  }
  func.func @transform_3(%arg0: i32) -> (i32, i32) {
    %c0_i32 = arith.constant 0 : i32
    %c0_i32_0 = arith.constant 0 : i32
    %c0_i32_1 = arith.constant 0 : i32
    return %c0_i32, %c0_i32_0 : i32, i32
  }
  func.func @transform_4(%arg0: i32) -> (i32, i32) {
    %c0_i32 = arith.constant 0 : i32
    %c0_i32_0 = arith.constant 0 : i32
    %c0_i32_1 = arith.constant 0 : i32
    return %c0_i32, %c0_i32_0 : i32, i32
  }
  func.func @transform_5(%arg0: i32) -> (i32, i32) {
    %c0_i32 = arith.constant 0 : i32
    %c0_i32_0 = arith.constant 0 : i32
    %c0_i32_1 = arith.constant 0 : i32
    return %c0_i32, %c0_i32_0 : i32, i32
  }
  func.func @transform_6(%arg0: i32) -> (i32, i32, i32) {
    %c0_i32 = arith.constant 0 : i32
    %c0_i32_0 = arith.constant 0 : i32
    %c0_i32_1 = arith.constant 0 : i32
    return %arg0, %c0_i32, %c0_i32_0 : i32, i32, i32
  }
}

module attributes {stable_mosaic.version = 11 : i64} {
  func.func @horizon_ff_kernel(%arg0: i32, %arg1: memref<1x8x128xf32, #tpu.memory_space<vmem>>, %arg2: memref<128x256xbf16, #tpu.memory_space<vmem>>, %arg3: memref<1x256xf32, #tpu.memory_space<vmem>>, %arg4: memref<128x128xbf16, #tpu.memory_space<vmem>>, %arg5: memref<1x128xf32, #tpu.memory_space<vmem>>, %arg6: memref<2x2xf32, #tpu.memory_space<smem>>, %arg7: memref<1x8x128xf32, #tpu.memory_space<vmem>>) attributes {dimension_semantics = [#tpu.dimension_semantics<parallel>], iteration_bounds = array<i64: 2>, scalar_prefetch = 0 : i64, scratch_operands = 0 : i64, tpu.core_type = #tpu.core_type<tc>, window_params = [{transform_indices = @transform_0, window_bounds = array<i64: 1, 8, 128>}, {pipeline_mode = #tpu.pipeline_mode<synchronous>, transform_indices = @transform_1, window_bounds = array<i64: 128, 256>}, {pipeline_mode = #tpu.pipeline_mode<synchronous>, transform_indices = @transform_2, window_bounds = array<i64: 1, 256>}, {pipeline_mode = #tpu.pipeline_mode<synchronous>, transform_indices = @transform_3, window_bounds = array<i64: 128, 128>}, {pipeline_mode = #tpu.pipeline_mode<synchronous>, transform_indices = @transform_4, window_bounds = array<i64: 1, 128>}, {transform_indices = @transform_5, window_bounds = array<i64: 2, 2>}, {transform_indices = @transform_6, window_bounds = array<i64: 1, 8, 128>}]} {
    %0 = arith.index_cast %arg0 : i32 to index
    %c0 = arith.constant 0 : index
    %1 = memref.load %arg6[%0, %c0] : memref<2x2xf32, #tpu.memory_space<smem>>
    %2 = arith.index_cast %arg0 : i32 to index
    %c1 = arith.constant 1 : index
    %3 = memref.load %arg6[%2, %c1] : memref<2x2xf32, #tpu.memory_space<smem>>
    %c0_0 = arith.constant 0 : index
    %c0_1 = arith.constant 0 : index
    %c0_2 = arith.constant 0 : index
    %4 = vector.load %arg1[%c0_0, %c0_1, %c0_2] : memref<1x8x128xf32, #tpu.memory_space<vmem>>, vector<1x8x128xf32>
    %5 = vector.shape_cast %4 : vector<1x8x128xf32> to vector<8x128xf32>
    %6 = arith.truncf %5 : vector<8x128xf32> to vector<8x128xbf16>
    %c0_3 = arith.constant 0 : index
    %c0_4 = arith.constant 0 : index
    %7 = vector.load %arg2[%c0_3, %c0_4] : memref<128x256xbf16, #tpu.memory_space<vmem>>, vector<128x256xbf16>
    %cst = arith.constant dense<0.000000e+00> : vector<8x256xf32>
    %8 = tpu.matmul %6, %7, %cst {dimension_numbers = #tpu.dot_dimension_numbers<[1], [0], [0], [1], [0, 0, 1, 1], [], []>} : vector<8x128xbf16>, vector<128x256xbf16>, vector<8x256xf32> -> vector<8x256xf32>
    %c0_5 = arith.constant 0 : index
    %c0_6 = arith.constant 0 : index
    %9 = vector.load %arg3[%c0_5, %c0_6] : memref<1x256xf32, #tpu.memory_space<vmem>>, vector<1x256xf32>
    %10 = vector.broadcast %9 : vector<1x256xf32> to vector<8x256xf32>
    %11 = arith.addf %8, %10 : vector<8x256xf32>
    %12 = vector.extract_strided_slice %11 {offsets = [0, 0], sizes = [8, 128], strides = [1, 1]} : vector<8x256xf32> to vector<8x128xf32>
    %13 = vector.extract_strided_slice %11 {offsets = [0, 128], sizes = [8, 128], strides = [1, 1]} : vector<8x256xf32> to vector<8x128xf32>
    %14 = arith.negf %12 : vector<8x128xf32>
    %15 = math.exp %14 : vector<8x128xf32>
    %cst_7 = arith.constant 1.000000e+00 : f32
    %16 = vector.broadcast %cst_7 : f32 to vector<8x128xf32>
    %17 = arith.addf %16, %15 : vector<8x128xf32>
    %18 = arith.divf %16, %17 : vector<8x128xf32>
    %19 = arith.mulf %12, %18 : vector<8x128xf32>
    %20 = arith.truncf %19 : vector<8x128xf32> to vector<8x128xbf16>
    %c0_8 = arith.constant 0 : index
    %c0_9 = arith.constant 0 : index
    %21 = vector.load %arg4[%c0_8, %c0_9] : memref<128x128xbf16, #tpu.memory_space<vmem>>, vector<128x128xbf16>
    %cst_10 = arith.constant dense<0.000000e+00> : vector<8x128xf32>
    %22 = tpu.matmul %20, %21, %cst_10 {dimension_numbers = #tpu.dot_dimension_numbers<[1], [0], [0], [1], [0, 0, 1, 1], [], []>} : vector<8x128xbf16>, vector<128x128xbf16>, vector<8x128xf32> -> vector<8x128xf32>
    %c0_11 = arith.constant 0 : index
    %c0_12 = arith.constant 0 : index
    %23 = vector.load %arg5[%c0_11, %c0_12] : memref<1x128xf32, #tpu.memory_space<vmem>>, vector<1x128xf32>
    %24 = vector.broadcast %23 : vector<1x128xf32> to vector<8x128xf32>
    %25 = arith.addf %22, %24 : vector<8x128xf32>
    %26 = arith.addf %25, %13 : vector<8x128xf32>
    %27 = vector.broadcast %3 : f32 to vector<8x128xf32>
    %28 = arith.mulf %26, %27 : vector<8x128xf32>
    %29 = vector.broadcast %1 : f32 to vector<8x128xf32>
    %30 = arith.addf %28, %29 : vector<8x128xf32>
    %c0_13 = arith.constant 0 : index
    %c0_14 = arith.constant 0 : index
    %c0_15 = arith.constant 0 : index
    %31 = vector.load %arg7[%c0_13, %c0_14, %c0_15] : memref<1x8x128xf32, #tpu.memory_space<vmem>>, vector<1x8x128xf32>
    %32 = vector.shape_cast %31 : vector<1x8x128xf32> to vector<8x128xf32>
    %33 = vector.shape_cast %30 : vector<8x128xf32> to vector<1x8x128xf32>
    tpu.vector_store %arg7[%c0_13, %c0_14, %c0_15], %33 {strides = array<i32>} : memref<1x8x128xf32, #tpu.memory_space<vmem>>, vector<1x8x128xf32>,
    return
  }
  func.func @transform_0(%arg0: i32) -> (i32, i32, i32) {
    %c0_i32 = arith.constant 0 : i32
    %c0_i32_0 = arith.constant 0 : i32
    %c0_i32_1 = arith.constant 0 : i32
    return %arg0, %c0_i32, %c0_i32_0 : i32, i32, i32
  }
  func.func @transform_1(%arg0: i32) -> (i32, i32) {
    %c0_i32 = arith.constant 0 : i32
    %c0_i32_0 = arith.constant 0 : i32
    %c0_i32_1 = arith.constant 0 : i32
    return %c0_i32, %c0_i32_0 : i32, i32
  }
  func.func @transform_2(%arg0: i32) -> (i32, i32) {
    %c0_i32 = arith.constant 0 : i32
    %c0_i32_0 = arith.constant 0 : i32
    %c0_i32_1 = arith.constant 0 : i32
    return %c0_i32, %c0_i32_0 : i32, i32
  }
  func.func @transform_3(%arg0: i32) -> (i32, i32) {
    %c0_i32 = arith.constant 0 : i32
    %c0_i32_0 = arith.constant 0 : i32
    %c0_i32_1 = arith.constant 0 : i32
    return %c0_i32, %c0_i32_0 : i32, i32
  }
  func.func @transform_4(%arg0: i32) -> (i32, i32) {
    %c0_i32 = arith.constant 0 : i32
    %c0_i32_0 = arith.constant 0 : i32
    %c0_i32_1 = arith.constant 0 : i32
    return %c0_i32, %c0_i32_0 : i32, i32
  }
  func.func @transform_5(%arg0: i32) -> (i32, i32) {
    %c0_i32 = arith.constant 0 : i32
    %c0_i32_0 = arith.constant 0 : i32
    %c0_i32_1 = arith.constant 0 : i32
    return %c0_i32, %c0_i32_0 : i32, i32
  }
  func.func @transform_6(%arg0: i32) -> (i32, i32, i32) {
    %c0_i32 = arith.constant 0 : i32
    %c0_i32_0 = arith.constant 0 : i32
    %c0_i32_1 = arith.constant 0 : i32
    return %arg0, %c0_i32, %c0_i32_0 : i32, i32, i32
  }
}

module attributes {stable_mosaic.version = 11 : i64} {
  func.func @transformer_stack_kernel(%arg0: i32, %arg1: i32, %arg2: memref<1x8x128xf32, #tpu.memory_space<vmem>>, %arg3: memref<1x1x128xf32, #tpu.memory_space<vmem>>, %arg4: memref<1x1x128xf32, #tpu.memory_space<vmem>>, %arg5: memref<1x4x128x32xbf16, #tpu.memory_space<vmem>>, %arg6: memref<1x4x1x32xf32, #tpu.memory_space<vmem>>, %arg7: memref<1x4x128x32xbf16, #tpu.memory_space<vmem>>, %arg8: memref<1x4x1x32xf32, #tpu.memory_space<vmem>>, %arg9: memref<1x4x128x32xbf16, #tpu.memory_space<vmem>>, %arg10: memref<1x4x1x32xf32, #tpu.memory_space<vmem>>, %arg11: memref<1x4x32x128xbf16, #tpu.memory_space<vmem>>, %arg12: memref<1x1x128xf32, #tpu.memory_space<vmem>>, %arg13: memref<1x1x128xf32, #tpu.memory_space<vmem>>, %arg14: memref<1x1x128xf32, #tpu.memory_space<vmem>>, %arg15: memref<1x128x128xbf16, #tpu.memory_space<vmem>>, %arg16: memref<1x1x128xf32, #tpu.memory_space<vmem>>, %arg17: memref<1x128x128xbf16, #tpu.memory_space<vmem>>, %arg18: memref<1x1x128xf32, #tpu.memory_space<vmem>>, %arg19: memref<1x8x128xf32, #tpu.memory_space<vmem>>) attributes {dimension_semantics = [#tpu.dimension_semantics<parallel>, #tpu.dimension_semantics<arbitrary>], iteration_bounds = array<i64: 2, 2>, scalar_prefetch = 0 : i64, scratch_operands = 0 : i64, tpu.core_type = #tpu.core_type<tc>, window_params = [{transform_indices = @transform_0, window_bounds = array<i64: 1, 8, 128>}, {transform_indices = @transform_1, window_bounds = array<i64: 1, 1, 128>}, {transform_indices = @transform_2, window_bounds = array<i64: 1, 1, 128>}, {transform_indices = @transform_3, window_bounds = array<i64: 1, 4, 128, 32>}, {transform_indices = @transform_4, window_bounds = array<i64: 1, 4, 1, 32>}, {transform_indices = @transform_5, window_bounds = array<i64: 1, 4, 128, 32>}, {transform_indices = @transform_6, window_bounds = array<i64: 1, 4, 1, 32>}, {transform_indices = @transform_7, window_bounds = array<i64: 1, 4, 128, 32>}, {transform_indices = @transform_8, window_bounds = array<i64: 1, 4, 1, 32>}, {transform_indices = @transform_9, window_bounds = array<i64: 1, 4, 32, 128>}, {transform_indices = @transform_10, window_bounds = array<i64: 1, 1, 128>}, {transform_indices = @transform_11, window_bounds = array<i64: 1, 1, 128>}, {transform_indices = @transform_12, window_bounds = array<i64: 1, 1, 128>}, {transform_indices = @transform_13, window_bounds = array<i64: 1, 128, 128>}, {transform_indices = @transform_14, window_bounds = array<i64: 1, 1, 128>}, {transform_indices = @transform_15, window_bounds = array<i64: 1, 128, 128>}, {transform_indices = @transform_16, window_bounds = array<i64: 1, 1, 128>}, {transform_indices = @transform_17, window_bounds = array<i64: 1, 8, 128>}]} {
    %c0_i32 = arith.constant 0 : i32
    %0 = arith.cmpi eq, %arg1, %c0_i32 : i32
    %1 = arith.extui %0 : i1 to i32
    %c0_i32_0 = arith.constant 0 : i32
    %2 = arith.cmpi ne, %1, %c0_i32_0 : i32
    scf.if %2 {
      %c0_84 = arith.constant 0 : index
      %c0_85 = arith.constant 0 : index
      %c0_86 = arith.constant 0 : index
      %140 = vector.load %arg2[%c0_84, %c0_85, %c0_86] : memref<1x8x128xf32, #tpu.memory_space<vmem>>, vector<1x8x128xf32>
      %141 = vector.shape_cast %140 : vector<1x8x128xf32> to vector<8x128xf32>
      %c0_87 = arith.constant 0 : index
      %c0_88 = arith.constant 0 : index
      %c0_89 = arith.constant 0 : index
      %142 = vector.load %arg19[%c0_87, %c0_88, %c0_89] : memref<1x8x128xf32, #tpu.memory_space<vmem>>, vector<1x8x128xf32>
      %143 = vector.shape_cast %142 : vector<1x8x128xf32> to vector<8x128xf32>
      %144 = vector.shape_cast %141 : vector<8x128xf32> to vector<1x8x128xf32>
      tpu.vector_store %arg19[%c0_87, %c0_88, %c0_89], %144 {strides = array<i32>} : memref<1x8x128xf32, #tpu.memory_space<vmem>>, vector<1x8x128xf32>,
    } else {
    }
    %c0 = arith.constant 0 : index
    %c0_1 = arith.constant 0 : index
    %c0_2 = arith.constant 0 : index
    %3 = vector.load %arg19[%c0, %c0_1, %c0_2] : memref<1x8x128xf32, #tpu.memory_space<vmem>>, vector<1x8x128xf32>
    %4 = vector.shape_cast %3 : vector<1x8x128xf32> to vector<8x128xf32>
    %cst = arith.constant dense<0.000000e+00> : vector<8xf32>
    %5 = vector.multi_reduction <add>, %4, %cst [1] : vector<8x128xf32> to vector<8xf32>
    %6 = vector.shape_cast %5 : vector<8xf32> to vector<8x1xf32>
    %cst_3 = arith.constant 1.280000e+02 : f32
    %7 = vector.broadcast %cst_3 : f32 to vector<8x1xf32>
    %8 = arith.divf %6, %7 : vector<8x1xf32>
    %9 = vector.broadcast %8 : vector<8x1xf32> to vector<8x128xf32>
    %10 = arith.subf %4, %9 : vector<8x128xf32>
    %11 = arith.mulf %10, %10 : vector<8x128xf32>
    %cst_4 = arith.constant dense<0.000000e+00> : vector<8xf32>
    %12 = vector.multi_reduction <add>, %11, %cst_4 [1] : vector<8x128xf32> to vector<8xf32>
    %13 = vector.shape_cast %12 : vector<8xf32> to vector<8x1xf32>
    %cst_5 = arith.constant 1.280000e+02 : f32
    %14 = vector.broadcast %cst_5 : f32 to vector<8x1xf32>
    %15 = arith.divf %13, %14 : vector<8x1xf32>
    %16 = vector.broadcast %8 : vector<8x1xf32> to vector<8x128xf32>
    %17 = arith.subf %4, %16 : vector<8x128xf32>
    %cst_6 = arith.constant 9.99999997E-7 : f32
    %18 = vector.broadcast %cst_6 : f32 to vector<8x1xf32>
    %19 = arith.addf %15, %18 : vector<8x1xf32>
    %20 = math.rsqrt %19 : vector<8x1xf32>
    %21 = vector.broadcast %20 : vector<8x1xf32> to vector<8x128xf32>
    %22 = arith.mulf %17, %21 : vector<8x128xf32>
    %c0_7 = arith.constant 0 : index
    %c0_8 = arith.constant 0 : index
    %c0_9 = arith.constant 0 : index
    %23 = vector.load %arg3[%c0_7, %c0_8, %c0_9] : memref<1x1x128xf32, #tpu.memory_space<vmem>>, vector<1x1x128xf32>
    %24 = vector.shape_cast %23 : vector<1x1x128xf32> to vector<1x128xf32>
    %25 = vector.broadcast %24 : vector<1x128xf32> to vector<8x128xf32>
    %26 = arith.mulf %22, %25 : vector<8x128xf32>
    %c0_10 = arith.constant 0 : index
    %c0_11 = arith.constant 0 : index
    %c0_12 = arith.constant 0 : index
    %27 = vector.load %arg4[%c0_10, %c0_11, %c0_12] : memref<1x1x128xf32, #tpu.memory_space<vmem>>, vector<1x1x128xf32>
    %28 = vector.shape_cast %27 : vector<1x1x128xf32> to vector<1x128xf32>
    %29 = vector.broadcast %28 : vector<1x128xf32> to vector<8x128xf32>
    %30 = arith.addf %26, %29 : vector<8x128xf32>
    %31 = arith.truncf %30 : vector<8x128xf32> to vector<8x128xbf16>
    %32 = vector.shape_cast %31 : vector<8x128xbf16> to vector<1x8x128xbf16>
    %33 = vector.shape_cast %32 : vector<1x8x128xbf16> to vector<1x8x128xbf16>
    %34 = vector.broadcast %33 : vector<1x8x128xbf16> to vector<4x8x128xbf16>
    %c0_13 = arith.constant 0 : index
    %c0_14 = arith.constant 0 : index
    %c0_15 = arith.constant 0 : index
    %c0_16 = arith.constant 0 : index
    %35 = vector.load %arg5[%c0_13, %c0_14, %c0_15, %c0_16] : memref<1x4x128x32xbf16, #tpu.memory_space<vmem>>, vector<1x4x128x32xbf16>
    %36 = vector.shape_cast %35 : vector<1x4x128x32xbf16> to vector<4x128x32xbf16>
    "tpu.trace_start"() <{level = 10 : i32, message = "hsd,hde->hse"}> : () -> ()
    %cst_17 = arith.constant dense<0.000000e+00> : vector<4x8x32xf32>
    %37 = tpu.matmul %34, %36, %cst_17 {dimension_numbers = #tpu.dot_dimension_numbers<[2], [1], [1], [2], [0, 0, 0, 1, 1, 2], [0], [0]>} : vector<4x8x128xbf16>, vector<4x128x32xbf16>, vector<4x8x32xf32> -> vector<4x8x32xf32>
    "tpu.trace_stop"() : () -> ()
    %c0_18 = arith.constant 0 : index
    %c0_19 = arith.constant 0 : index
    %c0_20 = arith.constant 0 : index
    %c0_21 = arith.constant 0 : index
    %38 = vector.load %arg6[%c0_18, %c0_19, %c0_20, %c0_21] : memref<1x4x1x32xf32, #tpu.memory_space<vmem>>, vector<1x4x1x32xf32>
    %39 = vector.shape_cast %38 : vector<1x4x1x32xf32> to vector<4x1x32xf32>
    %40 = vector.broadcast %39 : vector<4x1x32xf32> to vector<4x8x32xf32>
    %41 = arith.addf %37, %40 : vector<4x8x32xf32>
    %c0_22 = arith.constant 0 : index
    %c0_23 = arith.constant 0 : index
    %c0_24 = arith.constant 0 : index
    %c0_25 = arith.constant 0 : index
    %42 = vector.load %arg7[%c0_22, %c0_23, %c0_24, %c0_25] : memref<1x4x128x32xbf16, #tpu.memory_space<vmem>>, vector<1x4x128x32xbf16>
    %43 = vector.shape_cast %42 : vector<1x4x128x32xbf16> to vector<4x128x32xbf16>
    "tpu.trace_start"() <{level = 10 : i32, message = "hsd,hde->hse"}> : () -> ()
    %cst_26 = arith.constant dense<0.000000e+00> : vector<4x8x32xf32>
    %44 = tpu.matmul %34, %43, %cst_26 {dimension_numbers = #tpu.dot_dimension_numbers<[2], [1], [1], [2], [0, 0, 0, 1, 1, 2], [0], [0]>} : vector<4x8x128xbf16>, vector<4x128x32xbf16>, vector<4x8x32xf32> -> vector<4x8x32xf32>
    "tpu.trace_stop"() : () -> ()
    %c0_27 = arith.constant 0 : index
    %c0_28 = arith.constant 0 : index
    %c0_29 = arith.constant 0 : index
    %c0_30 = arith.constant 0 : index
    %45 = vector.load %arg8[%c0_27, %c0_28, %c0_29, %c0_30] : memref<1x4x1x32xf32, #tpu.memory_space<vmem>>, vector<1x4x1x32xf32>
    %46 = vector.shape_cast %45 : vector<1x4x1x32xf32> to vector<4x1x32xf32>
    %47 = vector.broadcast %46 : vector<4x1x32xf32> to vector<4x8x32xf32>
    %48 = arith.addf %44, %47 : vector<4x8x32xf32>
    %c0_31 = arith.constant 0 : index
    %c0_32 = arith.constant 0 : index
    %c0_33 = arith.constant 0 : index
    %c0_34 = arith.constant 0 : index
    %49 = vector.load %arg9[%c0_31, %c0_32, %c0_33, %c0_34] : memref<1x4x128x32xbf16, #tpu.memory_space<vmem>>, vector<1x4x128x32xbf16>
    %50 = vector.shape_cast %49 : vector<1x4x128x32xbf16> to vector<4x128x32xbf16>
    "tpu.trace_start"() <{level = 10 : i32, message = "hsd,hde->hse"}> : () -> ()
    %cst_35 = arith.constant dense<0.000000e+00> : vector<4x8x32xf32>
    %51 = tpu.matmul %34, %50, %cst_35 {dimension_numbers = #tpu.dot_dimension_numbers<[2], [1], [1], [2], [0, 0, 0, 1, 1, 2], [0], [0]>} : vector<4x8x128xbf16>, vector<4x128x32xbf16>, vector<4x8x32xf32> -> vector<4x8x32xf32>
    "tpu.trace_stop"() : () -> ()
    %c0_36 = arith.constant 0 : index
    %c0_37 = arith.constant 0 : index
    %c0_38 = arith.constant 0 : index
    %c0_39 = arith.constant 0 : index
    %52 = vector.load %arg10[%c0_36, %c0_37, %c0_38, %c0_39] : memref<1x4x1x32xf32, #tpu.memory_space<vmem>>, vector<1x4x1x32xf32>
    %53 = vector.shape_cast %52 : vector<1x4x1x32xf32> to vector<4x1x32xf32>
    %54 = vector.broadcast %53 : vector<4x1x32xf32> to vector<4x8x32xf32>
    %55 = arith.addf %51, %54 : vector<4x8x32xf32>
    %56 = arith.truncf %41 : vector<4x8x32xf32> to vector<4x8x32xbf16>
    %57 = arith.truncf %48 : vector<4x8x32xf32> to vector<4x8x32xbf16>
    "tpu.trace_start"() <{level = 10 : i32, message = "hse,hte->hst"}> : () -> ()
    %cst_40 = arith.constant dense<0.000000e+00> : vector<4x8x8xf32>
    %58 = tpu.matmul %56, %57, %cst_40 {dimension_numbers = #tpu.dot_dimension_numbers<[2], [2], [1], [1], [0, 0, 0, 1, 1, 1], [0], [0]>} : vector<4x8x32xbf16>, vector<4x8x32xbf16>, vector<4x8x8xf32> -> vector<4x8x8xf32>
    "tpu.trace_stop"() : () -> ()
    %cst_41 = arith.constant 0.176776692 : f32
    %59 = vector.broadcast %cst_41 : f32 to vector<4x8x8xf32>
    %60 = arith.mulf %58, %59 : vector<4x8x8xf32>
    %61 = tpu.iota {dimensions = array<i32: 0>} : vector<8x8xi32>
    %62 = tpu.iota {dimensions = array<i32: 1>} : vector<8x8xi32>
    %63 = arith.cmpi sge, %61, %62 : vector<8x8xi32>
    %64 = vector.shape_cast %63 : vector<8x8xi1> to vector<1x8x8xi1>
    %cst_42 = arith.constant -1.000000e+30 : f32
    %65 = vector.shape_cast %64 : vector<1x8x8xi1> to vector<1x8x8xi1>
    %66 = vector.broadcast %65 : vector<1x8x8xi1> to vector<4x8x8xi1>
    %67 = vector.broadcast %cst_42 : f32 to vector<4x8x8xf32>
    %68 = arith.select %66, %60, %67 : vector<4x8x8xi1>, vector<4x8x8xf32>
    %cst_43 = arith.constant dense<0xFF800000> : vector<4x8xf32>
    %69 = vector.multi_reduction <maximumf>, %68, %cst_43 [2] : vector<4x8x8xf32> to vector<4x8xf32>
    %70 = vector.shape_cast %69 : vector<4x8xf32> to vector<4x8x1xf32>
    %71 = vector.broadcast %70 : vector<4x8x1xf32> to vector<4x8x8xf32>
    %72 = arith.subf %68, %71 : vector<4x8x8xf32>
    %73 = math.exp %72 : vector<4x8x8xf32>
    %cst_44 = arith.constant dense<0.000000e+00> : vector<4x8xf32>
    %74 = vector.multi_reduction <add>, %73, %cst_44 [2] : vector<4x8x8xf32> to vector<4x8xf32>
    %75 = vector.shape_cast %74 : vector<4x8xf32> to vector<4x8x1xf32>
    %76 = tpu.reciprocal %75 {approx = true} : vector<4x8x1xf32> -> vector<4x8x1xf32>
    %77 = vector.broadcast %76 : vector<4x8x1xf32> to vector<4x8x8xf32>
    %78 = arith.mulf %73, %77 : vector<4x8x8xf32>
    %79 = arith.truncf %78 : vector<4x8x8xf32> to vector<4x8x8xbf16>
    %80 = arith.truncf %55 : vector<4x8x32xf32> to vector<4x8x32xbf16>
    "tpu.trace_start"() <{level = 10 : i32, message = "hst,hte->hse"}> : () -> ()
    %cst_45 = arith.constant dense<0.000000e+00> : vector<4x8x32xf32>
    %81 = tpu.matmul %79, %80, %cst_45 {dimension_numbers = #tpu.dot_dimension_numbers<[2], [1], [1], [2], [0, 0, 0, 1, 1, 2], [0], [0]>} : vector<4x8x8xbf16>, vector<4x8x32xbf16>, vector<4x8x32xf32> -> vector<4x8x32xf32>
    "tpu.trace_stop"() : () -> ()
    %82 = arith.truncf %81 : vector<4x8x32xf32> to vector<4x8x32xbf16>
    %c0_46 = arith.constant 0 : index
    %c0_47 = arith.constant 0 : index
    %c0_48 = arith.constant 0 : index
    %c0_49 = arith.constant 0 : index
    %83 = vector.load %arg11[%c0_46, %c0_47, %c0_48, %c0_49] : memref<1x4x32x128xbf16, #tpu.memory_space<vmem>>, vector<1x4x32x128xbf16>
    %84 = vector.shape_cast %83 : vector<1x4x32x128xbf16> to vector<4x32x128xbf16>
    "tpu.trace_start"() <{level = 10 : i32, message = "hse,hed->hsd"}> : () -> ()
    %cst_50 = arith.constant dense<0.000000e+00> : vector<4x8x128xf32>
    %85 = tpu.matmul %82, %84, %cst_50 {dimension_numbers = #tpu.dot_dimension_numbers<[2], [1], [1], [2], [0, 0, 0, 1, 1, 2], [0], [0]>} : vector<4x8x32xbf16>, vector<4x32x128xbf16>, vector<4x8x128xf32> -> vector<4x8x128xf32>
    "tpu.trace_stop"() : () -> ()
    %cst_51 = arith.constant dense<0.000000e+00> : vector<8x128xf32>
    %86 = vector.multi_reduction <add>, %85, %cst_51 [0] : vector<4x8x128xf32> to vector<8x128xf32>
    %c0_52 = arith.constant 0 : index
    %c0_53 = arith.constant 0 : index
    %c0_54 = arith.constant 0 : index
    %87 = vector.load %arg12[%c0_52, %c0_53, %c0_54] : memref<1x1x128xf32, #tpu.memory_space<vmem>>, vector<1x1x128xf32>
    %88 = vector.shape_cast %87 : vector<1x1x128xf32> to vector<1x128xf32>
    %89 = vector.broadcast %88 : vector<1x128xf32> to vector<8x128xf32>
    %90 = arith.addf %86, %89 : vector<8x128xf32>
    %91 = arith.addf %4, %90 : vector<8x128xf32>
    %cst_55 = arith.constant dense<0.000000e+00> : vector<8xf32>
    %92 = vector.multi_reduction <add>, %91, %cst_55 [1] : vector<8x128xf32> to vector<8xf32>
    %93 = vector.shape_cast %92 : vector<8xf32> to vector<8x1xf32>
    %cst_56 = arith.constant 1.280000e+02 : f32
    %94 = vector.broadcast %cst_56 : f32 to vector<8x1xf32>
    %95 = arith.divf %93, %94 : vector<8x1xf32>
    %96 = vector.broadcast %95 : vector<8x1xf32> to vector<8x128xf32>
    %97 = arith.subf %91, %96 : vector<8x128xf32>
    %98 = arith.mulf %97, %97 : vector<8x128xf32>
    %cst_57 = arith.constant dense<0.000000e+00> : vector<8xf32>
    %99 = vector.multi_reduction <add>, %98, %cst_57 [1] : vector<8x128xf32> to vector<8xf32>
    %100 = vector.shape_cast %99 : vector<8xf32> to vector<8x1xf32>
    %cst_58 = arith.constant 1.280000e+02 : f32
    %101 = vector.broadcast %cst_58 : f32 to vector<8x1xf32>
    %102 = arith.divf %100, %101 : vector<8x1xf32>
    %103 = vector.broadcast %95 : vector<8x1xf32> to vector<8x128xf32>
    %104 = arith.subf %91, %103 : vector<8x128xf32>
    %cst_59 = arith.constant 9.99999997E-7 : f32
    %105 = vector.broadcast %cst_59 : f32 to vector<8x1xf32>
    %106 = arith.addf %102, %105 : vector<8x1xf32>
    %107 = math.rsqrt %106 : vector<8x1xf32>
    %108 = vector.broadcast %107 : vector<8x1xf32> to vector<8x128xf32>
    %109 = arith.mulf %104, %108 : vector<8x128xf32>
    %c0_60 = arith.constant 0 : index
    %c0_61 = arith.constant 0 : index
    %c0_62 = arith.constant 0 : index
    %110 = vector.load %arg13[%c0_60, %c0_61, %c0_62] : memref<1x1x128xf32, #tpu.memory_space<vmem>>, vector<1x1x128xf32>
    %111 = vector.shape_cast %110 : vector<1x1x128xf32> to vector<1x128xf32>
    %112 = vector.broadcast %111 : vector<1x128xf32> to vector<8x128xf32>
    %113 = arith.mulf %109, %112 : vector<8x128xf32>
    %c0_63 = arith.constant 0 : index
    %c0_64 = arith.constant 0 : index
    %c0_65 = arith.constant 0 : index
    %114 = vector.load %arg14[%c0_63, %c0_64, %c0_65] : memref<1x1x128xf32, #tpu.memory_space<vmem>>, vector<1x1x128xf32>
    %115 = vector.shape_cast %114 : vector<1x1x128xf32> to vector<1x128xf32>
    %116 = vector.broadcast %115 : vector<1x128xf32> to vector<8x128xf32>
    %117 = arith.addf %113, %116 : vector<8x128xf32>
    %118 = arith.truncf %117 : vector<8x128xf32> to vector<8x128xbf16>
    %c0_66 = arith.constant 0 : index
    %c0_67 = arith.constant 0 : index
    %c0_68 = arith.constant 0 : index
    %119 = vector.load %arg15[%c0_66, %c0_67, %c0_68] : memref<1x128x128xbf16, #tpu.memory_space<vmem>>, vector<1x128x128xbf16>
    %120 = vector.shape_cast %119 : vector<1x128x128xbf16> to vector<128x128xbf16>
    %cst_69 = arith.constant dense<0.000000e+00> : vector<8x128xf32>
    %121 = tpu.matmul %118, %120, %cst_69 {dimension_numbers = #tpu.dot_dimension_numbers<[1], [0], [0], [1], [0, 0, 1, 1], [], []>} : vector<8x128xbf16>, vector<128x128xbf16>, vector<8x128xf32> -> vector<8x128xf32>
    %c0_70 = arith.constant 0 : index
    %c0_71 = arith.constant 0 : index
    %c0_72 = arith.constant 0 : index
    %122 = vector.load %arg16[%c0_70, %c0_71, %c0_72] : memref<1x1x128xf32, #tpu.memory_space<vmem>>, vector<1x1x128xf32>
    %123 = vector.shape_cast %122 : vector<1x1x128xf32> to vector<1x128xf32>
    %124 = vector.broadcast %123 : vector<1x128xf32> to vector<8x128xf32>
    %125 = arith.addf %121, %124 : vector<8x128xf32>
    %cst_73 = arith.constant 0.000000e+00 : f32
    %126 = vector.broadcast %cst_73 : f32 to vector<8x128xf32>
    %127 = arith.maximumf %125, %126 : vector<8x128xf32>
    %128 = arith.truncf %127 : vector<8x128xf32> to vector<8x128xbf16>
    %c0_74 = arith.constant 0 : index
    %c0_75 = arith.constant 0 : index
    %c0_76 = arith.constant 0 : index
    %129 = vector.load %arg17[%c0_74, %c0_75, %c0_76] : memref<1x128x128xbf16, #tpu.memory_space<vmem>>, vector<1x128x128xbf16>
    %130 = vector.shape_cast %129 : vector<1x128x128xbf16> to vector<128x128xbf16>
    %cst_77 = arith.constant dense<0.000000e+00> : vector<8x128xf32>
    %131 = tpu.matmul %128, %130, %cst_77 {dimension_numbers = #tpu.dot_dimension_numbers<[1], [0], [0], [1], [0, 0, 1, 1], [], []>} : vector<8x128xbf16>, vector<128x128xbf16>, vector<8x128xf32> -> vector<8x128xf32>
    %c0_78 = arith.constant 0 : index
    %c0_79 = arith.constant 0 : index
    %c0_80 = arith.constant 0 : index
    %132 = vector.load %arg18[%c0_78, %c0_79, %c0_80] : memref<1x1x128xf32, #tpu.memory_space<vmem>>, vector<1x1x128xf32>
    %133 = vector.shape_cast %132 : vector<1x1x128xf32> to vector<1x128xf32>
    %134 = vector.broadcast %133 : vector<1x128xf32> to vector<8x128xf32>
    %135 = arith.addf %131, %134 : vector<8x128xf32>
    %136 = arith.addf %91, %135 : vector<8x128xf32>
    %c0_81 = arith.constant 0 : index
    %c0_82 = arith.constant 0 : index
    %c0_83 = arith.constant 0 : index
    %137 = vector.load %arg19[%c0_81, %c0_82, %c0_83] : memref<1x8x128xf32, #tpu.memory_space<vmem>>, vector<1x8x128xf32>
    %138 = vector.shape_cast %137 : vector<1x8x128xf32> to vector<8x128xf32>
    %139 = vector.shape_cast %136 : vector<8x128xf32> to vector<1x8x128xf32>
    tpu.vector_store %arg19[%c0_81, %c0_82, %c0_83], %139 {strides = array<i32>} : memref<1x8x128xf32, #tpu.memory_space<vmem>>, vector<1x8x128xf32>,
    return
  }
  func.func @transform_0(%arg0: i32, %arg1: i32) -> (i32, i32, i32) {
    %c0_i32 = arith.constant 0 : i32
    %c0_i32_0 = arith.constant 0 : i32
    %c0_i32_1 = arith.constant 0 : i32
    return %arg0, %c0_i32, %c0_i32_0 : i32, i32, i32
  }
  func.func @transform_1(%arg0: i32, %arg1: i32) -> (i32, i32, i32) {
    %c0_i32 = arith.constant 0 : i32
    %c0_i32_0 = arith.constant 0 : i32
    %c0_i32_1 = arith.constant 0 : i32
    return %arg1, %c0_i32, %c0_i32_0 : i32, i32, i32
  }
  func.func @transform_2(%arg0: i32, %arg1: i32) -> (i32, i32, i32) {
    %c0_i32 = arith.constant 0 : i32
    %c0_i32_0 = arith.constant 0 : i32
    %c0_i32_1 = arith.constant 0 : i32
    return %arg1, %c0_i32, %c0_i32_0 : i32, i32, i32
  }
  func.func @transform_3(%arg0: i32, %arg1: i32) -> (i32, i32, i32, i32) {
    %c0_i32 = arith.constant 0 : i32
    %c0_i32_0 = arith.constant 0 : i32
    %c0_i32_1 = arith.constant 0 : i32
    %c0_i32_2 = arith.constant 0 : i32
    return %arg1, %c0_i32, %c0_i32_0, %c0_i32_1 : i32, i32, i32, i32
  }
  func.func @transform_4(%arg0: i32, %arg1: i32) -> (i32, i32, i32, i32) {
    %c0_i32 = arith.constant 0 : i32
    %c0_i32_0 = arith.constant 0 : i32
    %c0_i32_1 = arith.constant 0 : i32
    %c0_i32_2 = arith.constant 0 : i32
    return %arg1, %c0_i32, %c0_i32_0, %c0_i32_1 : i32, i32, i32, i32
  }
  func.func @transform_5(%arg0: i32, %arg1: i32) -> (i32, i32, i32, i32) {
    %c0_i32 = arith.constant 0 : i32
    %c0_i32_0 = arith.constant 0 : i32
    %c0_i32_1 = arith.constant 0 : i32
    %c0_i32_2 = arith.constant 0 : i32
    return %arg1, %c0_i32, %c0_i32_0, %c0_i32_1 : i32, i32, i32, i32
  }
  func.func @transform_6(%arg0: i32, %arg1: i32) -> (i32, i32, i32, i32) {
    %c0_i32 = arith.constant 0 : i32
    %c0_i32_0 = arith.constant 0 : i32
    %c0_i32_1 = arith.constant 0 : i32
    %c0_i32_2 = arith.constant 0 : i32
    return %arg1, %c0_i32, %c0_i32_0, %c0_i32_1 : i32, i32, i32, i32
  }
  func.func @transform_7(%arg0: i32, %arg1: i32) -> (i32, i32, i32, i32) {
    %c0_i32 = arith.constant 0 : i32
    %c0_i32_0 = arith.constant 0 : i32
    %c0_i32_1 = arith.constant 0 : i32
    %c0_i32_2 = arith.constant 0 : i32
    return %arg1, %c0_i32, %c0_i32_0, %c0_i32_1 : i32, i32, i32, i32
  }
  func.func @transform_8(%arg0: i32, %arg1: i32) -> (i32, i32, i32, i32) {
    %c0_i32 = arith.constant 0 : i32
    %c0_i32_0 = arith.constant 0 : i32
    %c0_i32_1 = arith.constant 0 : i32
    %c0_i32_2 = arith.constant 0 : i32
    return %arg1, %c0_i32, %c0_i32_0, %c0_i32_1 : i32, i32, i32, i32
  }
  func.func @transform_9(%arg0: i32, %arg1: i32) -> (i32, i32, i32, i32) {
    %c0_i32 = arith.constant 0 : i32
    %c0_i32_0 = arith.constant 0 : i32
    %c0_i32_1 = arith.constant 0 : i32
    %c0_i32_2 = arith.constant 0 : i32
    return %arg1, %c0_i32, %c0_i32_0, %c0_i32_1 : i32, i32, i32, i32
  }
  func.func @transform_10(%arg0: i32, %arg1: i32) -> (i32, i32, i32) {
    %c0_i32 = arith.constant 0 : i32
    %c0_i32_0 = arith.constant 0 : i32
    %c0_i32_1 = arith.constant 0 : i32
    return %arg1, %c0_i32, %c0_i32_0 : i32, i32, i32
  }
  func.func @transform_11(%arg0: i32, %arg1: i32) -> (i32, i32, i32) {
    %c0_i32 = arith.constant 0 : i32
    %c0_i32_0 = arith.constant 0 : i32
    %c0_i32_1 = arith.constant 0 : i32
    return %arg1, %c0_i32, %c0_i32_0 : i32, i32, i32
  }
  func.func @transform_12(%arg0: i32, %arg1: i32) -> (i32, i32, i32) {
    %c0_i32 = arith.constant 0 : i32
    %c0_i32_0 = arith.constant 0 : i32
    %c0_i32_1 = arith.constant 0 : i32
    return %arg1, %c0_i32, %c0_i32_0 : i32, i32, i32
  }
  func.func @transform_13(%arg0: i32, %arg1: i32) -> (i32, i32, i32) {
    %c0_i32 = arith.constant 0 : i32
    %c0_i32_0 = arith.constant 0 : i32
    %c0_i32_1 = arith.constant 0 : i32
    return %arg1, %c0_i32, %c0_i32_0 : i32, i32, i32
  }
  func.func @transform_14(%arg0: i32, %arg1: i32) -> (i32, i32, i32) {
    %c0_i32 = arith.constant 0 : i32
    %c0_i32_0 = arith.constant 0 : i32
    %c0_i32_1 = arith.constant 0 : i32
    return %arg1, %c0_i32, %c0_i32_0 : i32, i32, i32
  }
  func.func @transform_15(%arg0: i32, %arg1: i32) -> (i32, i32, i32) {
    %c0_i32 = arith.constant 0 : i32
    %c0_i32_0 = arith.constant 0 : i32
    %c0_i32_1 = arith.constant 0 : i32
    return %arg1, %c0_i32, %c0_i32_0 : i32, i32, i32
  }
  func.func @transform_16(%arg0: i32, %arg1: i32) -> (i32, i32, i32) {
    %c0_i32 = arith.constant 0 : i32
    %c0_i32_0 = arith.constant 0 : i32
    %c0_i32_1 = arith.constant 0 : i32
    return %arg1, %c0_i32, %c0_i32_0 : i32, i32, i32
  }
  func.func @transform_17(%arg0: i32, %arg1: i32) -> (i32, i32, i32) {
    %c0_i32 = arith.constant 0 : i32
    %c0_i32_0 = arith.constant 0 : i32
    %c0_i32_1 = arith.constant 0 : i32
    return %arg0, %c0_i32, %c0_i32_0 : i32, i32, i32
  }
}

</mosaic_0001>

<llo_original>
// kernel: timesfm_forward.3
$region0: #{timesfm_forward.3}
  #allocation0 [shape = 'u32[]', space=smem, size = 0x4, offset = 0x4, fixed_abs, tag = 'smem constant byte address 0x4 - core index']
  #allocation1 [shape = 'u32[72,128]{1,0:T(1,128)}', space=vmem, size = 0x9000, scoped, tag = 'internal scratch']
  %s0 = inlined_call_operand.vmem [shape: f32[2,8,32], index: 0, kind: input, shape index: {}]
  %s1 = inlined_call_operand.vmem [shape: bf16[32,256], index: 1, kind: input, shape index: {}]
  %s2 = inlined_call_operand.vmem [shape: f32[1,256], index: 2, kind: input, shape index: {}]
  %s3 = inlined_call_operand.hbm [shape: bf16[128,128], index: 3, kind: input, shape index: {}]
  %s4 = inlined_call_operand.vmem [shape: f32[1,128], index: 4, kind: input, shape index: {}]
  %s5 = inlined_call_operand.vmem [shape: f32[8,128], index: 5, kind: input, shape index: {}]
  %s6 = inlined_call_operand.vmem [shape: f32[2,8,128], index: 6, kind: output, shape index: {}]
  %s7 = sld [smem:[#allocation0]]
  $region61: #{timesfm_forward.3} parent=0
    _
  %s9 = ssub.s32 1, %s7
  %s10 = scalar_select 0, %s9, %s7
  $region1: #{timesfm_forward.3} parent=0
    #allocation2 [shape = 'u8[32768]{0}', space=vmem, size = 0x8000, scoped, tag = 'input window, operand 3, single buffered']
    #allocation3 [shape = 's32[2]{0}', space=sflag, size = 0x8, scoped, tag = 'scoped memory for timesfm_forward.3']
    %11 = vsyncpa [#allocation3], 0
    loop: start=0, step=1, limit=4
    $region2: #{timesfm_forward.3} parent=1 // loop_pre_header
      _
    $region3: #{timesfm_forward.3} parent=1 // loop_header
      %s13 = sphi 0, %s17
      %p14 = scmp.ge.s32.totalorder %s13, 4
      %s23 = sphi 0, %s25
      %s26 = sphi 0, %s23
      %s27 = sphi 0, %s26
      %s43 = sphi 0, %s27
      %s47 = sphi 0, %s47
      %s49 = sphi 0, %s47
      %s50 = sphi 0, %s49
      %s64 = sphi 0, %s50
      %s68 = sphi 0, %s68
      %s70 = sphi 0, %s68
      %s71 = sphi 0, %s70
      %s85 = sphi 0, %s71
      %s89 = sphi 0, %s89
      %s91 = sphi 0, %s89
      %s92 = sphi 0, %s91
      %s106 = sphi 0, %s92
      %s110 = sphi 0, %s110
      %s112 = sphi 0, %s110
      %s113 = sphi 0, %s112
      %s127 = sphi 0, %s113
      %s131 = sphi 0, %s131
      %s133 = sphi 0, %s131
      %s134 = sphi 0, %s133
      %s148 = sphi 0, %s134
      %s154 = sphi 0, %s156
      %s157 = sphi 0, %s154
      %s158 = sphi 0, %s157
      %s174 = sphi 0, %s158
    $region4: #{timesfm_forward.3} parent=1 // loop_header_branch
      %16 = sbr.rel (%p14) target = $region8
    $region5: #{timesfm_forward.3} parent=1 // loop_body
      %s18 = ssub.s32 %s13, 1
      %s19 = ssub.s32 %s13, 2
      %s20 = sadd.s32 %s13, 1
      %s21 = ssub.s32 %s13, %s20
      %p22 = scmp.eq.s32.totalorder %s21, 0
      %s24 = sadd.s32 %s23, 1
      %s25 = scalar_select %p22, %s23, %s24
      %p28 = pneg %p22
      %p29 = scmp.eq.s32.totalorder %s13, 1
      %p30 = por %p28, %p29
      %p31 = scmp.ne.s32.totalorder %s23, %s26
      %p32 = scmp.eq.s32.totalorder %s13, 0
      %p33 = por %p31, %p32
      %p34 = scmp.ne.s32.totalorder %s23, %s26
      %p35 = scmp.eq.s32.totalorder %s18, 1
      %p36 = por %p34, %p35
      %p37 = scmp.ne.s32.totalorder %s26, %s27
      %p38 = scmp.eq.s32.totalorder %s18, 0
      %p39 = por %p37, %p38
      %p40 = scmp.ne.s32.totalorder %s26, %s27
      %p41 = scmp.eq.s32.totalorder %s19, 1
      %p42 = por %p40, %p41
      %p44 = scmp.ne.s32.totalorder %s27, %s43
      %p45 = scmp.eq.s32.totalorder %s19, 0
      %p46 = por %p44, %p45
      %s48 = sadd.s32 %s47, 1
      %p51 = scmp.eq.s32.totalorder %s13, 1
      %p52 = scmp.ne.s32.totalorder %s47, %s49
      %p53 = scmp.eq.s32.totalorder %s13, 0
      %p54 = por %p52, %p53
      %p55 = scmp.ne.s32.totalorder %s47, %s49
      %p56 = scmp.eq.s32.totalorder %s18, 1
      %p57 = por %p55, %p56
      %p58 = scmp.ne.s32.totalorder %s49, %s50
      %p59 = scmp.eq.s32.totalorder %s18, 0
      %p60 = por %p58, %p59
      %p61 = scmp.ne.s32.totalorder %s49, %s50
      %p62 = scmp.eq.s32.totalorder %s19, 1
      %p63 = por %p61, %p62
      %p65 = scmp.ne.s32.totalorder %s50, %s64
      %p66 = scmp.eq.s32.totalorder %s19, 0
      %p67 = por %p65, %p66
      %s69 = sadd.s32 %s68, 1
      %p72 = scmp.eq.s32.totalorder %s13, 1
      %p73 = scmp.ne.s32.totalorder %s68, %s70
      %p74 = scmp.eq.s32.totalorder %s13, 0
      %p75 = por %p73, %p74
      %p76 = scmp.ne.s32.totalorder %s68, %s70
      %p77 = scmp.eq.s32.totalorder %s18, 1
      %p78 = por %p76, %p77
      %p79 = scmp.ne.s32.totalorder %s70, %s71
      %p80 = scmp.eq.s32.totalorder %s18, 0
      %p81 = por %p79, %p80
      %p82 = scmp.ne.s32.totalorder %s70, %s71
      %p83 = scmp.eq.s32.totalorder %s19, 1
      %p84 = por %p82, %p83
      %p86 = scmp.ne.s32.totalorder %s71, %s85
      %p87 = scmp.eq.s32.totalorder %s19, 0
      %p88 = por %p86, %p87
      %s90 = sadd.s32 %s89, 1
      %p93 = scmp.eq.s32.totalorder %s13, 1
      %p94 = scmp.ne.s32.totalorder %s89, %s91
      %p95 = scmp.eq.s32.totalorder %s13, 0
      %p96 = por %p94, %p95
      %p97 = scmp.ne.s32.totalorder %s89, %s91
      %p98 = scmp.eq.s32.totalorder %s18, 1
      %p99 = por %p97, %p98
      %p100 = scmp.ne.s32.totalorder %s91, %s92
      %p101 = scmp.eq.s32.totalorder %s18, 0
      %p102 = por %p100, %p101
      %p103 = scmp.ne.s32.totalorder %s91, %s92
      %p104 = scmp.eq.s32.totalorder %s19, 1
      %p105 = por %p103, %p104
      %p107 = scmp.ne.s32.totalorder %s92, %s106
      %p108 = scmp.eq.s32.totalorder %s19, 0
      %p109 = por %p107, %p108
      %s111 = sadd.s32 %s110, 1
      %p114 = scmp.eq.s32.totalorder %s13, 1
      %p115 = scmp.ne.s32.totalorder %s110, %s112
      %p116 = scmp.eq.s32.totalorder %s13, 0
      %p117 = por %p115, %p116
      %p118 = scmp.ne.s32.totalorder %s110, %s112
      %p119 = scmp.eq.s32.totalorder %s18, 1
      %p120 = por %p118, %p119
      %p121 = scmp.ne.s32.totalorder %s112, %s113
      %p122 = scmp.eq.s32.totalorder %s18, 0
      %p123 = por %p121, %p122
      %p124 = scmp.ne.s32.totalorder %s112, %s113
      %p125 = scmp.eq.s32.totalorder %s19, 1
      %p126 = por %p124, %p125
      %p128 = scmp.ne.s32.totalorder %s113, %s127
      %p129 = scmp.eq.s32.totalorder %s19, 0
      %p130 = por %p128, %p129
      %s132 = sadd.s32 %s131, 1
      %p135 = scmp.eq.s32.totalorder %s13, 1
      %p136 = scmp.ne.s32.totalorder %s131, %s133
      %p137 = scmp.eq.s32.totalorder %s13, 0
      %p138 = por %p136, %p137
      %p139 = scmp.ne.s32.totalorder %s131, %s133
      %p140 = scmp.eq.s32.totalorder %s18, 1
      %p141 = por %p139, %p140
      %p142 = scmp.ne.s32.totalorder %s133, %s134
      %p143 = scmp.eq.s32.totalorder %s18, 0
      %p144 = por %p142, %p143
      %p145 = scmp.ne.s32.totalorder %s133, %s134
      %p146 = scmp.eq.s32.totalorder %s19, 1
      %p147 = por %p145, %p146
      %p149 = scmp.ne.s32.totalorder %s134, %s148
      %p150 = scmp.eq.s32.totalorder %s19, 0
      %p151 = por %p149, %p150
      %s152 = ssub.s32 %s13, %s20
      %p153 = scmp.eq.s32.totalorder %s152, 0
      %s155 = sadd.s32 %s154, 1
      %s156 = scalar_select %p153, %s154, %s155
      %p159 = pneg %p153
      %p160 = scmp.eq.s32.totalorder %s13, 1
      %p161 = por %p159, %p160
      %p162 = scmp.ne.s32.totalorder %s154, %s157
      %p163 = scmp.eq.s32.totalorder %s13, 0
      %p164 = por %p162, %p163
      %p165 = scmp.ne.s32.totalorder %s154, %s157
      %p166 = scmp.eq.s32.totalorder %s18, 1
      %p167 = por %p165, %p166
      %p168 = scmp.ne.s32.totalorder %s157, %s158
      %p169 = scmp.eq.s32.totalorder %s18, 0
      %p170 = por %p168, %p169
      %p171 = scmp.ne.s32.totalorder %s157, %s158
      %p172 = scmp.eq.s32.totalorder %s19, 1
      %p173 = por %p171, %p172
      %p175 = scmp.ne.s32.totalorder %s158, %s174
      %p176 = scmp.eq.s32.totalorder %s19, 0
      %p177 = por %p175, %p176
      %p178 = scmp.le.s32.totalorder 1, %s13
      %p179 = scmp.lt.s32.totalorder %s13, 3
      %p180 = pnand %p178, %p179
      %p181 = pneg %p180
      // Predicated region
      $region9: #{timesfm_forward.3} parent=5 // pred_check
        _
      $region10: #{timesfm_forward.3} parent=5 // pred_check_branch
        %183 = sbr.rel (%p180) target = $region12
      $region11: #{timesfm_forward.3} parent=5 // pred_region
        %s184 = ssub.s32 %s13, 1
        // Predicated region
        $region13: #{timesfm_forward.3} parent=11 // pred_check
          %p185 = pneg %p60
        $region14: #{timesfm_forward.3} parent=11 // pred_check_branch
          %187 = sbr.rel (%p185) target = $region16
        $region15: #{timesfm_forward.3} parent=11 // pred_region
          _
        $region16: #{timesfm_forward.3} parent=11 // pred_fallthru
          _
        // Predicated region
        $region17: #{timesfm_forward.3} parent=11 // pred_check
          %p188 = pneg %p81
        $region18: #{timesfm_forward.3} parent=11 // pred_check_branch
          %190 = sbr.rel (%p188) target = $region20
        $region19: #{timesfm_forward.3} parent=11 // pred_region
          _
        $region20: #{timesfm_forward.3} parent=11 // pred_fallthru
          _
        // Predicated region
        $region21: #{timesfm_forward.3} parent=11 // pred_check
          %p191 = pneg %p102
        $region22: #{timesfm_forward.3} parent=11 // pred_check_branch
          %193 = sbr.rel (%p191) target = $region24
        $region23: #{timesfm_forward.3} parent=11 // pred_region
          %195 = vsyncadd [#allocation3], 0
          %s196 = sshll.u32 %s3, 4
          %s197 = int_to_ptr.hbm [resolvable:$true] %s196
          %s198 = sshll.u32 [#allocation2], 4
          %s199 = int_to_ptr.vmem [resolvable:$true] %s198
          %204 = dma.hbm_to_vmem [thread:$0]  %s197, 1024, %s199, [#allocation3], 64, 64, 4
        $region24: #{timesfm_forward.3} parent=11 // pred_fallthru
          _
        // Predicated region
        $region25: #{timesfm_forward.3} parent=11 // pred_check
          %p205 = pneg %p123
        $region26: #{timesfm_forward.3} parent=11 // pred_check_branch
          %207 = sbr.rel (%p205) target = $region28
        $region27: #{timesfm_forward.3} parent=11 // pred_region
          _
        $region28: #{timesfm_forward.3} parent=11 // pred_fallthru
          _
        // Predicated region
        $region29: #{timesfm_forward.3} parent=11 // pred_check
          %p208 = pneg %p144
        $region30: #{timesfm_forward.3} parent=11 // pred_check_branch
          %210 = sbr.rel (%p208) target = $region32
        $region31: #{timesfm_forward.3} parent=11 // pred_region
          _
        $region32: #{timesfm_forward.3} parent=11 // pred_fallthru
          _
      $region12: #{timesfm_forward.3} parent=5 // pred_fallthru
        _
      %p211 = scmp.lt.s32.totalorder %s13, 2
      // Predicated region
      $region33: #{timesfm_forward.3} parent=5 // pred_check
        %p212 = pneg %p211
      $region34: #{timesfm_forward.3} parent=5 // pred_check_branch
        %214 = sbr.rel (%p212) target = $region36
      $region35: #{timesfm_forward.3} parent=5 // pred_region
        // Predicated region
        $region37: #{timesfm_forward.3} parent=35 // pred_check
          %p215 = pneg %p33
        $region38: #{timesfm_forward.3} parent=35 // pred_check_branch
          %217 = sbr.rel (%p215) target = $region40
        $region39: #{timesfm_forward.3} parent=35 // pred_region
          %p218 = scmp.lt.s32.totalorder %s13, 1
          %s219 = scalar_select %p218, %s13, 1
          %s220 = smul.addr %s219, 8
          %s221 = scalar_lea.vmem %s0, %s220
        $region40: #{timesfm_forward.3} parent=35 // pred_fallthru
          _
      $region36: #{timesfm_forward.3} parent=5 // pred_fallthru
        _
      %p222 = scmp.le.s32.totalorder 1, %s13
      %p223 = scmp.lt.s32.totalorder %s13, 3
      %p224 = pnand %p222, %p223
      %p225 = pneg %p224
      // Predicated region
      $region41: #{timesfm_forward.3} parent=5 // pred_check
        _
      $region42: #{timesfm_forward.3} parent=5 // pred_check_branch
        %227 = sbr.rel (%p224) target = $region44
      $region43: #{timesfm_forward.3} parent=5 // pred_region
        %s228 = ssub.s32 %s13, 1
        // Predicated region
        $region45: #{timesfm_forward.3} parent=43 // pred_check
          %p229 = pneg %p102
        $region46: #{timesfm_forward.3} parent=43 // pred_check_branch
          %231 = sbr.rel (%p229) target = $region48
        $region47: #{timesfm_forward.3} parent=43 // pred_region
          %233 = dma.done [#allocation3], 1024
        $region48: #{timesfm_forward.3} parent=43 // pred_fallthru
          _
        %p234 = scmp.lt.s32.totalorder %s18, 1
        %s235 = scalar_select %p234, %s18, 1
        %s236 = smul.addr %s235, 8
        %s237 = scalar_lea.vmem %s0, %s236
        %p238 = pneg %p39
        %p239 = pneg %p36
        %p240 = pneg %p60
        %p241 = pneg %p57
        %p242 = pneg %p81
        %p243 = pneg %p78
        %p244 = pneg %p102
        %p245 = pneg %p99
        %p246 = pneg %p123
        %p247 = pneg %p120
        %p248 = pneg %p144
        %p249 = pneg %p141
        %p250 = pneg %p170
        %p251 = pneg %p167
        %p252 = scmp.lt.s32.totalorder %s18, 1
        %s253 = scalar_select %p252, %s18, 1
        %s254 = smul.addr %s253, 8
        %s255 = scalar_lea.vmem %s6, %s254
        %p256 = scmp.lt.s32.totalorder %s18, 1
        %s257 = scalar_select %p256, %s18, 1
        %s258 = smul.addr %s257, 8
        %s259 = scalar_lea.vmem %s0, %s258
        %p260 = scmp.lt.s32.totalorder %s18, 1
        %s261 = scalar_select %p260, %s18, 1
        %s262 = smul.addr %s261, 8
        %s263 = scalar_lea.vmem %s6, %s262
        %v265 = vld [vmem:[%s259] sm:$0xff]
        %v266 = vpack.c.bf16 %v265, %v265
        %v267 = vld [vmem:[%s1] sm:$0xff]
        %v268 = vld [vmem:[%s1 + $0x8] sm:$0xff]
        %v269 = vld [vmem:[%s1 + $0x10] sm:$0xff]
        %v270 = vld [vmem:[%s1 + $0x18] sm:$0xff]
        %v271 = vld [vmem:[%s2] sm:$0x3]
        %v273 = vperm.slane %v271, 0
        %v274 = vperm.slane %v271, 1
        %v281 = vunpack.c.l.b16 %v267
        %v282 = vunpack.c.h.b16 %v267
        %v283 = vunpack.c.l.b16 %v268
        %v284 = vunpack.c.h.b16 %v268
        %v285 = vunpack.c.l.b16 %v269
        %v286 = vunpack.c.h.b16 %v269
        %v287 = vunpack.c.l.b16 %v270
        %v288 = vunpack.c.h.b16 %v270
        %v289 = vpack.c.b16 %v283, %v281
        %v290 = vpack.c.b16 %v284, %v282
        %v291 = vpack.c.b16 %v287, %v285
        %v292 = vpack.c.b16 %v288, %v286
        %vm297 = vcmask 261120
        %v299 = vsel %vm297, %v266, 0
        %301 = vmatpush.bf16.msra.mxu0 0
        %302 = vmatpush.bf16.msra.mxu0 0
        %303 = vmatpush.bf16.msra.mxu0 0
        %304 = vmatpush.bf16.msra.mxu0 0
        %305 = vmatpush.bf16.msra.mxu0 0
        %306 = vmatpush.bf16.msra.mxu0 0
        %307 = vmatpush.bf16.msra.mxu0 %v291
        %308 = vmatpush.bf16.msra.mxu0 %v289
        %309 = vmatmul.bf16.gmra.mxu0 %v299
        %v310 = vpop.f32.mrf.mxu0
        %v311 = vadd.f32 %v273, %v310
        %v312 = vpop.f32.mrf.mxu0
        %313 = vdwg.mxu0
        %314 = vmatpush.bf16.msra.mxu0 0
        %315 = vmatpush.bf16.msra.mxu0 0
        %316 = vmatpush.bf16.msra.mxu0 0
        %317 = vmatpush.bf16.msra.mxu0 0
        %318 = vmatpush.bf16.msra.mxu0 0
        %319 = vmatpush.bf16.msra.mxu0 0
        %320 = vmatpush.bf16.msra.mxu0 %v292
        %321 = vmatpush.bf16.msra.mxu0 %v290
        %322 = vmatmul.bf16.gmra.mxu0 %v299
        %v323 = vpop.f32.mrf.mxu0
        %v324 = vadd.f32 %v274, %v323
        %v325 = vpop.f32.mrf.mxu0
        %326 = vdwg.mxu0
        %v327 = vxor.u32 %v311, 2147483648
        %v328 = vmul.f32 %v327, 1.442695
        %v329 = vpow.pop %v328
        %v330 = vadd.f32 %v329, 1.0
        %v331 = vrcp.pop %v330
        %v332 = vmul.f32 %v330, %v331
        %v333 = vsub.f32 1.0, %v332
        %v334 = vmul.f32 %v331, %v333
        %v335 = vadd.f32 %v331, %v334
        %vm336 = vweird.f32 %v330
        %vm337 = vweird.f32 %v331
        %vm338 = vmor %vm336, %vm337
        %v339 = vsel %vm338, %v331, %v335
        %v340 = vand.u32 2147483647, %v330
        %vm341 = vcmp.eq.f32.partialorder %v340, 8.507059e+37
        %v342 = vand.u32 %v330, 2147483648
        %v343 = vor.u32 1.1754944e-38, %v342
        %v344 = vsel %vm341, %v343, %v339
        %v345 = vmul.f32 1.0, %v344
        %v346 = vmul.f32 %v311, %v345
        %v347 = vpack.c.bf16 %v346, %v346
        %v348 = vld [vmem:[#allocation2] sm:$0xf]
        %v349 = vld [vmem:[#allocation2 + $0x4] sm:$0xf]
        %v350 = vld [vmem:[#allocation2 + $0x8] sm:$0xf]
        %v351 = vld [vmem:[#allocation2 + $0xc] sm:$0xf]
        %v352 = vld [vmem:[#allocation2 + $0x10] sm:$0xf]
        %v353 = vld [vmem:[#allocation2 + $0x14] sm:$0xf]
        %v354 = vld [vmem:[#allocation2 + $0x18] sm:$0xf]
        %v355 = vld [vmem:[#allocation2 + $0x1c] sm:$0xf]
        %v356 = vld [vmem:[#allocation2 + $0x20] sm:$0xf]
        %v357 = vld [vmem:[#allocation2 + $0x24] sm:$0xf]
        %v358 = vld [vmem:[#allocation2 + $0x28] sm:$0xf]
        %v359 = vld [vmem:[#allocation2 + $0x2c] sm:$0xf]
        %v360 = vld [vmem:[#allocation2 + $0x30] sm:$0xf]
        %v361 = vld [vmem:[#allocation2 + $0x34] sm:$0xf]
        %v362 = vld [vmem:[#allocation2 + $0x38] sm:$0xf]
        %v363 = vld [vmem:[#allocation2 + $0x3c] sm:$0xf]
        %v364 = vld [vmem:[%s4] sm:$0x1]
        %v366 = vperm.slane %v364, 0
        %v384 = vunpack.c.l.b16 %v348
        %v385 = vunpack.c.l.b16 %v349
        %v386 = vunpack.c.l.b16 %v350
        %v387 = vunpack.c.l.b16 %v351
        %v388 = vunpack.c.l.b16 %v352
        %v389 = vunpack.c.l.b16 %v353
        %v390 = vunpack.c.l.b16 %v354
        %v391 = vunpack.c.l.b16 %v355
        %v392 = vunpack.c.l.b16 %v356
        %v393 = vunpack.c.l.b16 %v357
        %v394 = vunpack.c.l.b16 %v358
        %v395 = vunpack.c.l.b16 %v359
        %v396 = vunpack.c.l.b16 %v360
        %v397 = vunpack.c.l.b16 %v361
        %v398 = vunpack.c.l.b16 %v362
        %v399 = vunpack.c.l.b16 %v363
        %v400 = vpack.c.b16 %v385, %v384
        %v401 = vpack.c.b16 %v387, %v386
        %v402 = vpack.c.b16 %v389, %v388
        %v403 = vpack.c.b16 %v391, %v390
        %v404 = vpack.c.b16 %v393, %v392
        %v405 = vpack.c.b16 %v395, %v394
        %v406 = vpack.c.b16 %v397, %v396
        %v407 = vpack.c.b16 %v399, %v398
        %416 = vmatpush.bf16.msra.mxu0 %v407
        %417 = vmatpush.bf16.msra.mxu0 %v406
        %418 = vmatpush.bf16.msra.mxu0 %v405
        %419 = vmatpush.bf16.msra.mxu0 %v404
        %420 = vmatpush.bf16.msra.mxu0 %v403
        %421 = vmatpush.bf16.msra.mxu0 %v402
        %422 = vmatpush.bf16.msra.mxu0 %v401
        %423 = vmatpush.bf16.msra.mxu0 %v400
        %424 = vmatmul.bf16.gmra.mxu0 %v347
        %v425 = vpop.f32.mrf.mxu0
        %v426 = vadd.f32 %v366, %v425
        %v427 = vpop.f32.mrf.mxu0
        %428 = vdwg.mxu0
        %v429 = vadd.f32 %v426, %v324
        %v430 = vld [vmem:[%s5] sm:$0xff]
        %v431 = vadd.f32 %v429, %v430
        %432 = vst [vmem:[%s263] sm:$0xff] %v431
        %p433 = scmp.lt.s32.totalorder %s18, 1
        %s434 = scalar_select %p433, %s18, 1
        %s435 = smul.addr %s434, 8
        %s436 = scalar_lea.vmem %s6, %s435
        // Predicated region
        $region49: #{timesfm_forward.3} parent=43 // pred_check
          %p437 = pneg %p167
        $region50: #{timesfm_forward.3} parent=43 // pred_check_branch
          %439 = sbr.rel (%p437) target = $region52
        $region51: #{timesfm_forward.3} parent=43 // pred_region
          _
        $region52: #{timesfm_forward.3} parent=43 // pred_fallthru
          _
      $region44: #{timesfm_forward.3} parent=5 // pred_fallthru
        _
      %p440 = scmp.le.s32.totalorder 2, %s13
      // Predicated region
      $region53: #{timesfm_forward.3} parent=5 // pred_check
        %p441 = pneg %p440
      $region54: #{timesfm_forward.3} parent=5 // pred_check_branch
        %443 = sbr.rel (%p441) target = $region56
      $region55: #{timesfm_forward.3} parent=5 // pred_region
        %s444 = ssub.s32 %s13, 2
        // Predicated region
        $region57: #{timesfm_forward.3} parent=55 // pred_check
          %p445 = pneg %p173
        $region58: #{timesfm_forward.3} parent=55 // pred_check_branch
          %447 = sbr.rel (%p445) target = $region60
        $region59: #{timesfm_forward.3} parent=55 // pred_region
          %p448 = scmp.lt.s32.totalorder %s19, 1
          %s449 = scalar_select %p448, %s19, 1
          %s450 = smul.addr %s449, 8
          %s451 = scalar_lea.vmem %s6, %s450
        $region60: #{timesfm_forward.3} parent=55 // pred_fallthru
          _
      $region56: #{timesfm_forward.3} parent=5 // pred_fallthru
        _
    $region6: #{timesfm_forward.3} parent=1 // loop_footer
      %s17 = sadd.s32 1, %s13
    $region7: #{timesfm_forward.3} parent=1 // loop_footer_branch
      %12 = sbr.rel target = $region3
    $region8: #{timesfm_forward.3} parent=1 // loop_exit
      _
    %452 = vsyncpa [#allocation3], 1
    %s453 = scalar_lea.sflag [#allocation3], 1
    %454 = vsyncpa %s453, 1

// kernel: timesfm_forward.5
$region0: #{timesfm_forward.5}
  #allocation0 [shape = 'u32[]', space=smem, size = 0x4, offset = 0x4, fixed_abs, tag = 'smem constant byte address 0x4 - core index']
  #allocation1 [shape = 'u32[72,128]{1,0:T(1,128)}', space=vmem, size = 0x9000, scoped, tag = 'internal scratch']
  %s0 = inlined_call_operand.vmem [shape: f32[2,8,128], index: 0, kind: input, shape index: {}]
  %s1 = inlined_call_operand.vmem [shape: bf16[128,256], index: 1, kind: input, shape index: {}]
  %s2 = inlined_call_operand.vmem [shape: f32[1,256], index: 2, kind: input, shape index: {}]
  %s3 = inlined_call_operand.vmem [shape: bf16[128,128], index: 3, kind: input, shape index: {}]
  %s4 = inlined_call_operand.vmem [shape: f32[1,128], index: 4, kind: input, shape index: {}]
  %s5 = inlined_call_operand.vmem [shape: f32[2,2], index: 5, kind: input, shape index: {}]
  %s6 = inlined_call_operand.vmem [shape: f32[2,8,128], index: 6, kind: output, shape index: {}]
  %s7 = sld [smem:[#allocation0]]
  $region61: #{timesfm_forward.5} parent=0
    _
  %s9 = ssub.s32 1, %s7
  %s10 = scalar_select 0, %s9, %s7
  $region1: #{timesfm_forward.5} parent=0
    #allocation2 [shape = 'u8[1024]{0}', space=smem, size = 0x400, scoped, tag = 'input window, operand 5, single buffered']
    #allocation3 [shape = 's32[2]{0}', space=sflag, size = 0x8, scoped, tag = 'scoped memory for timesfm_forward.5']
    %11 = vsyncpa [#allocation3], 0
    loop: start=0, step=1, limit=4
    $region2: #{timesfm_forward.5} parent=1 // loop_pre_header
      _
    $region3: #{timesfm_forward.5} parent=1 // loop_header
      %s13 = sphi 0, %s17
      %p14 = scmp.ge.s32.totalorder %s13, 4
      %s23 = sphi 0, %s25
      %s26 = sphi 0, %s23
      %s27 = sphi 0, %s26
      %s43 = sphi 0, %s27
      %s47 = sphi 0, %s47
      %s49 = sphi 0, %s47
      %s50 = sphi 0, %s49
      %s64 = sphi 0, %s50
      %s68 = sphi 0, %s68
      %s70 = sphi 0, %s68
      %s71 = sphi 0, %s70
      %s85 = sphi 0, %s71
      %s89 = sphi 0, %s89
      %s91 = sphi 0, %s89
      %s92 = sphi 0, %s91
      %s106 = sphi 0, %s92
      %s110 = sphi 0, %s110
      %s112 = sphi 0, %s110
      %s113 = sphi 0, %s112
      %s127 = sphi 0, %s113
      %s131 = sphi 0, %s131
      %s133 = sphi 0, %s131
      %s134 = sphi 0, %s133
      %s148 = sphi 0, %s134
      %s154 = sphi 0, %s156
      %s157 = sphi 0, %s154
      %s158 = sphi 0, %s157
      %s174 = sphi 0, %s158
    $region4: #{timesfm_forward.5} parent=1 // loop_header_branch
      %16 = sbr.rel (%p14) target = $region8
    $region5: #{timesfm_forward.5} parent=1 // loop_body
      %s18 = ssub.s32 %s13, 1
      %s19 = ssub.s32 %s13, 2
      %s20 = sadd.s32 %s13, 1
      %s21 = ssub.s32 %s13, %s20
      %p22 = scmp.eq.s32.totalorder %s21, 0
      %s24 = sadd.s32 %s23, 1
      %s25 = scalar_select %p22, %s23, %s24
      %p28 = pneg %p22
      %p29 = scmp.eq.s32.totalorder %s13, 1
      %p30 = por %p28, %p29
      %p31 = scmp.ne.s32.totalorder %s23, %s26
      %p32 = scmp.eq.s32.totalorder %s13, 0
      %p33 = por %p31, %p32
      %p34 = scmp.ne.s32.totalorder %s23, %s26
      %p35 = scmp.eq.s32.totalorder %s18, 1
      %p36 = por %p34, %p35
      %p37 = scmp.ne.s32.totalorder %s26, %s27
      %p38 = scmp.eq.s32.totalorder %s18, 0
      %p39 = por %p37, %p38
      %p40 = scmp.ne.s32.totalorder %s26, %s27
      %p41 = scmp.eq.s32.totalorder %s19, 1
      %p42 = por %p40, %p41
      %p44 = scmp.ne.s32.totalorder %s27, %s43
      %p45 = scmp.eq.s32.totalorder %s19, 0
      %p46 = por %p44, %p45
      %s48 = sadd.s32 %s47, 1
      %p51 = scmp.eq.s32.totalorder %s13, 1
      %p52 = scmp.ne.s32.totalorder %s47, %s49
      %p53 = scmp.eq.s32.totalorder %s13, 0
      %p54 = por %p52, %p53
      %p55 = scmp.ne.s32.totalorder %s47, %s49
      %p56 = scmp.eq.s32.totalorder %s18, 1
      %p57 = por %p55, %p56
      %p58 = scmp.ne.s32.totalorder %s49, %s50
      %p59 = scmp.eq.s32.totalorder %s18, 0
      %p60 = por %p58, %p59
      %p61 = scmp.ne.s32.totalorder %s49, %s50
      %p62 = scmp.eq.s32.totalorder %s19, 1
      %p63 = por %p61, %p62
      %p65 = scmp.ne.s32.totalorder %s50, %s64
      %p66 = scmp.eq.s32.totalorder %s19, 0
      %p67 = por %p65, %p66
      %s69 = sadd.s32 %s68, 1
      %p72 = scmp.eq.s32.totalorder %s13, 1
      %p73 = scmp.ne.s32.totalorder %s68, %s70
      %p74 = scmp.eq.s32.totalorder %s13, 0
      %p75 = por %p73, %p74
      %p76 = scmp.ne.s32.totalorder %s68, %s70
      %p77 = scmp.eq.s32.totalorder %s18, 1
      %p78 = por %p76, %p77
      %p79 = scmp.ne.s32.totalorder %s70, %s71
      %p80 = scmp.eq.s32.totalorder %s18, 0
      %p81 = por %p79, %p80
      %p82 = scmp.ne.s32.totalorder %s70, %s71
      %p83 = scmp.eq.s32.totalorder %s19, 1
      %p84 = por %p82, %p83
      %p86 = scmp.ne.s32.totalorder %s71, %s85
      %p87 = scmp.eq.s32.totalorder %s19, 0
      %p88 = por %p86, %p87
      %s90 = sadd.s32 %s89, 1
      %p93 = scmp.eq.s32.totalorder %s13, 1
      %p94 = scmp.ne.s32.totalorder %s89, %s91
      %p95 = scmp.eq.s32.totalorder %s13, 0
      %p96 = por %p94, %p95
      %p97 = scmp.ne.s32.totalorder %s89, %s91
      %p98 = scmp.eq.s32.totalorder %s18, 1
      %p99 = por %p97, %p98
      %p100 = scmp.ne.s32.totalorder %s91, %s92
      %p101 = scmp.eq.s32.totalorder %s18, 0
      %p102 = por %p100, %p101
      %p103 = scmp.ne.s32.totalorder %s91, %s92
      %p104 = scmp.eq.s32.totalorder %s19, 1
      %p105 = por %p103, %p104
      %p107 = scmp.ne.s32.totalorder %s92, %s106
      %p108 = scmp.eq.s32.totalorder %s19, 0
      %p109 = por %p107, %p108
      %s111 = sadd.s32 %s110, 1
      %p114 = scmp.eq.s32.totalorder %s13, 1
      %p115 = scmp.ne.s32.totalorder %s110, %s112
      %p116 = scmp.eq.s32.totalorder %s13, 0
      %p117 = por %p115, %p116
      %p118 = scmp.ne.s32.totalorder %s110, %s112
      %p119 = scmp.eq.s32.totalorder %s18, 1
      %p120 = por %p118, %p119
      %p121 = scmp.ne.s32.totalorder %s112, %s113
      %p122 = scmp.eq.s32.totalorder %s18, 0
      %p123 = por %p121, %p122
      %p124 = scmp.ne.s32.totalorder %s112, %s113
      %p125 = scmp.eq.s32.totalorder %s19, 1
      %p126 = por %p124, %p125
      %p128 = scmp.ne.s32.totalorder %s113, %s127
      %p129 = scmp.eq.s32.totalorder %s19, 0
      %p130 = por %p128, %p129
      %s132 = sadd.s32 %s131, 1
      %p135 = scmp.eq.s32.totalorder %s13, 1
      %p136 = scmp.ne.s32.totalorder %s131, %s133
      %p137 = scmp.eq.s32.totalorder %s13, 0
      %p138 = por %p136, %p137
      %p139 = scmp.ne.s32.totalorder %s131, %s133
      %p140 = scmp.eq.s32.totalorder %s18, 1
      %p141 = por %p139, %p140
      %p142 = scmp.ne.s32.totalorder %s133, %s134
      %p143 = scmp.eq.s32.totalorder %s18, 0
      %p144 = por %p142, %p143
      %p145 = scmp.ne.s32.totalorder %s133, %s134
      %p146 = scmp.eq.s32.totalorder %s19, 1
      %p147 = por %p145, %p146
      %p149 = scmp.ne.s32.totalorder %s134, %s148
      %p150 = scmp.eq.s32.totalorder %s19, 0
      %p151 = por %p149, %p150
      %s152 = ssub.s32 %s13, %s20
      %p153 = scmp.eq.s32.totalorder %s152, 0
      %s155 = sadd.s32 %s154, 1
      %s156 = scalar_select %p153, %s154, %s155
      %p159 = pneg %p153
      %p160 = scmp.eq.s32.totalorder %s13, 1
      %p161 = por %p159, %p160
      %p162 = scmp.ne.s32.totalorder %s154, %s157
      %p163 = scmp.eq.s32.totalorder %s13, 0
      %p164 = por %p162, %p163
      %p165 = scmp.ne.s32.totalorder %s154, %s157
      %p166 = scmp.eq.s32.totalorder %s18, 1
      %p167 = por %p165, %p166
      %p168 = scmp.ne.s32.totalorder %s157, %s158
      %p169 = scmp.eq.s32.totalorder %s18, 0
      %p170 = por %p168, %p169
      %p171 = scmp.ne.s32.totalorder %s157, %s158
      %p172 = scmp.eq.s32.totalorder %s19, 1
      %p173 = por %p171, %p172
      %p175 = scmp.ne.s32.totalorder %s158, %s174
      %p176 = scmp.eq.s32.totalorder %s19, 0
      %p177 = por %p175, %p176
      %p178 = scmp.le.s32.totalorder 1, %s13
      %p179 = scmp.lt.s32.totalorder %s13, 3
      %p180 = pnand %p178, %p179
      %p181 = pneg %p180
      // Predicated region
      $region9: #{timesfm_forward.5} parent=5 // pred_check
        _
      $region10: #{timesfm_forward.5} parent=5 // pred_check_branch
        %183 = sbr.rel (%p180) target = $region12
      $region11: #{timesfm_forward.5} parent=5 // pred_region
        %s184 = ssub.s32 %s13, 1
        // Predicated region
        $region13: #{timesfm_forward.5} parent=11 // pred_check
          %p185 = pneg %p60
        $region14: #{timesfm_forward.5} parent=11 // pred_check_branch
          %187 = sbr.rel (%p185) target = $region16
        $region15: #{timesfm_forward.5} parent=11 // pred_region
          _
        $region16: #{timesfm_forward.5} parent=11 // pred_fallthru
          _
        // Predicated region
        $region17: #{timesfm_forward.5} parent=11 // pred_check
          %p188 = pneg %p81
        $region18: #{timesfm_forward.5} parent=11 // pred_check_branch
          %190 = sbr.rel (%p188) target = $region20
        $region19: #{timesfm_forward.5} parent=11 // pred_region
          _
        $region20: #{timesfm_forward.5} parent=11 // pred_fallthru
          _
        // Predicated region
        $region21: #{timesfm_forward.5} parent=11 // pred_check
          %p191 = pneg %p102
        $region22: #{timesfm_forward.5} parent=11 // pred_check_branch
          %193 = sbr.rel (%p191) target = $region24
        $region23: #{timesfm_forward.5} parent=11 // pred_region
          _
        $region24: #{timesfm_forward.5} parent=11 // pred_fallthru
          _
        // Predicated region
        $region25: #{timesfm_forward.5} parent=11 // pred_check
          %p194 = pneg %p123
        $region26: #{timesfm_forward.5} parent=11 // pred_check_branch
          %196 = sbr.rel (%p194) target = $region28
        $region27: #{timesfm_forward.5} parent=11 // pred_region
          _
        $region28: #{timesfm_forward.5} parent=11 // pred_fallthru
          _
        // Predicated region
        $region29: #{timesfm_forward.5} parent=11 // pred_check
          %p197 = pneg %p144
        $region30: #{timesfm_forward.5} parent=11 // pred_check_branch
          %199 = sbr.rel (%p197) target = $region32
        $region31: #{timesfm_forward.5} parent=11 // pred_region
          %201 = vsyncadd [#allocation3], 0
          %s203 = sshll.u32 %s5, 4
          %s204 = int_to_ptr.vmem [resolvable:$true] %s203
          %206 = dma.vmem_to_smem %s204, 32, [#allocation2], [#allocation3]
        $region32: #{timesfm_forward.5} parent=11 // pred_fallthru
          _
      $region12: #{timesfm_forward.5} parent=5 // pred_fallthru
        _
      %p207 = scmp.lt.s32.totalorder %s13, 2
      // Predicated region
      $region33: #{timesfm_forward.5} parent=5 // pred_check
        %p208 = pneg %p207
      $region34: #{timesfm_forward.5} parent=5 // pred_check_branch
        %210 = sbr.rel (%p208) target = $region36
      $region35: #{timesfm_forward.5} parent=5 // pred_region
        // Predicated region
        $region37: #{timesfm_forward.5} parent=35 // pred_check
          %p211 = pneg %p33
        $region38: #{timesfm_forward.5} parent=35 // pred_check_branch
          %213 = sbr.rel (%p211) target = $region40
        $region39: #{timesfm_forward.5} parent=35 // pred_region
          %p214 = scmp.lt.s32.totalorder %s13, 1
          %s215 = scalar_select %p214, %s13, 1
          %s216 = smul.addr %s215, 8
          %s217 = scalar_lea.vmem %s0, %s216
        $region40: #{timesfm_forward.5} parent=35 // pred_fallthru
          _
      $region36: #{timesfm_forward.5} parent=5 // pred_fallthru
        _
      %p218 = scmp.le.s32.totalorder 1, %s13
      %p219 = scmp.lt.s32.totalorder %s13, 3
      %p220 = pnand %p218, %p219
      %p221 = pneg %p220
      // Predicated region
      $region41: #{timesfm_forward.5} parent=5 // pred_check
        _
      $region42: #{timesfm_forward.5} parent=5 // pred_check_branch
        %223 = sbr.rel (%p220) target = $region44
      $region43: #{timesfm_forward.5} parent=5 // pred_region
        %s224 = ssub.s32 %s13, 1
        // Predicated region
        $region45: #{timesfm_forward.5} parent=43 // pred_check
          %p225 = pneg %p144
        $region46: #{timesfm_forward.5} parent=43 // pred_check_branch
          %227 = sbr.rel (%p225) target = $region48
        $region47: #{timesfm_forward.5} parent=43 // pred_region
          %229 = dma.done [#allocation3], 32
        $region48: #{timesfm_forward.5} parent=43 // pred_fallthru
          _
        %230 = sfence
        %p231 = scmp.lt.s32.totalorder %s18, 1
        %s232 = scalar_select %p231, %s18, 1
        %s233 = smul.addr %s232, 8
        %s234 = scalar_lea.vmem %s0, %s233
        %p235 = pneg %p39
        %p236 = pneg %p36
        %p237 = pneg %p60
        %p238 = pneg %p57
        %p239 = pneg %p81
        %p240 = pneg %p78
        %p241 = pneg %p102
        %p242 = pneg %p99
        %p243 = pneg %p123
        %p244 = pneg %p120
        %p245 = pneg %p144
        %p246 = pneg %p141
        %p247 = pneg %p170
        %p248 = pneg %p167
        %p249 = scmp.lt.s32.totalorder %s18, 1
        %s250 = scalar_select %p249, %s18, 1
        %s251 = smul.addr %s250, 8
        %s252 = scalar_lea.vmem %s6, %s251
        %p253 = scmp.lt.s32.totalorder %s18, 1
        %s254 = scalar_select %p253, %s18, 1
        %s255 = smul.addr %s254, 8
        %s256 = scalar_lea.vmem %s0, %s255
        %p257 = scmp.lt.s32.totalorder %s18, 1
        %s258 = scalar_select %p257, %s18, 1
        %s259 = smul.addr %s258, 8
        %s260 = scalar_lea.vmem %s6, %s259
        %s261 = smul.u32 %s18, 128
        %s262 = sld [smem:[#allocation2 + %s261]]
        %s263 = sadd.s32 %s261, 1
        %s264 = sld [smem:[#allocation2 + %s263]]
        %v265 = vld [vmem:[%s256] sm:$0xff]
        %v266 = vpack.c.bf16 %v265, %v265
        %v267 = vld [vmem:[%s1] sm:$0xff]
        %v268 = vld [vmem:[%s1 + $0x8] sm:$0xff]
        %v269 = vld [vmem:[%s1 + $0x10] sm:$0xff]
        %v270 = vld [vmem:[%s1 + $0x18] sm:$0xff]
        %v271 = vld [vmem:[%s1 + $0x20] sm:$0xff]
        %v272 = vld [vmem:[%s1 + $0x28] sm:$0xff]
        %v273 = vld [vmem:[%s1 + $0x30] sm:$0xff]
        %v274 = vld [vmem:[%s1 + $0x38] sm:$0xff]
        %v275 = vld [vmem:[%s1 + $0x40] sm:$0xff]
        %v276 = vld [vmem:[%s1 + $0x48] sm:$0xff]
        %v277 = vld [vmem:[%s1 + $0x50] sm:$0xff]
        %v278 = vld [vmem:[%s1 + $0x58] sm:$0xff]
        %v279 = vld [vmem:[%s1 + $0x60] sm:$0xff]
        %v280 = vld [vmem:[%s1 + $0x68] sm:$0xff]
        %v281 = vld [vmem:[%s1 + $0x70] sm:$0xff]
        %v282 = vld [vmem:[%s1 + $0x78] sm:$0xff]
        %v283 = vld [vmem:[%s2] sm:$0x3]
        %v285 = vperm.slane %v283, 0
        %v286 = vperm.slane %v283, 1
        %v305 = vunpack.c.l.b16 %v267
        %v306 = vunpack.c.h.b16 %v267
        %v307 = vunpack.c.l.b16 %v268
        %v308 = vunpack.c.h.b16 %v268
        %v309 = vunpack.c.l.b16 %v269
        %v310 = vunpack.c.h.b16 %v269
        %v311 = vunpack.c.l.b16 %v270
        %v312 = vunpack.c.h.b16 %v270
        %v313 = vunpack.c.l.b16 %v271
        %v314 = vunpack.c.h.b16 %v271
        %v315 = vunpack.c.l.b16 %v272
        %v316 = vunpack.c.h.b16 %v272
        %v317 = vunpack.c.l.b16 %v273
        %v318 = vunpack.c.h.b16 %v273
        %v319 = vunpack.c.l.b16 %v274
        %v320 = vunpack.c.h.b16 %v274
        %v321 = vunpack.c.l.b16 %v275
        %v322 = vunpack.c.h.b16 %v275
        %v323 = vunpack.c.l.b16 %v276
        %v324 = vunpack.c.h.b16 %v276
        %v325 = vunpack.c.l.b16 %v277
        %v326 = vunpack.c.h.b16 %v277
        %v327 = vunpack.c.l.b16 %v278
        %v328 = vunpack.c.h.b16 %v278
        %v329 = vunpack.c.l.b16 %v279
        %v330 = vunpack.c.h.b16 %v279
        %v331 = vunpack.c.l.b16 %v280
        %v332 = vunpack.c.h.b16 %v280
        %v333 = vunpack.c.l.b16 %v281
        %v334 = vunpack.c.h.b16 %v281
        %v335 = vunpack.c.l.b16 %v282
        %v336 = vunpack.c.h.b16 %v282
        %v337 = vpack.c.b16 %v307, %v305
        %v338 = vpack.c.b16 %v308, %v306
        %v339 = vpack.c.b16 %v311, %v309
        %v340 = vpack.c.b16 %v312, %v310
        %v341 = vpack.c.b16 %v315, %v313
        %v342 = vpack.c.b16 %v316, %v314
        %v343 = vpack.c.b16 %v319, %v317
        %v344 = vpack.c.b16 %v320, %v318
        %v345 = vpack.c.b16 %v323, %v321
        %v346 = vpack.c.b16 %v324, %v322
        %v347 = vpack.c.b16 %v327, %v325
        %v348 = vpack.c.b16 %v328, %v326
        %v349 = vpack.c.b16 %v331, %v329
        %v350 = vpack.c.b16 %v332, %v330
        %v351 = vpack.c.b16 %v335, %v333
        %v352 = vpack.c.b16 %v336, %v334
        %369 = vmatpush.bf16.msra.mxu0 %v351
        %370 = vmatpush.bf16.msra.mxu0 %v349
        %371 = vmatpush.bf16.msra.mxu0 %v347
        %372 = vmatpush.bf16.msra.mxu0 %v345
        %373 = vmatpush.bf16.msra.mxu0 %v343
        %374 = vmatpush.bf16.msra.mxu0 %v341
        %375 = vmatpush.bf16.msra.mxu0 %v339
        %376 = vmatpush.bf16.msra.mxu0 %v337
        %377 = vmatmul.bf16.gmra.mxu0 %v266
        %v378 = vpop.f32.mrf.mxu0
        %v379 = vadd.f32 %v285, %v378
        %v380 = vpop.f32.mrf.mxu0
        %381 = vdwg.mxu0
        %382 = vmatpush.bf16.msra.mxu0 %v352
        %383 = vmatpush.bf16.msra.mxu0 %v350
        %384 = vmatpush.bf16.msra.mxu0 %v348
        %385 = vmatpush.bf16.msra.mxu0 %v346
        %386 = vmatpush.bf16.msra.mxu0 %v344
        %387 = vmatpush.bf16.msra.mxu0 %v342
        %388 = vmatpush.bf16.msra.mxu0 %v340
        %389 = vmatpush.bf16.msra.mxu0 %v338
        %390 = vmatmul.bf16.gmra.mxu0 %v266
        %v391 = vpop.f32.mrf.mxu0
        %v392 = vadd.f32 %v286, %v391
        %v393 = vpop.f32.mrf.mxu0
        %394 = vdwg.mxu0
        %v395 = vxor.u32 %v379, 2147483648
        %v396 = vmul.f32 %v395, 1.442695
        %v397 = vpow.pop %v396
        %v398 = vadd.f32 %v397, 1.0
        %v399 = vrcp.pop %v398
        %v400 = vmul.f32 %v398, %v399
        %v401 = vsub.f32 1.0, %v400
        %v402 = vmul.f32 %v399, %v401
        %v403 = vadd.f32 %v399, %v402
        %vm404 = vweird.f32 %v398
        %vm405 = vweird.f32 %v399
        %vm406 = vmor %vm404, %vm405
        %v407 = vsel %vm406, %v399, %v403
        %v408 = vand.u32 2147483647, %v398
        %vm409 = vcmp.eq.f32.partialorder %v408, 8.507059e+37
        %v410 = vand.u32 %v398, 2147483648
        %v411 = vor.u32 1.1754944e-38, %v410
        %v412 = vsel %vm409, %v411, %v407
        %v413 = vmul.f32 1.0, %v412
        %v414 = vmul.f32 %v379, %v413
        %v415 = vpack.c.bf16 %v414, %v414
        %v416 = vld [vmem:[%s3] sm:$0xf]
        %v417 = vld [vmem:[%s3 + $0x4] sm:$0xf]
        %v418 = vld [vmem:[%s3 + $0x8] sm:$0xf]
        %v419 = vld [vmem:[%s3 + $0xc] sm:$0xf]
        %v420 = vld [vmem:[%s3 + $0x10] sm:$0xf]
        %v421 = vld [vmem:[%s3 + $0x14] sm:$0xf]
        %v422 = vld [vmem:[%s3 + $0x18] sm:$0xf]
        %v423 = vld [vmem:[%s3 + $0x1c] sm:$0xf]
        %v424 = vld [vmem:[%s3 + $0x20] sm:$0xf]
        %v425 = vld [vmem:[%s3 + $0x24] sm:$0xf]
        %v426 = vld [vmem:[%s3 + $0x28] sm:$0xf]
        %v427 = vld [vmem:[%s3 + $0x2c] sm:$0xf]
        %v428 = vld [vmem:[%s3 + $0x30] sm:$0xf]
        %v429 = vld [vmem:[%s3 + $0x34] sm:$0xf]
        %v430 = vld [vmem:[%s3 + $0x38] sm:$0xf]
        %v431 = vld [vmem:[%s3 + $0x3c] sm:$0xf]
        %v432 = vld [vmem:[%s4] sm:$0x1]
        %v434 = vperm.slane %v432, 0
        %v452 = vunpack.c.l.b16 %v416
        %v453 = vunpack.c.l.b16 %v417
        %v454 = vunpack.c.l.b16 %v418
        %v455 = vunpack.c.l.b16 %v419
        %v456 = vunpack.c.l.b16 %v420
        %v457 = vunpack.c.l.b16 %v421
        %v458 = vunpack.c.l.b16 %v422
        %v459 = vunpack.c.l.b16 %v423
        %v460 = vunpack.c.l.b16 %v424
        %v461 = vunpack.c.l.b16 %v425
        %v462 = vunpack.c.l.b16 %v426
        %v463 = vunpack.c.l.b16 %v427
        %v464 = vunpack.c.l.b16 %v428
        %v465 = vunpack.c.l.b16 %v429
        %v466 = vunpack.c.l.b16 %v430
        %v467 = vunpack.c.l.b16 %v431
        %v468 = vpack.c.b16 %v453, %v452
        %v469 = vpack.c.b16 %v455, %v454
        %v470 = vpack.c.b16 %v457, %v456
        %v471 = vpack.c.b16 %v459, %v458
        %v472 = vpack.c.b16 %v461, %v460
        %v473 = vpack.c.b16 %v463, %v462
        %v474 = vpack.c.b16 %v465, %v464
        %v475 = vpack.c.b16 %v467, %v466
        %484 = vmatpush.bf16.msra.mxu0 %v475
        %485 = vmatpush.bf16.msra.mxu0 %v474
        %486 = vmatpush.bf16.msra.mxu0 %v473
        %487 = vmatpush.bf16.msra.mxu0 %v472
        %488 = vmatpush.bf16.msra.mxu0 %v471
        %489 = vmatpush.bf16.msra.mxu0 %v470
        %490 = vmatpush.bf16.msra.mxu0 %v469
        %491 = vmatpush.bf16.msra.mxu0 %v468
        %492 = vmatmul.bf16.gmra.mxu0 %v415
        %v493 = vpop.f32.mrf.mxu0
        %v494 = vadd.f32 %v434, %v493
        %v495 = vpop.f32.mrf.mxu0
        %496 = vdwg.mxu0
        %v497 = vadd.f32 %v494, %v392
        %v498 = vstv %s264
        %v499 = vmul.f32 %v497, %v498
        %v500 = vstv %s262
        %v501 = vadd.f32 %v499, %v500
        %502 = vst [vmem:[%s260] sm:$0xff] %v501
        %p503 = scmp.lt.s32.totalorder %s18, 1
        %s504 = scalar_select %p503, %s18, 1
        %s505 = smul.addr %s504, 8
        %s506 = scalar_lea.vmem %s6, %s505
        // Predicated region
        $region49: #{timesfm_forward.5} parent=43 // pred_check
          %p507 = pneg %p167
        $region50: #{timesfm_forward.5} parent=43 // pred_check_branch
          %509 = sbr.rel (%p507) target = $region52
        $region51: #{timesfm_forward.5} parent=43 // pred_region
          _
        $region52: #{timesfm_forward.5} parent=43 // pred_fallthru
          _
      $region44: #{timesfm_forward.5} parent=5 // pred_fallthru
        _
      %p510 = scmp.le.s32.totalorder 2, %s13
      // Predicated region
      $region53: #{timesfm_forward.5} parent=5 // pred_check
        %p511 = pneg %p510
      $region54: #{timesfm_forward.5} parent=5 // pred_check_branch
        %513 = sbr.rel (%p511) target = $region56
      $region55: #{timesfm_forward.5} parent=5 // pred_region
        %s514 = ssub.s32 %s13, 2
        // Predicated region
        $region57: #{timesfm_forward.5} parent=55 // pred_check
          %p515 = pneg %p173
        $region58: #{timesfm_forward.5} parent=55 // pred_check_branch
          %517 = sbr.rel (%p515) target = $region60
        $region59: #{timesfm_forward.5} parent=55 // pred_region
          %p518 = scmp.lt.s32.totalorder %s19, 1
          %s519 = scalar_select %p518, %s19, 1
          %s520 = smul.addr %s519, 8
          %s521 = scalar_lea.vmem %s6, %s520
        $region60: #{timesfm_forward.5} parent=55 // pred_fallthru
          _
      $region56: #{timesfm_forward.5} parent=5 // pred_fallthru
        _
    $region6: #{timesfm_forward.5} parent=1 // loop_footer
      %s17 = sadd.s32 1, %s13
    $region7: #{timesfm_forward.5} parent=1 // loop_footer_branch
      %12 = sbr.rel target = $region3
    $region8: #{timesfm_forward.5} parent=1 // loop_exit
      _
    %522 = vsyncpa [#allocation3], 1
    %s523 = scalar_lea.sflag [#allocation3], 1
    %524 = vsyncpa %s523, 1

// kernel: timesfm_forward.4
$region0: #{timesfm_forward.4}
  #allocation0 [shape = 'u32[]', space=smem, size = 0x4, offset = 0x4, fixed_abs, tag = 'smem constant byte address 0x4 - core index']
  #allocation1 [shape = 'u32[72,128]{1,0:T(1,128)}', space=vmem, size = 0x9000, scoped, tag = 'internal scratch']
  %s0 = inlined_call_operand.vmem [shape: f32[2,8,128], index: 0, kind: input, shape index: {}]
  %s1 = inlined_call_operand.vmem [shape: f32[2,1,128], index: 1, kind: input, shape index: {}]
  %s2 = inlined_call_operand.vmem [shape: f32[2,1,128], index: 2, kind: input, shape index: {}]
  %s3 = inlined_call_operand.vmem [shape: bf16[2,4,128,32], index: 3, kind: input, shape index: {}]
  %s4 = inlined_call_operand.vmem [shape: f32[2,4,1,32], index: 4, kind: input, shape index: {}]
  %s5 = inlined_call_operand.vmem [shape: bf16[2,4,128,32], index: 5, kind: input, shape index: {}]
  %s6 = inlined_call_operand.vmem [shape: f32[2,4,1,32], index: 6, kind: input, shape index: {}]
  %s7 = inlined_call_operand.vmem [shape: bf16[2,4,128,32], index: 7, kind: input, shape index: {}]
  %s8 = inlined_call_operand.vmem [shape: f32[2,4,1,32], index: 8, kind: input, shape index: {}]
  %s9 = inlined_call_operand.vmem [shape: bf16[2,4,32,128], index: 9, kind: input, shape index: {}]
  %s10 = inlined_call_operand.vmem [shape: f32[2,1,128], index: 10, kind: input, shape index: {}]
  %s11 = inlined_call_operand.vmem [shape: f32[2,1,128], index: 11, kind: input, shape index: {}]
  %s12 = inlined_call_operand.vmem [shape: f32[2,1,128], index: 12, kind: input, shape index: {}]
  %s13 = inlined_call_operand.vmem [shape: bf16[2,128,128], index: 13, kind: input, shape index: {}]
  %s14 = inlined_call_operand.vmem [shape: f32[2,1,128], index: 14, kind: input, shape index: {}]
  %s15 = inlined_call_operand.vmem [shape: bf16[2,128,128], index: 15, kind: input, shape index: {}]
  %s16 = inlined_call_operand.vmem [shape: f32[2,1,128], index: 16, kind: input, shape index: {}]
  %s17 = inlined_call_operand.vmem [shape: f32[2,8,128], index: 17, kind: output, shape index: {}]
  %s18 = sld [smem:[#allocation0]]
  $region105: #{timesfm_forward.4} parent=0
    _
  %s20 = ssub.s32 1, %s18
  %s21 = scalar_select 0, %s20, %s18
  loop: start=0, step=1, limit=6
  $region2: #{timesfm_forward.4} parent=0 // loop_pre_header
    _
  $region3: #{timesfm_forward.4} parent=0 // loop_header
    %s23 = sphi 0, %s27
    %p24 = scmp.ge.s32.totalorder %s23, 6
    %s30 = sphi 0, %s42
    %s31 = sphi 0, %s38
    %s32 = sphi 0, %s30
    %s33 = sphi 0, %s31
    %s34 = sphi 0, %s32
    %s35 = sphi 0, %s33
    %s45 = sphi 0, %s47
    %s48 = sphi 0, %s45
    %s49 = sphi 0, %s48
    %s65 = sphi 0, %s49
    %s71 = sphi 0, %s73
    %s74 = sphi 0, %s71
    %s75 = sphi 0, %s74
    %s91 = sphi 0, %s75
    %s97 = sphi 0, %s99
    %s100 = sphi 0, %s97
    %s101 = sphi 0, %s100
    %s117 = sphi 0, %s101
    %s123 = sphi 0, %s125
    %s126 = sphi 0, %s123
    %s127 = sphi 0, %s126
    %s143 = sphi 0, %s127
    %s149 = sphi 0, %s151
    %s152 = sphi 0, %s149
    %s153 = sphi 0, %s152
    %s169 = sphi 0, %s153
    %s175 = sphi 0, %s177
    %s178 = sphi 0, %s175
    %s179 = sphi 0, %s178
    %s195 = sphi 0, %s179
    %s201 = sphi 0, %s203
    %s204 = sphi 0, %s201
    %s205 = sphi 0, %s204
    %s221 = sphi 0, %s205
    %s227 = sphi 0, %s229
    %s230 = sphi 0, %s227
    %s231 = sphi 0, %s230
    %s247 = sphi 0, %s231
    %s253 = sphi 0, %s255
    %s256 = sphi 0, %s253
    %s257 = sphi 0, %s256
    %s273 = sphi 0, %s257
    %s279 = sphi 0, %s281
    %s282 = sphi 0, %s279
    %s283 = sphi 0, %s282
    %s299 = sphi 0, %s283
    %s305 = sphi 0, %s307
    %s308 = sphi 0, %s305
    %s309 = sphi 0, %s308
    %s325 = sphi 0, %s309
    %s331 = sphi 0, %s333
    %s334 = sphi 0, %s331
    %s335 = sphi 0, %s334
    %s351 = sphi 0, %s335
    %s357 = sphi 0, %s359
    %s360 = sphi 0, %s357
    %s361 = sphi 0, %s360
    %s377 = sphi 0, %s361
    %s383 = sphi 0, %s385
    %s386 = sphi 0, %s383
    %s387 = sphi 0, %s386
    %s403 = sphi 0, %s387
    %s409 = sphi 0, %s411
    %s412 = sphi 0, %s409
    %s413 = sphi 0, %s412
    %s429 = sphi 0, %s413
    %s435 = sphi 0, %s437
    %s438 = sphi 0, %s435
    %s439 = sphi 0, %s438
    %s455 = sphi 0, %s439
    %s461 = sphi 0, %s463
    %s464 = sphi 0, %s461
    %s465 = sphi 0, %s464
    %s481 = sphi 0, %s465
    %s487 = sphi 0, %s489
    %s490 = sphi 0, %s487
    %s491 = sphi 0, %s490
    %s507 = sphi 0, %s491
  $region4: #{timesfm_forward.4} parent=0 // loop_header_branch
    %26 = sbr.rel (%p24) target = $region8
  $region5: #{timesfm_forward.4} parent=0 // loop_body
    %s28 = ssub.s32 %s23, 1
    %s29 = ssub.s32 %s23, 2
    %s36 = sadd.s32 1, %s31
    %p37 = scmp.ge.s32.totalorder %s36, 2
    %s38 = scalar_select %p37, 0, %s36
    %s39 = sadd.s32 1, %s30
    %s40 = scalar_select %p37, %s39, %s30
    %p41 = scmp.ge.s32.totalorder %s40, 2
    %s42 = scalar_select %p41, 0, %s40
    %s43 = ssub.s32 %s30, %s42
    %p44 = scmp.eq.s32.totalorder %s43, 0
    %s46 = sadd.s32 %s45, 1
    %s47 = scalar_select %p44, %s45, %s46
    %p50 = pneg %p44
    %p51 = scmp.eq.s32.totalorder %s23, 3
    %p52 = por %p50, %p51
    %p53 = scmp.ne.s32.totalorder %s45, %s48
    %p54 = scmp.eq.s32.totalorder %s23, 0
    %p55 = por %p53, %p54
    %p56 = scmp.ne.s32.totalorder %s45, %s48
    %p57 = scmp.eq.s32.totalorder %s28, 3
    %p58 = por %p56, %p57
    %p59 = scmp.ne.s32.totalorder %s48, %s49
    %p60 = scmp.eq.s32.totalorder %s28, 0
    %p61 = por %p59, %p60
    %p62 = scmp.ne.s32.totalorder %s48, %s49
    %p63 = scmp.eq.s32.totalorder %s29, 3
    %p64 = por %p62, %p63
    %p66 = scmp.ne.s32.totalorder %s49, %s65
    %p67 = scmp.eq.s32.totalorder %s29, 0
    %p68 = por %p66, %p67
    %s69 = ssub.s32 %s31, %s38
    %p70 = scmp.eq.s32.totalorder %s69, 0
    %s72 = sadd.s32 %s71, 1
    %s73 = scalar_select %p70, %s71, %s72
    %p76 = pneg %p70
    %p77 = scmp.eq.s32.totalorder %s23, 3
    %p78 = por %p76, %p77
    %p79 = scmp.ne.s32.totalorder %s71, %s74
    %p80 = scmp.eq.s32.totalorder %s23, 0
    %p81 = por %p79, %p80
    %p82 = scmp.ne.s32.totalorder %s71, %s74
    %p83 = scmp.eq.s32.totalorder %s28, 3
    %p84 = por %p82, %p83
    %p85 = scmp.ne.s32.totalorder %s74, %s75
    %p86 = scmp.eq.s32.totalorder %s28, 0
    %p87 = por %p85, %p86
    %p88 = scmp.ne.s32.totalorder %s74, %s75
    %p89 = scmp.eq.s32.totalorder %s29, 3
    %p90 = por %p88, %p89
    %p92 = scmp.ne.s32.totalorder %s75, %s91
    %p93 = scmp.eq.s32.totalorder %s29, 0
    %p94 = por %p92, %p93
    %s95 = ssub.s32 %s31, %s38
    %p96 = scmp.eq.s32.totalorder %s95, 0
    %s98 = sadd.s32 %s97, 1
    %s99 = scalar_select %p96, %s97, %s98
    %p102 = pneg %p96
    %p103 = scmp.eq.s32.totalorder %s23, 3
    %p104 = por %p102, %p103
    %p105 = scmp.ne.s32.totalorder %s97, %s100
    %p106 = scmp.eq.s32.totalorder %s23, 0
    %p107 = por %p105, %p106
    %p108 = scmp.ne.s32.totalorder %s97, %s100
    %p109 = scmp.eq.s32.totalorder %s28, 3
    %p110 = por %p108, %p109
    %p111 = scmp.ne.s32.totalorder %s100, %s101
    %p112 = scmp.eq.s32.totalorder %s28, 0
    %p113 = por %p111, %p112
    %p114 = scmp.ne.s32.totalorder %s100, %s101
    %p115 = scmp.eq.s32.totalorder %s29, 3
    %p116 = por %p114, %p115
    %p118 = scmp.ne.s32.totalorder %s101, %s117
    %p119 = scmp.eq.s32.totalorder %s29, 0
    %p120 = por %p118, %p119
    %s121 = ssub.s32 %s31, %s38
    %p122 = scmp.eq.s32.totalorder %s121, 0
    %s124 = sadd.s32 %s123, 1
    %s125 = scalar_select %p122, %s123, %s124
    %p128 = pneg %p122
    %p129 = scmp.eq.s32.totalorder %s23, 3
    %p130 = por %p128, %p129
    %p131 = scmp.ne.s32.totalorder %s123, %s126
    %p132 = scmp.eq.s32.totalorder %s23, 0
    %p133 = por %p131, %p132
    %p134 = scmp.ne.s32.totalorder %s123, %s126
    %p135 = scmp.eq.s32.totalorder %s28, 3
    %p136 = por %p134, %p135
    %p137 = scmp.ne.s32.totalorder %s126, %s127
    %p138 = scmp.eq.s32.totalorder %s28, 0
    %p139 = por %p137, %p138
    %p140 = scmp.ne.s32.totalorder %s126, %s127
    %p141 = scmp.eq.s32.totalorder %s29, 3
    %p142 = por %p140, %p141
    %p144 = scmp.ne.s32.totalorder %s127, %s143
    %p145 = scmp.eq.s32.totalorder %s29, 0
    %p146 = por %p144, %p145
    %s147 = ssub.s32 %s31, %s38
    %p148 = scmp.eq.s32.totalorder %s147, 0
    %s150 = sadd.s32 %s149, 1
    %s151 = scalar_select %p148, %s149, %s150
    %p154 = pneg %p148
    %p155 = scmp.eq.s32.totalorder %s23, 3
    %p156 = por %p154, %p155
    %p157 = scmp.ne.s32.totalorder %s149, %s152
    %p158 = scmp.eq.s32.totalorder %s23, 0
    %p159 = por %p157, %p158
    %p160 = scmp.ne.s32.totalorder %s149, %s152
    %p161 = scmp.eq.s32.totalorder %s28, 3
    %p162 = por %p160, %p161
    %p163 = scmp.ne.s32.totalorder %s152, %s153
    %p164 = scmp.eq.s32.totalorder %s28, 0
    %p165 = por %p163, %p164
    %p166 = scmp.ne.s32.totalorder %s152, %s153
    %p167 = scmp.eq.s32.totalorder %s29, 3
    %p168 = por %p166, %p167
    %p170 = scmp.ne.s32.totalorder %s153, %s169
    %p171 = scmp.eq.s32.totalorder %s29, 0
    %p172 = por %p170, %p171
    %s173 = ssub.s32 %s31, %s38
    %p174 = scmp.eq.s32.totalorder %s173, 0
    %s176 = sadd.s32 %s175, 1
    %s177 = scalar_select %p174, %s175, %s176
    %p180 = pneg %p174
    %p181 = scmp.eq.s32.totalorder %s23, 3
    %p182 = por %p180, %p181
    %p183 = scmp.ne.s32.totalorder %s175, %s178
    %p184 = scmp.eq.s32.totalorder %s23, 0
    %p185 = por %p183, %p184
    %p186 = scmp.ne.s32.totalorder %s175, %s178
    %p187 = scmp.eq.s32.totalorder %s28, 3
    %p188 = por %p186, %p187
    %p189 = scmp.ne.s32.totalorder %s178, %s179
    %p190 = scmp.eq.s32.totalorder %s28, 0
    %p191 = por %p189, %p190
    %p192 = scmp.ne.s32.totalorder %s178, %s179
    %p193 = scmp.eq.s32.totalorder %s29, 3
    %p194 = por %p192, %p193
    %p196 = scmp.ne.s32.totalorder %s179, %s195
    %p197 = scmp.eq.s32.totalorder %s29, 0
    %p198 = por %p196, %p197
    %s199 = ssub.s32 %s31, %s38
    %p200 = scmp.eq.s32.totalorder %s199, 0
    %s202 = sadd.s32 %s201, 1
    %s203 = scalar_select %p200, %s201, %s202
    %p206 = pneg %p200
    %p207 = scmp.eq.s32.totalorder %s23, 3
    %p208 = por %p206, %p207
    %p209 = scmp.ne.s32.totalorder %s201, %s204
    %p210 = scmp.eq.s32.totalorder %s23, 0
    %p211 = por %p209, %p210
    %p212 = scmp.ne.s32.totalorder %s201, %s204
    %p213 = scmp.eq.s32.totalorder %s28, 3
    %p214 = por %p212, %p213
    %p215 = scmp.ne.s32.totalorder %s204, %s205
    %p216 = scmp.eq.s32.totalorder %s28, 0
    %p217 = por %p215, %p216
    %p218 = scmp.ne.s32.totalorder %s204, %s205
    %p219 = scmp.eq.s32.totalorder %s29, 3
    %p220 = por %p218, %p219
    %p222 = scmp.ne.s32.totalorder %s205, %s221
    %p223 = scmp.eq.s32.totalorder %s29, 0
    %p224 = por %p222, %p223
    %s225 = ssub.s32 %s31, %s38
    %p226 = scmp.eq.s32.totalorder %s225, 0
    %s228 = sadd.s32 %s227, 1
    %s229 = scalar_select %p226, %s227, %s228
    %p232 = pneg %p226
    %p233 = scmp.eq.s32.totalorder %s23, 3
    %p234 = por %p232, %p233
    %p235 = scmp.ne.s32.totalorder %s227, %s230
    %p236 = scmp.eq.s32.totalorder %s23, 0
    %p237 = por %p235, %p236
    %p238 = scmp.ne.s32.totalorder %s227, %s230
    %p239 = scmp.eq.s32.totalorder %s28, 3
    %p240 = por %p238, %p239
    %p241 = scmp.ne.s32.totalorder %s230, %s231
    %p242 = scmp.eq.s32.totalorder %s28, 0
    %p243 = por %p241, %p242
    %p244 = scmp.ne.s32.totalorder %s230, %s231
    %p245 = scmp.eq.s32.totalorder %s29, 3
    %p246 = por %p244, %p245
    %p248 = scmp.ne.s32.totalorder %s231, %s247
    %p249 = scmp.eq.s32.totalorder %s29, 0
    %p250 = por %p248, %p249
    %s251 = ssub.s32 %s31, %s38
    %p252 = scmp.eq.s32.totalorder %s251, 0
    %s254 = sadd.s32 %s253, 1
    %s255 = scalar_select %p252, %s253, %s254
    %p258 = pneg %p252
    %p259 = scmp.eq.s32.totalorder %s23, 3
    %p260 = por %p258, %p259
    %p261 = scmp.ne.s32.totalorder %s253, %s256
    %p262 = scmp.eq.s32.totalorder %s23, 0
    %p263 = por %p261, %p262
    %p264 = scmp.ne.s32.totalorder %s253, %s256
    %p265 = scmp.eq.s32.totalorder %s28, 3
    %p266 = por %p264, %p265
    %p267 = scmp.ne.s32.totalorder %s256, %s257
    %p268 = scmp.eq.s32.totalorder %s28, 0
    %p269 = por %p267, %p268
    %p270 = scmp.ne.s32.totalorder %s256, %s257
    %p271 = scmp.eq.s32.totalorder %s29, 3
    %p272 = por %p270, %p271
    %p274 = scmp.ne.s32.totalorder %s257, %s273
    %p275 = scmp.eq.s32.totalorder %s29, 0
    %p276 = por %p274, %p275
    %s277 = ssub.s32 %s31, %s38
    %p278 = scmp.eq.s32.totalorder %s277, 0
    %s280 = sadd.s32 %s279, 1
    %s281 = scalar_select %p278, %s279, %s280
    %p284 = pneg %p278
    %p285 = scmp.eq.s32.totalorder %s23, 3
    %p286 = por %p284, %p285
    %p287 = scmp.ne.s32.totalorder %s279, %s282
    %p288 = scmp.eq.s32.totalorder %s23, 0
    %p289 = por %p287, %p288
    %p290 = scmp.ne.s32.totalorder %s279, %s282
    %p291 = scmp.eq.s32.totalorder %s28, 3
    %p292 = por %p290, %p291
    %p293 = scmp.ne.s32.totalorder %s282, %s283
    %p294 = scmp.eq.s32.totalorder %s28, 0
    %p295 = por %p293, %p294
    %p296 = scmp.ne.s32.totalorder %s282, %s283
    %p297 = scmp.eq.s32.totalorder %s29, 3
    %p298 = por %p296, %p297
    %p300 = scmp.ne.s32.totalorder %s283, %s299
    %p301 = scmp.eq.s32.totalorder %s29, 0
    %p302 = por %p300, %p301
    %s303 = ssub.s32 %s31, %s38
    %p304 = scmp.eq.s32.totalorder %s303, 0
    %s306 = sadd.s32 %s305, 1
    %s307 = scalar_select %p304, %s305, %s306
    %p310 = pneg %p304
    %p311 = scmp.eq.s32.totalorder %s23, 3
    %p312 = por %p310, %p311
    %p313 = scmp.ne.s32.totalorder %s305, %s308
    %p314 = scmp.eq.s32.totalorder %s23, 0
    %p315 = por %p313, %p314
    %p316 = scmp.ne.s32.totalorder %s305, %s308
    %p317 = scmp.eq.s32.totalorder %s28, 3
    %p318 = por %p316, %p317
    %p319 = scmp.ne.s32.totalorder %s308, %s309
    %p320 = scmp.eq.s32.totalorder %s28, 0
    %p321 = por %p319, %p320
    %p322 = scmp.ne.s32.totalorder %s308, %s309
    %p323 = scmp.eq.s32.totalorder %s29, 3
    %p324 = por %p322, %p323
    %p326 = scmp.ne.s32.totalorder %s309, %s325
    %p327 = scmp.eq.s32.totalorder %s29, 0
    %p328 = por %p326, %p327
    %s329 = ssub.s32 %s31, %s38
    %p330 = scmp.eq.s32.totalorder %s329, 0
    %s332 = sadd.s32 %s331, 1
    %s333 = scalar_select %p330, %s331, %s332
    %p336 = pneg %p330
    %p337 = scmp.eq.s32.totalorder %s23, 3
    %p338 = por %p336, %p337
    %p339 = scmp.ne.s32.totalorder %s331, %s334
    %p340 = scmp.eq.s32.totalorder %s23, 0
    %p341 = por %p339, %p340
    %p342 = scmp.ne.s32.totalorder %s331, %s334
    %p343 = scmp.eq.s32.totalorder %s28, 3
    %p344 = por %p342, %p343
    %p345 = scmp.ne.s32.totalorder %s334, %s335
    %p346 = scmp.eq.s32.totalorder %s28, 0
    %p347 = por %p345, %p346
    %p348 = scmp.ne.s32.totalorder %s334, %s335
    %p349 = scmp.eq.s32.totalorder %s29, 3
    %p350 = por %p348, %p349
    %p352 = scmp.ne.s32.totalorder %s335, %s351
    %p353 = scmp.eq.s32.totalorder %s29, 0
    %p354 = por %p352, %p353
    %s355 = ssub.s32 %s31, %s38
    %p356 = scmp.eq.s32.totalorder %s355, 0
    %s358 = sadd.s32 %s357, 1
    %s359 = scalar_select %p356, %s357, %s358
    %p362 = pneg %p356
    %p363 = scmp.eq.s32.totalorder %s23, 3
    %p364 = por %p362, %p363
    %p365 = scmp.ne.s32.totalorder %s357, %s360
    %p366 = scmp.eq.s32.totalorder %s23, 0
    %p367 = por %p365, %p366
    %p368 = scmp.ne.s32.totalorder %s357, %s360
    %p369 = scmp.eq.s32.totalorder %s28, 3
    %p370 = por %p368, %p369
    %p371 = scmp.ne.s32.totalorder %s360, %s361
    %p372 = scmp.eq.s32.totalorder %s28, 0
    %p373 = por %p371, %p372
    %p374 = scmp.ne.s32.totalorder %s360, %s361
    %p375 = scmp.eq.s32.totalorder %s29, 3
    %p376 = por %p374, %p375
    %p378 = scmp.ne.s32.totalorder %s361, %s377
    %p379 = scmp.eq.s32.totalorder %s29, 0
    %p380 = por %p378, %p379
    %s381 = ssub.s32 %s31, %s38
    %p382 = scmp.eq.s32.totalorder %s381, 0
    %s384 = sadd.s32 %s383, 1
    %s385 = scalar_select %p382, %s383, %s384
    %p388 = pneg %p382
    %p389 = scmp.eq.s32.totalorder %s23, 3
    %p390 = por %p388, %p389
    %p391 = scmp.ne.s32.totalorder %s383, %s386
    %p392 = scmp.eq.s32.totalorder %s23, 0
    %p393 = por %p391, %p392
    %p394 = scmp.ne.s32.totalorder %s383, %s386
    %p395 = scmp.eq.s32.totalorder %s28, 3
    %p396 = por %p394, %p395
    %p397 = scmp.ne.s32.totalorder %s386, %s387
    %p398 = scmp.eq.s32.totalorder %s28, 0
    %p399 = por %p397, %p398
    %p400 = scmp.ne.s32.totalorder %s386, %s387
    %p401 = scmp.eq.s32.totalorder %s29, 3
    %p402 = por %p400, %p401
    %p404 = scmp.ne.s32.totalorder %s387, %s403
    %p405 = scmp.eq.s32.totalorder %s29, 0
    %p406 = por %p404, %p405
    %s407 = ssub.s32 %s31, %s38
    %p408 = scmp.eq.s32.totalorder %s407, 0
    %s410 = sadd.s32 %s409, 1
    %s411 = scalar_select %p408, %s409, %s410
    %p414 = pneg %p408
    %p415 = scmp.eq.s32.totalorder %s23, 3
    %p416 = por %p414, %p415
    %p417 = scmp.ne.s32.totalorder %s409, %s412
    %p418 = scmp.eq.s32.totalorder %s23, 0
    %p419 = por %p417, %p418
    %p420 = scmp.ne.s32.totalorder %s409, %s412
    %p421 = scmp.eq.s32.totalorder %s28, 3
    %p422 = por %p420, %p421
    %p423 = scmp.ne.s32.totalorder %s412, %s413
    %p424 = scmp.eq.s32.totalorder %s28, 0
    %p425 = por %p423, %p424
    %p426 = scmp.ne.s32.totalorder %s412, %s413
    %p427 = scmp.eq.s32.totalorder %s29, 3
    %p428 = por %p426, %p427
    %p430 = scmp.ne.s32.totalorder %s413, %s429
    %p431 = scmp.eq.s32.totalorder %s29, 0
    %p432 = por %p430, %p431
    %s433 = ssub.s32 %s31, %s38
    %p434 = scmp.eq.s32.totalorder %s433, 0
    %s436 = sadd.s32 %s435, 1
    %s437 = scalar_select %p434, %s435, %s436
    %p440 = pneg %p434
    %p441 = scmp.eq.s32.totalorder %s23, 3
    %p442 = por %p440, %p441
    %p443 = scmp.ne.s32.totalorder %s435, %s438
    %p444 = scmp.eq.s32.totalorder %s23, 0
    %p445 = por %p443, %p444
    %p446 = scmp.ne.s32.totalorder %s435, %s438
    %p447 = scmp.eq.s32.totalorder %s28, 3
    %p448 = por %p446, %p447
    %p449 = scmp.ne.s32.totalorder %s438, %s439
    %p450 = scmp.eq.s32.totalorder %s28, 0
    %p451 = por %p449, %p450
    %p452 = scmp.ne.s32.totalorder %s438, %s439
    %p453 = scmp.eq.s32.totalorder %s29, 3
    %p454 = por %p452, %p453
    %p456 = scmp.ne.s32.totalorder %s439, %s455
    %p457 = scmp.eq.s32.totalorder %s29, 0
    %p458 = por %p456, %p457
    %s459 = ssub.s32 %s31, %s38
    %p460 = scmp.eq.s32.totalorder %s459, 0
    %s462 = sadd.s32 %s461, 1
    %s463 = scalar_select %p460, %s461, %s462
    %p466 = pneg %p460
    %p467 = scmp.eq.s32.totalorder %s23, 3
    %p468 = por %p466, %p467
    %p469 = scmp.ne.s32.totalorder %s461, %s464
    %p470 = scmp.eq.s32.totalorder %s23, 0
    %p471 = por %p469, %p470
    %p472 = scmp.ne.s32.totalorder %s461, %s464
    %p473 = scmp.eq.s32.totalorder %s28, 3
    %p474 = por %p472, %p473
    %p475 = scmp.ne.s32.totalorder %s464, %s465
    %p476 = scmp.eq.s32.totalorder %s28, 0
    %p477 = por %p475, %p476
    %p478 = scmp.ne.s32.totalorder %s464, %s465
    %p479 = scmp.eq.s32.totalorder %s29, 3
    %p480 = por %p478, %p479
    %p482 = scmp.ne.s32.totalorder %s465, %s481
    %p483 = scmp.eq.s32.totalorder %s29, 0
    %p484 = por %p482, %p483
    %s485 = ssub.s32 %s30, %s42
    %p486 = scmp.eq.s32.totalorder %s485, 0
    %s488 = sadd.s32 %s487, 1
    %s489 = scalar_select %p486, %s487, %s488
    %p492 = pneg %p486
    %p493 = scmp.eq.s32.totalorder %s23, 3
    %p494 = por %p492, %p493
    %p495 = scmp.ne.s32.totalorder %s487, %s490
    %p496 = scmp.eq.s32.totalorder %s23, 0
    %p497 = por %p495, %p496
    %p498 = scmp.ne.s32.totalorder %s487, %s490
    %p499 = scmp.eq.s32.totalorder %s28, 3
    %p500 = por %p498, %p499
    %p501 = scmp.ne.s32.totalorder %s490, %s491
    %p502 = scmp.eq.s32.totalorder %s28, 0
    %p503 = por %p501, %p502
    %p504 = scmp.ne.s32.totalorder %s490, %s491
    %p505 = scmp.eq.s32.totalorder %s29, 3
    %p506 = por %p504, %p505
    %p508 = scmp.ne.s32.totalorder %s491, %s507
    %p509 = scmp.eq.s32.totalorder %s29, 0
    %p510 = por %p508, %p509
    %p511 = scmp.le.s32.totalorder 1, %s23
    %p512 = scmp.lt.s32.totalorder %s23, 5
    %p513 = pnand %p511, %p512
    %p514 = pneg %p513
    // Predicated region
    $region9: #{timesfm_forward.4} parent=5 // pred_check
      _
    $region10: #{timesfm_forward.4} parent=5 // pred_check_branch
      %516 = sbr.rel (%p513) target = $region12
    $region11: #{timesfm_forward.4} parent=5 // pred_region
      %s517 = ssub.s32 %s23, 1
    $region12: #{timesfm_forward.4} parent=5 // pred_fallthru
      _
    %p518 = scmp.lt.s32.totalorder %s23, 4
    // Predicated region
    $region13: #{timesfm_forward.4} parent=5 // pred_check
      %p519 = pneg %p518
    $region14: #{timesfm_forward.4} parent=5 // pred_check_branch
      %521 = sbr.rel (%p519) target = $region16
    $region15: #{timesfm_forward.4} parent=5 // pred_region
      // Predicated region
      $region17: #{timesfm_forward.4} parent=15 // pred_check
        %p522 = pneg %p55
      $region18: #{timesfm_forward.4} parent=15 // pred_check_branch
        %524 = sbr.rel (%p522) target = $region20
      $region19: #{timesfm_forward.4} parent=15 // pred_region
        %p525 = scmp.lt.s32.totalorder %s30, 1
        %s526 = scalar_select %p525, %s30, 1
        %s527 = smul.addr %s526, 8
        %s528 = scalar_lea.vmem %s0, %s527
      $region20: #{timesfm_forward.4} parent=15 // pred_fallthru
        _
      // Predicated region
      $region21: #{timesfm_forward.4} parent=15 // pred_check
        %p529 = pneg %p81
      $region22: #{timesfm_forward.4} parent=15 // pred_check_branch
        %531 = sbr.rel (%p529) target = $region24
      $region23: #{timesfm_forward.4} parent=15 // pred_region
        %p532 = scmp.lt.s32.totalorder %s31, 1
        %s533 = scalar_select %p532, %s31, 1
        %s534 = scalar_lea.vmem %s1, %s533
      $region24: #{timesfm_forward.4} parent=15 // pred_fallthru
        _
      // Predicated region
      $region25: #{timesfm_forward.4} parent=15 // pred_check
        %p535 = pneg %p107
      $region26: #{timesfm_forward.4} parent=15 // pred_check_branch
        %537 = sbr.rel (%p535) target = $region28
      $region27: #{timesfm_forward.4} parent=15 // pred_region
        %p538 = scmp.lt.s32.totalorder %s31, 1
        %s539 = scalar_select %p538, %s31, 1
        %s540 = scalar_lea.vmem %s2, %s539
      $region28: #{timesfm_forward.4} parent=15 // pred_fallthru
        _
      // Predicated region
      $region29: #{timesfm_forward.4} parent=15 // pred_check
        %p541 = pneg %p133
      $region30: #{timesfm_forward.4} parent=15 // pred_check_branch
        %543 = sbr.rel (%p541) target = $region32
      $region31: #{timesfm_forward.4} parent=15 // pred_region
        %p544 = scmp.lt.s32.totalorder %s31, 1
        %s545 = scalar_select %p544, %s31, 1
        %s546 = smul.addr %s545, 64
        %s547 = smul.addr %s546, 4
        %s548 = scalar_lea.vmem %s3, %s547
      $region32: #{timesfm_forward.4} parent=15 // pred_fallthru
        _
      // Predicated region
      $region33: #{timesfm_forward.4} parent=15 // pred_check
        %p549 = pneg %p159
      $region34: #{timesfm_forward.4} parent=15 // pred_check_branch
        %551 = sbr.rel (%p549) target = $region36
      $region35: #{timesfm_forward.4} parent=15 // pred_region
        %p552 = scmp.lt.s32.totalorder %s31, 1
        %s553 = scalar_select %p552, %s31, 1
        %s554 = smul.addr %s553, 4
        %s555 = scalar_lea.vmem %s4, %s554
      $region36: #{timesfm_forward.4} parent=15 // pred_fallthru
        _
      // Predicated region
      $region37: #{timesfm_forward.4} parent=15 // pred_check
        %p556 = pneg %p185
      $region38: #{timesfm_forward.4} parent=15 // pred_check_branch
        %558 = sbr.rel (%p556) target = $region40
      $region39: #{timesfm_forward.4} parent=15 // pred_region
        %p559 = scmp.lt.s32.totalorder %s31, 1
        %s560 = scalar_select %p559, %s31, 1
        %s561 = smul.addr %s560, 64
        %s562 = smul.addr %s561, 4
        %s563 = scalar_lea.vmem %s5, %s562
      $region40: #{timesfm_forward.4} parent=15 // pred_fallthru
        _
      // Predicated region
      $region41: #{timesfm_forward.4} parent=15 // pred_check
        %p564 = pneg %p211
      $region42: #{timesfm_forward.4} parent=15 // pred_check_branch
        %566 = sbr.rel (%p564) target = $region44
      $region43: #{timesfm_forward.4} parent=15 // pred_region
        %p567 = scmp.lt.s32.totalorder %s31, 1
        %s568 = scalar_select %p567, %s31, 1
        %s569 = smul.addr %s568, 4
        %s570 = scalar_lea.vmem %s6, %s569
      $region44: #{timesfm_forward.4} parent=15 // pred_fallthru
        _
      // Predicated region
      $region45: #{timesfm_forward.4} parent=15 // pred_check
        %p571 = pneg %p237
      $region46: #{timesfm_forward.4} parent=15 // pred_check_branch
        %573 = sbr.rel (%p571) target = $region48
      $region47: #{timesfm_forward.4} parent=15 // pred_region
        %p574 = scmp.lt.s32.totalorder %s31, 1
        %s575 = scalar_select %p574, %s31, 1
        %s576 = smul.addr %s575, 64
        %s577 = smul.addr %s576, 4
        %s578 = scalar_lea.vmem %s7, %s577
      $region48: #{timesfm_forward.4} parent=15 // pred_fallthru
        _
      // Predicated region
      $region49: #{timesfm_forward.4} parent=15 // pred_check
        %p579 = pneg %p263
      $region50: #{timesfm_forward.4} parent=15 // pred_check_branch
        %581 = sbr.rel (%p579) target = $region52
      $region51: #{timesfm_forward.4} parent=15 // pred_region
        %p582 = scmp.lt.s32.totalorder %s31, 1
        %s583 = scalar_select %p582, %s31, 1
        %s584 = smul.addr %s583, 4
        %s585 = scalar_lea.vmem %s8, %s584
      $region52: #{timesfm_forward.4} parent=15 // pred_fallthru
        _
      // Predicated region
      $region53: #{timesfm_forward.4} parent=15 // pred_check
        %p586 = pneg %p289
      $region54: #{timesfm_forward.4} parent=15 // pred_check_branch
        %588 = sbr.rel (%p586) target = $region56
      $region55: #{timesfm_forward.4} parent=15 // pred_region
        %p589 = scmp.lt.s32.totalorder %s31, 1
        %s590 = scalar_select %p589, %s31, 1
        %s591 = smul.addr %s590, 16
        %s592 = smul.addr %s591, 4
        %s593 = scalar_lea.vmem %s9, %s592
      $region56: #{timesfm_forward.4} parent=15 // pred_fallthru
        _
      // Predicated region
      $region57: #{timesfm_forward.4} parent=15 // pred_check
        %p594 = pneg %p315
      $region58: #{timesfm_forward.4} parent=15 // pred_check_branch
        %596 = sbr.rel (%p594) target = $region60
      $region59: #{timesfm_forward.4} parent=15 // pred_region
        %p597 = scmp.lt.s32.totalorder %s31, 1
        %s598 = scalar_select %p597, %s31, 1
        %s599 = scalar_lea.vmem %s10, %s598
      $region60: #{timesfm_forward.4} parent=15 // pred_fallthru
        _
      // Predicated region
      $region61: #{timesfm_forward.4} parent=15 // pred_check
        %p600 = pneg %p341
      $region62: #{timesfm_forward.4} parent=15 // pred_check_branch
        %602 = sbr.rel (%p600) target = $region64
      $region63: #{timesfm_forward.4} parent=15 // pred_region
        %p603 = scmp.lt.s32.totalorder %s31, 1
        %s604 = scalar_select %p603, %s31, 1
        %s605 = scalar_lea.vmem %s11, %s604
      $region64: #{timesfm_forward.4} parent=15 // pred_fallthru
        _
      // Predicated region
      $region65: #{timesfm_forward.4} parent=15 // pred_check
        %p606 = pneg %p367
      $region66: #{timesfm_forward.4} parent=15 // pred_check_branch
        %608 = sbr.rel (%p606) target = $region68
      $region67: #{timesfm_forward.4} parent=15 // pred_region
        %p609 = scmp.lt.s32.totalorder %s31, 1
        %s610 = scalar_select %p609, %s31, 1
        %s611 = scalar_lea.vmem %s12, %s610
      $region68: #{timesfm_forward.4} parent=15 // pred_fallthru
        _
      // Predicated region
      $region69: #{timesfm_forward.4} parent=15 // pred_check
        %p612 = pneg %p393
      $region70: #{timesfm_forward.4} parent=15 // pred_check_branch
        %614 = sbr.rel (%p612) target = $region72
      $region71: #{timesfm_forward.4} parent=15 // pred_region
        %p615 = scmp.lt.s32.totalorder %s31, 1
        %s616 = scalar_select %p615, %s31, 1
        %s617 = smul.addr %s616, 16
        %s618 = smul.addr %s617, 4
        %s619 = scalar_lea.vmem %s13, %s618
      $region72: #{timesfm_forward.4} parent=15 // pred_fallthru
        _
      // Predicated region
      $region73: #{timesfm_forward.4} parent=15 // pred_check
        %p620 = pneg %p419
      $region74: #{timesfm_forward.4} parent=15 // pred_check_branch
        %622 = sbr.rel (%p620) target = $region76
      $region75: #{timesfm_forward.4} parent=15 // pred_region
        %p623 = scmp.lt.s32.totalorder %s31, 1
        %s624 = scalar_select %p623, %s31, 1
        %s625 = scalar_lea.vmem %s14, %s624
      $region76: #{timesfm_forward.4} parent=15 // pred_fallthru
        _
      // Predicated region
      $region77: #{timesfm_forward.4} parent=15 // pred_check
        %p626 = pneg %p445
      $region78: #{timesfm_forward.4} parent=15 // pred_check_branch
        %628 = sbr.rel (%p626) target = $region80
      $region79: #{timesfm_forward.4} parent=15 // pred_region
        %p629 = scmp.lt.s32.totalorder %s31, 1
        %s630 = scalar_select %p629, %s31, 1
        %s631 = smul.addr %s630, 16
        %s632 = smul.addr %s631, 4
        %s633 = scalar_lea.vmem %s15, %s632
      $region80: #{timesfm_forward.4} parent=15 // pred_fallthru
        _
      // Predicated region
      $region81: #{timesfm_forward.4} parent=15 // pred_check
        %p634 = pneg %p471
      $region82: #{timesfm_forward.4} parent=15 // pred_check_branch
        %636 = sbr.rel (%p634) target = $region84
      $region83: #{timesfm_forward.4} parent=15 // pred_region
        %p637 = scmp.lt.s32.totalorder %s31, 1
        %s638 = scalar_select %p637, %s31, 1
        %s639 = scalar_lea.vmem %s16, %s638
      $region84: #{timesfm_forward.4} parent=15 // pred_fallthru
        _
    $region16: #{timesfm_forward.4} parent=5 // pred_fallthru
      _
    %p640 = scmp.le.s32.totalorder 1, %s23
    %p641 = scmp.lt.s32.totalorder %s23, 5
    %p642 = pnand %p640, %p641
    %p643 = pneg %p642
    // Predicated region
    $region85: #{timesfm_forward.4} parent=5 // pred_check
      _
    $region86: #{timesfm_forward.4} parent=5 // pred_check_branch
      %645 = sbr.rel (%p642) target = $region88
    $region87: #{timesfm_forward.4} parent=5 // pred_region
      %s646 = ssub.s32 %s23, 1
      %p647 = scmp.lt.s32.totalorder %s32, 1
      %s648 = scalar_select %p647, %s32, 1
      %s649 = smul.addr %s648, 8
      %s650 = scalar_lea.vmem %s0, %s649
      %p651 = pneg %p61
      %p652 = pneg %p58
      %p653 = scmp.lt.s32.totalorder %s33, 1
      %s654 = scalar_select %p653, %s33, 1
      %s655 = scalar_lea.vmem %s1, %s654
      %p656 = pneg %p87
      %p657 = pneg %p84
      %p658 = scmp.lt.s32.totalorder %s33, 1
      %s659 = scalar_select %p658, %s33, 1
      %s660 = scalar_lea.vmem %s2, %s659
      %p661 = pneg %p113
      %p662 = pneg %p110
      %p663 = scmp.lt.s32.totalorder %s33, 1
      %s664 = scalar_select %p663, %s33, 1
      %s665 = smul.addr %s664, 64
      %s666 = smul.addr %s665, 4
      %s667 = scalar_lea.vmem %s3, %s666
      %p668 = pneg %p139
      %p669 = pneg %p136
      %p670 = scmp.lt.s32.totalorder %s33, 1
      %s671 = scalar_select %p670, %s33, 1
      %s672 = smul.addr %s671, 4
      %s673 = scalar_lea.vmem %s4, %s672
      %p674 = pneg %p165
      %p675 = pneg %p162
      %p676 = scmp.lt.s32.totalorder %s33, 1
      %s677 = scalar_select %p676, %s33, 1
      %s678 = smul.addr %s677, 64
      %s679 = smul.addr %s678, 4
      %s680 = scalar_lea.vmem %s5, %s679
      %p681 = pneg %p191
      %p682 = pneg %p188
      %p683 = scmp.lt.s32.totalorder %s33, 1
      %s684 = scalar_select %p683, %s33, 1
      %s685 = smul.addr %s684, 4
      %s686 = scalar_lea.vmem %s6, %s685
      %p687 = pneg %p217
      %p688 = pneg %p214
      %p689 = scmp.lt.s32.totalorder %s33, 1
      %s690 = scalar_select %p689, %s33, 1
      %s691 = smul.addr %s690, 64
      %s692 = smul.addr %s691, 4
      %s693 = scalar_lea.vmem %s7, %s692
      %p694 = pneg %p243
      %p695 = pneg %p240
      %p696 = scmp.lt.s32.totalorder %s33, 1
      %s697 = scalar_select %p696, %s33, 1
      %s698 = smul.addr %s697, 4
      %s699 = scalar_lea.vmem %s8, %s698
      %p700 = pneg %p269
      %p701 = pneg %p266
      %p702 = scmp.lt.s32.totalorder %s33, 1
      %s703 = scalar_select %p702, %s33, 1
      %s704 = smul.addr %s703, 16
      %s705 = smul.addr %s704, 4
      %s706 = scalar_lea.vmem %s9, %s705
      %p707 = pneg %p295
      %p708 = pneg %p292
      %p709 = scmp.lt.s32.totalorder %s33, 1
      %s710 = scalar_select %p709, %s33, 1
      %s711 = scalar_lea.vmem %s10, %s710
      %p712 = pneg %p321
      %p713 = pneg %p318
      %p714 = scmp.lt.s32.totalorder %s33, 1
      %s715 = scalar_select %p714, %s33, 1
      %s716 = scalar_lea.vmem %s11, %s715
      %p717 = pneg %p347
      %p718 = pneg %p344
      %p719 = scmp.lt.s32.totalorder %s33, 1
      %s720 = scalar_select %p719, %s33, 1
      %s721 = scalar_lea.vmem %s12, %s720
      %p722 = pneg %p373
      %p723 = pneg %p370
      %p724 = scmp.lt.s32.totalorder %s33, 1
      %s725 = scalar_select %p724, %s33, 1
      %s726 = smul.addr %s725, 16
      %s727 = smul.addr %s726, 4
      %s728 = scalar_lea.vmem %s13, %s727
      %p729 = pneg %p399
      %p730 = pneg %p396
      %p731 = scmp.lt.s32.totalorder %s33, 1
      %s732 = scalar_select %p731, %s33, 1
      %s733 = scalar_lea.vmem %s14, %s732
      %p734 = pneg %p425
      %p735 = pneg %p422
      %p736 = scmp.lt.s32.totalorder %s33, 1
      %s737 = scalar_select %p736, %s33, 1
      %s738 = smul.addr %s737, 16
      %s739 = smul.addr %s738, 4
      %s740 = scalar_lea.vmem %s15, %s739
      %p741 = pneg %p451
      %p742 = pneg %p448
      %p743 = scmp.lt.s32.totalorder %s33, 1
      %s744 = scalar_select %p743, %s33, 1
      %s745 = scalar_lea.vmem %s16, %s744
      %p746 = pneg %p477
      %p747 = pneg %p474
      %p748 = pneg %p503
      %p749 = pneg %p500
      %p750 = scmp.lt.s32.totalorder %s32, 1
      %s751 = scalar_select %p750, %s32, 1
      %s752 = smul.addr %s751, 8
      %s753 = scalar_lea.vmem %s17, %s752
      %p754 = scmp.lt.s32.totalorder %s32, 1
      %s755 = scalar_select %p754, %s32, 1
      %s756 = smul.addr %s755, 8
      %s757 = scalar_lea.vmem %s0, %s756
      %p758 = scmp.lt.s32.totalorder %s33, 1
      %s759 = scalar_select %p758, %s33, 1
      %s760 = scalar_lea.vmem %s1, %s759
      %p761 = scmp.lt.s32.totalorder %s33, 1
      %s762 = scalar_select %p761, %s33, 1
      %s763 = scalar_lea.vmem %s2, %s762
      %p764 = scmp.lt.s32.totalorder %s33, 1
      %s765 = scalar_select %p764, %s33, 1
      %s766 = smul.addr %s765, 64
      %s767 = smul.addr %s766, 4
      %s768 = scalar_lea.vmem %s3, %s767
      %p769 = scmp.lt.s32.totalorder %s33, 1
      %s770 = scalar_select %p769, %s33, 1
      %s771 = smul.addr %s770, 4
      %s772 = scalar_lea.vmem %s4, %s771
      %p773 = scmp.lt.s32.totalorder %s33, 1
      %s774 = scalar_select %p773, %s33, 1
      %s775 = smul.addr %s774, 64
      %s776 = smul.addr %s775, 4
      %s777 = scalar_lea.vmem %s5, %s776
      %p778 = scmp.lt.s32.totalorder %s33, 1
      %s779 = scalar_select %p778, %s33, 1
      %s780 = smul.addr %s779, 4
      %s781 = scalar_lea.vmem %s6, %s780
      %p782 = scmp.lt.s32.totalorder %s33, 1
      %s783 = scalar_select %p782, %s33, 1
      %s784 = smul.addr %s783, 64
      %s785 = smul.addr %s784, 4
      %s786 = scalar_lea.vmem %s7, %s785
      %p787 = scmp.lt.s32.totalorder %s33, 1
      %s788 = scalar_select %p787, %s33, 1
      %s789 = smul.addr %s788, 4
      %s790 = scalar_lea.vmem %s8, %s789
      %p791 = scmp.lt.s32.totalorder %s33, 1
      %s792 = scalar_select %p791, %s33, 1
      %s793 = smul.addr %s792, 16
      %s794 = smul.addr %s793, 4
      %s795 = scalar_lea.vmem %s9, %s794
      %p796 = scmp.lt.s32.totalorder %s33, 1
      %s797 = scalar_select %p796, %s33, 1
      %s798 = scalar_lea.vmem %s10, %s797
      %p799 = scmp.lt.s32.totalorder %s33, 1
      %s800 = scalar_select %p799, %s33, 1
      %s801 = scalar_lea.vmem %s11, %s800
      %p802 = scmp.lt.s32.totalorder %s33, 1
      %s803 = scalar_select %p802, %s33, 1
      %s804 = scalar_lea.vmem %s12, %s803
      %p805 = scmp.lt.s32.totalorder %s33, 1
      %s806 = scalar_select %p805, %s33, 1
      %s807 = smul.addr %s806, 16
      %s808 = smul.addr %s807, 4
      %s809 = scalar_lea.vmem %s13, %s808
      %p810 = scmp.lt.s32.totalorder %s33, 1
      %s811 = scalar_select %p810, %s33, 1
      %s812 = scalar_lea.vmem %s14, %s811
      %p813 = scmp.lt.s32.totalorder %s33, 1
      %s814 = scalar_select %p813, %s33, 1
      %s815 = smul.addr %s814, 16
      %s816 = smul.addr %s815, 4
      %s817 = scalar_lea.vmem %s15, %s816
      %p818 = scmp.lt.s32.totalorder %s33, 1
      %s819 = scalar_select %p818, %s33, 1
      %s820 = scalar_lea.vmem %s16, %s819
      %p821 = scmp.lt.s32.totalorder %s32, 1
      %s822 = scalar_select %p821, %s32, 1
      %s823 = smul.addr %s822, 8
      %s824 = scalar_lea.vmem %s17, %s823
      %p826 = scmp.eq.s32.totalorder %s33, 0
      // Predicated region
      $region89: #{timesfm_forward.4} parent=87 // pred_check
        %p827 = pneg %p826
      $region90: #{timesfm_forward.4} parent=87 // pred_check_branch
        %829 = sbr.rel (%p827) target = $region92
      $region91: #{timesfm_forward.4} parent=87 // pred_region
        %v830 = vld [vmem:[%s757] sm:$0xff]
        %831 = vst [vmem:[%s824] sm:$0xff] %v830
      $region92: #{timesfm_forward.4} parent=87 // pred_fallthru
        _
      %v832 = vld [vmem:[%s824] sm:$0xff]
      %833 = vadd.xlane.f32.xlu0 %v832
      %v834 = vpop.xlane.xlu0 %833
      %v835 = vrcp.pop 128.0
      %v836 = vmul.f32 128.0, %v835
      %v837 = vsub.f32 1.0, %v836
      %v838 = vmul.f32 %v835, %v837
      %v839 = vadd.f32 %v835, %v838
      %vm840 = vweird.f32 %v835
      %v841 = vsel %vm840, %v835, %v839
      %v842 = vmul.f32 %v834, %v841
      %v843 = vsub.f32 %v832, %v842
      %v844 = vmul.f32 %v843, %v843
      %845 = vadd.xlane.f32.xlu0 %v844
      %v846 = vpop.xlane.xlu0 %845
      %v847 = vmul.f32 %v846, %v841
      %v848 = vadd.f32 %v847, 1e-06
      %v849 = vrsqrt.pop %v848
      %v850 = vmul.f32 %v849, %v848
      %v851 = vmul.f32 %v850, %v849
      %v852 = vmul.f32 0.5, %v851
      %v853 = vsub.f32 1.5, %v852
      %v854 = vmul.f32 %v849, %v853
      %vm855 = vweird.f32 %v848
      %vm856 = vweird.f32 %v849
      %vm857 = vmor %vm855, %vm856
      %v858 = vsel %vm857, %v849, %v854
      %v859 = vmul.f32 %v843, %v858
      %v860 = vld [vmem:[%s760] sm:$0x1]
      %v862 = vperm.slane %v860, 0
      %v864 = vmul.f32 %v859, %v862
      %v865 = vld [vmem:[%s763] sm:$0x1]
      %v867 = vperm.slane %v865, 0
      %v869 = vadd.f32 %v864, %v867
      %v870 = vpack.c.bf16 %v869, %v869
      %v871 = vld [vmem:[%s768] sm:$0xf]
      %v872 = vld [vmem:[%s768 + $0x4] sm:$0xf]
      %v873 = vld [vmem:[%s768 + $0x8] sm:$0xf]
      %v874 = vld [vmem:[%s768 + $0xc] sm:$0xf]
      %v875 = vld [vmem:[%s768 + $0x10] sm:$0xf]
      %v876 = vld [vmem:[%s768 + $0x14] sm:$0xf]
      %v877 = vld [vmem:[%s768 + $0x18] sm:$0xf]
      %v878 = vld [vmem:[%s768 + $0x1c] sm:$0xf]
      %v879 = vld [vmem:[%s768 + $0x20] sm:$0xf]
      %v880 = vld [vmem:[%s768 + $0x24] sm:$0xf]
      %v881 = vld [vmem:[%s768 + $0x28] sm:$0xf]
      %v882 = vld [vmem:[%s768 + $0x2c] sm:$0xf]
      %v883 = vld [vmem:[%s768 + $0x30] sm:$0xf]
      %v884 = vld [vmem:[%s768 + $0x34] sm:$0xf]
      %v885 = vld [vmem:[%s768 + $0x38] sm:$0xf]
      %v886 = vld [vmem:[%s768 + $0x3c] sm:$0xf]
      %v887 = vld [vmem:[%s768 + $0x40] sm:$0xf]
      %v888 = vld [vmem:[%s768 + $0x44] sm:$0xf]
      %v889 = vld [vmem:[%s768 + $0x48] sm:$0xf]
      %v890 = vld [vmem:[%s768 + $0x4c] sm:$0xf]
      %v891 = vld [vmem:[%s768 + $0x50] sm:$0xf]
      %v892 = vld [vmem:[%s768 + $0x54] sm:$0xf]
      %v893 = vld [vmem:[%s768 + $0x58] sm:$0xf]
      %v894 = vld [vmem:[%s768 + $0x5c] sm:$0xf]
      %v895 = vld [vmem:[%s768 + $0x60] sm:$0xf]
      %v896 = vld [vmem:[%s768 + $0x64] sm:$0xf]
      %v897 = vld [vmem:[%s768 + $0x68] sm:$0xf]
      %v898 = vld [vmem:[%s768 + $0x6c] sm:$0xf]
      %v899 = vld [vmem:[%s768 + $0x70] sm:$0xf]
      %v900 = vld [vmem:[%s768 + $0x74] sm:$0xf]
      %v901 = vld [vmem:[%s768 + $0x78] sm:$0xf]
      %v902 = vld [vmem:[%s768 + $0x7c] sm:$0xf]
      %v903 = vld [vmem:[%s768 + $0x80] sm:$0xf]
      %v904 = vld [vmem:[%s768 + $0x84] sm:$0xf]
      %v905 = vld [vmem:[%s768 + $0x88] sm:$0xf]
      %v906 = vld [vmem:[%s768 + $0x8c] sm:$0xf]
      %v907 = vld [vmem:[%s768 + $0x90] sm:$0xf]
      %v908 = vld [vmem:[%s768 + $0x94] sm:$0xf]
      %v909 = vld [vmem:[%s768 + $0x98] sm:$0xf]
      %v910 = vld [vmem:[%s768 + $0x9c] sm:$0xf]
      %v911 = vld [vmem:[%s768 + $0xa0] sm:$0xf]
      %v912 = vld [vmem:[%s768 + $0xa4] sm:$0xf]
      %v913 = vld [vmem:[%s768 + $0xa8] sm:$0xf]
      %v914 = vld [vmem:[%s768 + $0xac] sm:$0xf]
      %v915 = vld [vmem:[%s768 + $0xb0] sm:$0xf]
      %v916 = vld [vmem:[%s768 + $0xb4] sm:$0xf]
      %v917 = vld [vmem:[%s768 + $0xb8] sm:$0xf]
      %v918 = vld [vmem:[%s768 + $0xbc] sm:$0xf]
      %v919 = vld [vmem:[%s768 + $0xc0] sm:$0xf]
      %v920 = vld [vmem:[%s768 + $0xc4] sm:$0xf]
      %v921 = vld [vmem:[%s768 + $0xc8] sm:$0xf]
      %v922 = vld [vmem:[%s768 + $0xcc] sm:$0xf]
      %v923 = vld [vmem:[%s768 + $0xd0] sm:$0xf]
      %v924 = vld [vmem:[%s768 + $0xd4] sm:$0xf]
      %v925 = vld [vmem:[%s768 + $0xd8] sm:$0xf]
      %v926 = vld [vmem:[%s768 + $0xdc] sm:$0xf]
      %v927 = vld [vmem:[%s768 + $0xe0] sm:$0xf]
      %v928 = vld [vmem:[%s768 + $0xe4] sm:$0xf]
      %v929 = vld [vmem:[%s768 + $0xe8] sm:$0xf]
      %v930 = vld [vmem:[%s768 + $0xec] sm:$0xf]
      %v931 = vld [vmem:[%s768 + $0xf0] sm:$0xf]
      %v932 = vld [vmem:[%s768 + $0xf4] sm:$0xf]
      %v933 = vld [vmem:[%s768 + $0xf8] sm:$0xf]
      %v934 = vld [vmem:[%s768 + $0xfc] sm:$0xf]
      %v935 = vld [vmem:[%s772] sm:$0x1]
      %v936 = vld [vmem:[%s772 + $0x1] sm:$0x1]
      %v937 = vld [vmem:[%s772 + $0x2] sm:$0x1]
      %v938 = vld [vmem:[%s772 + $0x3] sm:$0x1]
      %v943 = vperm.slane %v935, 0
      %v944 = vperm.slane %v936, 0
      %v945 = vperm.slane %v937, 0
      %v946 = vperm.slane %v938, 0
      %v967 = vunpack.c.l.b16 %v871
      %v968 = vunpack.c.l.b16 %v872
      %v969 = vunpack.c.l.b16 %v873
      %v970 = vunpack.c.l.b16 %v874
      %v971 = vunpack.c.l.b16 %v875
      %v972 = vunpack.c.l.b16 %v876
      %v973 = vunpack.c.l.b16 %v877
      %v974 = vunpack.c.l.b16 %v878
      %v975 = vunpack.c.l.b16 %v879
      %v976 = vunpack.c.l.b16 %v880
      %v977 = vunpack.c.l.b16 %v881
      %v978 = vunpack.c.l.b16 %v882
      %v979 = vunpack.c.l.b16 %v883
      %v980 = vunpack.c.l.b16 %v884
      %v981 = vunpack.c.l.b16 %v885
      %v982 = vunpack.c.l.b16 %v886
      %v983 = vpack.c.b16 %v968, %v967
      %v984 = vpack.c.b16 %v970, %v969
      %v985 = vpack.c.b16 %v972, %v971
      %v986 = vpack.c.b16 %v974, %v973
      %v987 = vpack.c.b16 %v976, %v975
      %v988 = vpack.c.b16 %v978, %v977
      %v989 = vpack.c.b16 %v980, %v979
      %v990 = vpack.c.b16 %v982, %v981
      %999 = vmatpush.bf16.msra.mxu0 %v990
      %1000 = vmatpush.bf16.msra.mxu0 %v989
      %1001 = vmatpush.bf16.msra.mxu0 %v988
      %1002 = vmatpush.bf16.msra.mxu0 %v987
      %1003 = vmatpush.bf16.msra.mxu0 %v986
      %1004 = vmatpush.bf16.msra.mxu0 %v985
      %1005 = vmatpush.bf16.msra.mxu0 %v984
      %1006 = vmatpush.bf16.msra.mxu0 %v983
      %1007 = vmatmul.bf16.gmra.mxu0 %v870
      %v1008 = vpop.f32.mrf.mxu0
      %v1009 = vadd.f32 %v943, %v1008
      %v1010 = vpop.f32.mrf.mxu0
      %1011 = vdwg.mxu0
      %v1028 = vunpack.c.l.b16 %v887
      %v1029 = vunpack.c.l.b16 %v888
      %v1030 = vunpack.c.l.b16 %v889
      %v1031 = vunpack.c.l.b16 %v890
      %v1032 = vunpack.c.l.b16 %v891
      %v1033 = vunpack.c.l.b16 %v892
      %v1034 = vunpack.c.l.b16 %v893
      %v1035 = vunpack.c.l.b16 %v894
      %v1036 = vunpack.c.l.b16 %v895
      %v1037 = vunpack.c.l.b16 %v896
      %v1038 = vunpack.c.l.b16 %v897
      %v1039 = vunpack.c.l.b16 %v898
      %v1040 = vunpack.c.l.b16 %v899
      %v1041 = vunpack.c.l.b16 %v900
      %v1042 = vunpack.c.l.b16 %v901
      %v1043 = vunpack.c.l.b16 %v902
      %v1044 = vpack.c.b16 %v1029, %v1028
      %v1045 = vpack.c.b16 %v1031, %v1030
      %v1046 = vpack.c.b16 %v1033, %v1032
      %v1047 = vpack.c.b16 %v1035, %v1034
      %v1048 = vpack.c.b16 %v1037, %v1036
      %v1049 = vpack.c.b16 %v1039, %v1038
      %v1050 = vpack.c.b16 %v1041, %v1040
      %v1051 = vpack.c.b16 %v1043, %v1042
      %1060 = vmatpush.bf16.msra.mxu0 %v1051
      %1061 = vmatpush.bf16.msra.mxu0 %v1050
      %1062 = vmatpush.bf16.msra.mxu0 %v1049
      %1063 = vmatpush.bf16.msra.mxu0 %v1048
      %1064 = vmatpush.bf16.msra.mxu0 %v1047
      %1065 = vmatpush.bf16.msra.mxu0 %v1046
      %1066 = vmatpush.bf16.msra.mxu0 %v1045
      %1067 = vmatpush.bf16.msra.mxu0 %v1044
      %1068 = vmatmul.bf16.gmra.mxu0 %v870
      %v1069 = vpop.f32.mrf.mxu0
      %v1070 = vadd.f32 %v944, %v1069
      %v1071 = vpop.f32.mrf.mxu0
      %1072 = vdwg.mxu0
      %v1089 = vunpack.c.l.b16 %v903
      %v1090 = vunpack.c.l.b16 %v904
      %v1091 = vunpack.c.l.b16 %v905
      %v1092 = vunpack.c.l.b16 %v906
      %v1093 = vunpack.c.l.b16 %v907
      %v1094 = vunpack.c.l.b16 %v908
      %v1095 = vunpack.c.l.b16 %v909
      %v1096 = vunpack.c.l.b16 %v910
      %v1097 = vunpack.c.l.b16 %v911
      %v1098 = vunpack.c.l.b16 %v912
      %v1099 = vunpack.c.l.b16 %v913
      %v1100 = vunpack.c.l.b16 %v914
      %v1101 = vunpack.c.l.b16 %v915
      %v1102 = vunpack.c.l.b16 %v916
      %v1103 = vunpack.c.l.b16 %v917
      %v1104 = vunpack.c.l.b16 %v918
      %v1105 = vpack.c.b16 %v1090, %v1089
      %v1106 = vpack.c.b16 %v1092, %v1091
      %v1107 = vpack.c.b16 %v1094, %v1093
      %v1108 = vpack.c.b16 %v1096, %v1095
      %v1109 = vpack.c.b16 %v1098, %v1097
      %v1110 = vpack.c.b16 %v1100, %v1099
      %v1111 = vpack.c.b16 %v1102, %v1101
      %v1112 = vpack.c.b16 %v1104, %v1103
      %1121 = vmatpush.bf16.msra.mxu0 %v1112
      %1122 = vmatpush.bf16.msra.mxu0 %v1111
      %1123 = vmatpush.bf16.msra.mxu0 %v1110
      %1124 = vmatpush.bf16.msra.mxu0 %v1109
      %1125 = vmatpush.bf16.msra.mxu0 %v1108
      %1126 = vmatpush.bf16.msra.mxu0 %v1107
      %1127 = vmatpush.bf16.msra.mxu0 %v1106
      %1128 = vmatpush.bf16.msra.mxu0 %v1105
      %1129 = vmatmul.bf16.gmra.mxu0 %v870
      %v1130 = vpop.f32.mrf.mxu0
      %v1131 = vadd.f32 %v945, %v1130
      %v1132 = vpop.f32.mrf.mxu0
      %1133 = vdwg.mxu0
      %v1150 = vunpack.c.l.b16 %v919
      %v1151 = vunpack.c.l.b16 %v920
      %v1152 = vunpack.c.l.b16 %v921
      %v1153 = vunpack.c.l.b16 %v922
      %v1154 = vunpack.c.l.b16 %v923
      %v1155 = vunpack.c.l.b16 %v924
      %v1156 = vunpack.c.l.b16 %v925
      %v1157 = vunpack.c.l.b16 %v926
      %v1158 = vunpack.c.l.b16 %v927
      %v1159 = vunpack.c.l.b16 %v928
      %v1160 = vunpack.c.l.b16 %v929
      %v1161 = vunpack.c.l.b16 %v930
      %v1162 = vunpack.c.l.b16 %v931
      %v1163 = vunpack.c.l.b16 %v932
      %v1164 = vunpack.c.l.b16 %v933
      %v1165 = vunpack.c.l.b16 %v934
      %v1166 = vpack.c.b16 %v1151, %v1150
      %v1167 = vpack.c.b16 %v1153, %v1152
      %v1168 = vpack.c.b16 %v1155, %v1154
      %v1169 = vpack.c.b16 %v1157, %v1156
      %v1170 = vpack.c.b16 %v1159, %v1158
      %v1171 = vpack.c.b16 %v1161, %v1160
      %v1172 = vpack.c.b16 %v1163, %v1162
      %v1173 = vpack.c.b16 %v1165, %v1164
      %1182 = vmatpush.bf16.msra.mxu0 %v1173
      %1183 = vmatpush.bf16.msra.mxu0 %v1172
      %1184 = vmatpush.bf16.msra.mxu0 %v1171
      %1185 = vmatpush.bf16.msra.mxu0 %v1170
      %1186 = vmatpush.bf16.msra.mxu0 %v1169
      %1187 = vmatpush.bf16.msra.mxu0 %v1168
      %1188 = vmatpush.bf16.msra.mxu0 %v1167
      %1189 = vmatpush.bf16.msra.mxu0 %v1166
      %1190 = vmatmul.bf16.gmra.mxu0 %v870
      %v1191 = vpop.f32.mrf.mxu0
      %v1192 = vadd.f32 %v946, %v1191
      %v1193 = vpop.f32.mrf.mxu0
      %1194 = vdwg.mxu0
      %v1195 = vld [vmem:[%s777] sm:$0xf]
      %v1196 = vld [vmem:[%s777 + $0x4] sm:$0xf]
      %v1197 = vld [vmem:[%s777 + $0x8] sm:$0xf]
      %v1198 = vld [vmem:[%s777 + $0xc] sm:$0xf]
      %v1199 = vld [vmem:[%s777 + $0x10] sm:$0xf]
      %v1200 = vld [vmem:[%s777 + $0x14] sm:$0xf]
      %v1201 = vld [vmem:[%s777 + $0x18] sm:$0xf]
      %v1202 = vld [vmem:[%s777 + $0x1c] sm:$0xf]
      %v1203 = vld [vmem:[%s777 + $0x20] sm:$0xf]
      %v1204 = vld [vmem:[%s777 + $0x24] sm:$0xf]
      %v1205 = vld [vmem:[%s777 + $0x28] sm:$0xf]
      %v1206 = vld [vmem:[%s777 + $0x2c] sm:$0xf]
      %v1207 = vld [vmem:[%s777 + $0x30] sm:$0xf]
      %v1208 = vld [vmem:[%s777 + $0x34] sm:$0xf]
      %v1209 = vld [vmem:[%s777 + $0x38] sm:$0xf]
      %v1210 = vld [vmem:[%s777 + $0x3c] sm:$0xf]
      %v1211 = vld [vmem:[%s777 + $0x40] sm:$0xf]
      %v1212 = vld [vmem:[%s777 + $0x44] sm:$0xf]
      %v1213 = vld [vmem:[%s777 + $0x48] sm:$0xf]
      %v1214 = vld [vmem:[%s777 + $0x4c] sm:$0xf]
      %v1215 = vld [vmem:[%s777 + $0x50] sm:$0xf]
      %v1216 = vld [vmem:[%s777 + $0x54] sm:$0xf]
      %v1217 = vld [vmem:[%s777 + $0x58] sm:$0xf]
      %v1218 = vld [vmem:[%s777 + $0x5c] sm:$0xf]
      %v1219 = vld [vmem:[%s777 + $0x60] sm:$0xf]
      %v1220 = vld [vmem:[%s777 + $0x64] sm:$0xf]
      %v1221 = vld [vmem:[%s777 + $0x68] sm:$0xf]
      %v1222 = vld [vmem:[%s777 + $0x6c] sm:$0xf]
      %v1223 = vld [vmem:[%s777 + $0x70] sm:$0xf]
      %v1224 = vld [vmem:[%s777 + $0x74] sm:$0xf]
      %v1225 = vld [vmem:[%s777 + $0x78] sm:$0xf]
      %v1226 = vld [vmem:[%s777 + $0x7c] sm:$0xf]
      %v1227 = vld [vmem:[%s777 + $0x80] sm:$0xf]
      %v1228 = vld [vmem:[%s777 + $0x84] sm:$0xf]
      %v1229 = vld [vmem:[%s777 + $0x88] sm:$0xf]
      %v1230 = vld [vmem:[%s777 + $0x8c] sm:$0xf]
      %v1231 = vld [vmem:[%s777 + $0x90] sm:$0xf]
      %v1232 = vld [vmem:[%s777 + $0x94] sm:$0xf]
      %v1233 = vld [vmem:[%s777 + $0x98] sm:$0xf]
      %v1234 = vld [vmem:[%s777 + $0x9c] sm:$0xf]
      %v1235 = vld [vmem:[%s777 + $0xa0] sm:$0xf]
      %v1236 = vld [vmem:[%s777 + $0xa4] sm:$0xf]
      %v1237 = vld [vmem:[%s777 + $0xa8] sm:$0xf]
      %v1238 = vld [vmem:[%s777 + $0xac] sm:$0xf]
      %v1239 = vld [vmem:[%s777 + $0xb0] sm:$0xf]
      %v1240 = vld [vmem:[%s777 + $0xb4] sm:$0xf]
      %v1241 = vld [vmem:[%s777 + $0xb8] sm:$0xf]
      %v1242 = vld [vmem:[%s777 + $0xbc] sm:$0xf]
      %v1243 = vld [vmem:[%s777 + $0xc0] sm:$0xf]
      %v1244 = vld [vmem:[%s777 + $0xc4] sm:$0xf]
      %v1245 = vld [vmem:[%s777 + $0xc8] sm:$0xf]
      %v1246 = vld [vmem:[%s777 + $0xcc] sm:$0xf]
      %v1247 = vld [vmem:[%s777 + $0xd0] sm:$0xf]
      %v1248 = vld [vmem:[%s777 + $0xd4] sm:$0xf]
      %v1249 = vld [vmem:[%s777 + $0xd8] sm:$0xf]
      %v1250 = vld [vmem:[%s777 + $0xdc] sm:$0xf]
      %v1251 = vld [vmem:[%s777 + $0xe0] sm:$0xf]
      %v1252 = vld [vmem:[%s777 + $0xe4] sm:$0xf]
      %v1253 = vld [vmem:[%s777 + $0xe8] sm:$0xf]
      %v1254 = vld [vmem:[%s777 + $0xec] sm:$0xf]
      %v1255 = vld [vmem:[%s777 + $0xf0] sm:$0xf]
      %v1256 = vld [vmem:[%s777 + $0xf4] sm:$0xf]
      %v1257 = vld [vmem:[%s777 + $0xf8] sm:$0xf]
      %v1258 = vld [vmem:[%s777 + $0xfc] sm:$0xf]
      %v1259 = vld [vmem:[%s781] sm:$0x1]
      %v1260 = vld [vmem:[%s781 + $0x1] sm:$0x1]
      %v1261 = vld [vmem:[%s781 + $0x2] sm:$0x1]
      %v1262 = vld [vmem:[%s781 + $0x3] sm:$0x1]
      %v1267 = vperm.slane %v1259, 0
      %v1268 = vperm.slane %v1260, 0
      %v1269 = vperm.slane %v1261, 0
      %v1270 = vperm.slane %v1262, 0
      %v1291 = vunpack.c.l.b16 %v1195
      %v1292 = vunpack.c.l.b16 %v1196
      %v1293 = vunpack.c.l.b16 %v1197
      %v1294 = vunpack.c.l.b16 %v1198
      %v1295 = vunpack.c.l.b16 %v1199
      %v1296 = vunpack.c.l.b16 %v1200
      %v1297 = vunpack.c.l.b16 %v1201
      %v1298 = vunpack.c.l.b16 %v1202
      %v1299 = vunpack.c.l.b16 %v1203
      %v1300 = vunpack.c.l.b16 %v1204
      %v1301 = vunpack.c.l.b16 %v1205
      %v1302 = vunpack.c.l.b16 %v1206
      %v1303 = vunpack.c.l.b16 %v1207
      %v1304 = vunpack.c.l.b16 %v1208
      %v1305 = vunpack.c.l.b16 %v1209
      %v1306 = vunpack.c.l.b16 %v1210
      %v1307 = vpack.c.b16 %v1292, %v1291
      %v1308 = vpack.c.b16 %v1294, %v1293
      %v1309 = vpack.c.b16 %v1296, %v1295
      %v1310 = vpack.c.b16 %v1298, %v1297
      %v1311 = vpack.c.b16 %v1300, %v1299
      %v1312 = vpack.c.b16 %v1302, %v1301
      %v1313 = vpack.c.b16 %v1304, %v1303
      %v1314 = vpack.c.b16 %v1306, %v1305
      %1323 = vmatpush.bf16.msra.mxu0 %v1314
      %1324 = vmatpush.bf16.msra.mxu0 %v1313
      %1325 = vmatpush.bf16.msra.mxu0 %v1312
      %1326 = vmatpush.bf16.msra.mxu0 %v1311
      %1327 = vmatpush.bf16.msra.mxu0 %v1310
      %1328 = vmatpush.bf16.msra.mxu0 %v1309
      %1329 = vmatpush.bf16.msra.mxu0 %v1308
      %1330 = vmatpush.bf16.msra.mxu0 %v1307
      %1331 = vmatmul.bf16.gmra.mxu0 %v870
      %v1332 = vpop.f32.mrf.mxu0
      %v1333 = vadd.f32 %v1267, %v1332
      %v1334 = vpop.f32.mrf.mxu0
      %1335 = vdwg.mxu0
      %v1352 = vunpack.c.l.b16 %v1211
      %v1353 = vunpack.c.l.b16 %v1212
      %v1354 = vunpack.c.l.b16 %v1213
      %v1355 = vunpack.c.l.b16 %v1214
      %v1356 = vunpack.c.l.b16 %v1215
      %v1357 = vunpack.c.l.b16 %v1216
      %v1358 = vunpack.c.l.b16 %v1217
      %v1359 = vunpack.c.l.b16 %v1218
      %v1360 = vunpack.c.l.b16 %v1219
      %v1361 = vunpack.c.l.b16 %v1220
      %v1362 = vunpack.c.l.b16 %v1221
      %v1363 = vunpack.c.l.b16 %v1222
      %v1364 = vunpack.c.l.b16 %v1223
      %v1365 = vunpack.c.l.b16 %v1224
      %v1366 = vunpack.c.l.b16 %v1225
      %v1367 = vunpack.c.l.b16 %v1226
      %v1368 = vpack.c.b16 %v1353, %v1352
      %v1369 = vpack.c.b16 %v1355, %v1354
      %v1370 = vpack.c.b16 %v1357, %v1356
      %v1371 = vpack.c.b16 %v1359, %v1358
      %v1372 = vpack.c.b16 %v1361, %v1360
      %v1373 = vpack.c.b16 %v1363, %v1362
      %v1374 = vpack.c.b16 %v1365, %v1364
      %v1375 = vpack.c.b16 %v1367, %v1366
      %1384 = vmatpush.bf16.msra.mxu0 %v1375
      %1385 = vmatpush.bf16.msra.mxu0 %v1374
      %1386 = vmatpush.bf16.msra.mxu0 %v1373
      %1387 = vmatpush.bf16.msra.mxu0 %v1372
      %1388 = vmatpush.bf16.msra.mxu0 %v1371
      %1389 = vmatpush.bf16.msra.mxu0 %v1370
      %1390 = vmatpush.bf16.msra.mxu0 %v1369
      %1391 = vmatpush.bf16.msra.mxu0 %v1368
      %1392 = vmatmul.bf16.gmra.mxu0 %v870
      %v1393 = vpop.f32.mrf.mxu0
      %v1394 = vadd.f32 %v1268, %v1393
      %v1395 = vpop.f32.mrf.mxu0
      %1396 = vdwg.mxu0
      %v1413 = vunpack.c.l.b16 %v1227
      %v1414 = vunpack.c.l.b16 %v1228
      %v1415 = vunpack.c.l.b16 %v1229
      %v1416 = vunpack.c.l.b16 %v1230
      %v1417 = vunpack.c.l.b16 %v1231
      %v1418 = vunpack.c.l.b16 %v1232
      %v1419 = vunpack.c.l.b16 %v1233
      %v1420 = vunpack.c.l.b16 %v1234
      %v1421 = vunpack.c.l.b16 %v1235
      %v1422 = vunpack.c.l.b16 %v1236
      %v1423 = vunpack.c.l.b16 %v1237
      %v1424 = vunpack.c.l.b16 %v1238
      %v1425 = vunpack.c.l.b16 %v1239
      %v1426 = vunpack.c.l.b16 %v1240
      %v1427 = vunpack.c.l.b16 %v1241
      %v1428 = vunpack.c.l.b16 %v1242
      %v1429 = vpack.c.b16 %v1414, %v1413
      %v1430 = vpack.c.b16 %v1416, %v1415
      %v1431 = vpack.c.b16 %v1418, %v1417
      %v1432 = vpack.c.b16 %v1420, %v1419
      %v1433 = vpack.c.b16 %v1422, %v1421
      %v1434 = vpack.c.b16 %v1424, %v1423
      %v1435 = vpack.c.b16 %v1426, %v1425
      %v1436 = vpack.c.b16 %v1428, %v1427
      %1445 = vmatpush.bf16.msra.mxu0 %v1436
      %1446 = vmatpush.bf16.msra.mxu0 %v1435
      %1447 = vmatpush.bf16.msra.mxu0 %v1434
      %1448 = vmatpush.bf16.msra.mxu0 %v1433
      %1449 = vmatpush.bf16.msra.mxu0 %v1432
      %1450 = vmatpush.bf16.msra.mxu0 %v1431
      %1451 = vmatpush.bf16.msra.mxu0 %v1430
      %1452 = vmatpush.bf16.msra.mxu0 %v1429
      %1453 = vmatmul.bf16.gmra.mxu0 %v870
      %v1454 = vpop.f32.mrf.mxu0
      %v1455 = vadd.f32 %v1269, %v1454
      %v1456 = vpop.f32.mrf.mxu0
      %1457 = vdwg.mxu0
      %v1474 = vunpack.c.l.b16 %v1243
      %v1475 = vunpack.c.l.b16 %v1244
      %v1476 = vunpack.c.l.b16 %v1245
      %v1477 = vunpack.c.l.b16 %v1246
      %v1478 = vunpack.c.l.b16 %v1247
      %v1479 = vunpack.c.l.b16 %v1248
      %v1480 = vunpack.c.l.b16 %v1249
      %v1481 = vunpack.c.l.b16 %v1250
      %v1482 = vunpack.c.l.b16 %v1251
      %v1483 = vunpack.c.l.b16 %v1252
      %v1484 = vunpack.c.l.b16 %v1253
      %v1485 = vunpack.c.l.b16 %v1254
      %v1486 = vunpack.c.l.b16 %v1255
      %v1487 = vunpack.c.l.b16 %v1256
      %v1488 = vunpack.c.l.b16 %v1257
      %v1489 = vunpack.c.l.b16 %v1258
      %v1490 = vpack.c.b16 %v1475, %v1474
      %v1491 = vpack.c.b16 %v1477, %v1476
      %v1492 = vpack.c.b16 %v1479, %v1478
      %v1493 = vpack.c.b16 %v1481, %v1480
      %v1494 = vpack.c.b16 %v1483, %v1482
      %v1495 = vpack.c.b16 %v1485, %v1484
      %v1496 = vpack.c.b16 %v1487, %v1486
      %v1497 = vpack.c.b16 %v1489, %v1488
      %1506 = vmatpush.bf16.msra.mxu0 %v1497
      %1507 = vmatpush.bf16.msra.mxu0 %v1496
      %1508 = vmatpush.bf16.msra.mxu0 %v1495
      %1509 = vmatpush.bf16.msra.mxu0 %v1494
      %1510 = vmatpush.bf16.msra.mxu0 %v1493
      %1511 = vmatpush.bf16.msra.mxu0 %v1492
      %1512 = vmatpush.bf16.msra.mxu0 %v1491
      %1513 = vmatpush.bf16.msra.mxu0 %v1490
      %1514 = vmatmul.bf16.gmra.mxu0 %v870
      %v1515 = vpop.f32.mrf.mxu0
      %v1516 = vadd.f32 %v1270, %v1515
      %v1517 = vpop.f32.mrf.mxu0
      %1518 = vdwg.mxu0
      %v1519 = vld [vmem:[%s786] sm:$0xf]
      %v1520 = vld [vmem:[%s786 + $0x4] sm:$0xf]
      %v1521 = vld [vmem:[%s786 + $0x8] sm:$0xf]
      %v1522 = vld [vmem:[%s786 + $0xc] sm:$0xf]
      %v1523 = vld [vmem:[%s786 + $0x10] sm:$0xf]
      %v1524 = vld [vmem:[%s786 + $0x14] sm:$0xf]
      %v1525 = vld [vmem:[%s786 + $0x18] sm:$0xf]
      %v1526 = vld [vmem:[%s786 + $0x1c] sm:$0xf]
      %v1527 = vld [vmem:[%s786 + $0x20] sm:$0xf]
      %v1528 = vld [vmem:[%s786 + $0x24] sm:$0xf]
      %v1529 = vld [vmem:[%s786 + $0x28] sm:$0xf]
      %v1530 = vld [vmem:[%s786 + $0x2c] sm:$0xf]
      %v1531 = vld [vmem:[%s786 + $0x30] sm:$0xf]
      %v1532 = vld [vmem:[%s786 + $0x34] sm:$0xf]
      %v1533 = vld [vmem:[%s786 + $0x38] sm:$0xf]
      %v1534 = vld [vmem:[%s786 + $0x3c] sm:$0xf]
      %v1535 = vld [vmem:[%s786 + $0x40] sm:$0xf]
      %v1536 = vld [vmem:[%s786 + $0x44] sm:$0xf]
      %v1537 = vld [vmem:[%s786 + $0x48] sm:$0xf]
      %v1538 = vld [vmem:[%s786 + $0x4c] sm:$0xf]
      %v1539 = vld [vmem:[%s786 + $0x50] sm:$0xf]
      %v1540 = vld [vmem:[%s786 + $0x54] sm:$0xf]
      %v1541 = vld [vmem:[%s786 + $0x58] sm:$0xf]
      %v1542 = vld [vmem:[%s786 + $0x5c] sm:$0xf]
      %v1543 = vld [vmem:[%s786 + $0x60] sm:$0xf]
      %v1544 = vld [vmem:[%s786 + $0x64] sm:$0xf]
      %v1545 = vld [vmem:[%s786 + $0x68] sm:$0xf]
      %v1546 = vld [vmem:[%s786 + $0x6c] sm:$0xf]
      %v1547 = vld [vmem:[%s786 + $0x70] sm:$0xf]
      %v1548 = vld [vmem:[%s786 + $0x74] sm:$0xf]
      %v1549 = vld [vmem:[%s786 + $0x78] sm:$0xf]
      %v1550 = vld [vmem:[%s786 + $0x7c] sm:$0xf]
      %v1551 = vld [vmem:[%s786 + $0x80] sm:$0xf]
      %v1552 = vld [vmem:[%s786 + $0x84] sm:$0xf]
      %v1553 = vld [vmem:[%s786 + $0x88] sm:$0xf]
      %v1554 = vld [vmem:[%s786 + $0x8c] sm:$0xf]
      %v1555 = vld [vmem:[%s786 + $0x90] sm:$0xf]
      %v1556 = vld [vmem:[%s786 + $0x94] sm:$0xf]
      %v1557 = vld [vmem:[%s786 + $0x98] sm:$0xf]
      %v1558 = vld [vmem:[%s786 + $0x9c] sm:$0xf]
      %v1559 = vld [vmem:[%s786 + $0xa0] sm:$0xf]
      %v1560 = vld [vmem:[%s786 + $0xa4] sm:$0xf]
      %v1561 = vld [vmem:[%s786 + $0xa8] sm:$0xf]
      %v1562 = vld [vmem:[%s786 + $0xac] sm:$0xf]
      %v1563 = vld [vmem:[%s786 + $0xb0] sm:$0xf]
      %v1564 = vld [vmem:[%s786 + $0xb4] sm:$0xf]
      %v1565 = vld [vmem:[%s786 + $0xb8] sm:$0xf]
      %v1566 = vld [vmem:[%s786 + $0xbc] sm:$0xf]
      %v1567 = vld [vmem:[%s786 + $0xc0] sm:$0xf]
      %v1568 = vld [vmem:[%s786 + $0xc4] sm:$0xf]
      %v1569 = vld [vmem:[%s786 + $0xc8] sm:$0xf]
      %v1570 = vld [vmem:[%s786 + $0xcc] sm:$0xf]
      %v1571 = vld [vmem:[%s786 + $0xd0] sm:$0xf]
      %v1572 = vld [vmem:[%s786 + $0xd4] sm:$0xf]
      %v1573 = vld [vmem:[%s786 + $0xd8] sm:$0xf]
      %v1574 = vld [vmem:[%s786 + $0xdc] sm:$0xf]
      %v1575 = vld [vmem:[%s786 + $0xe0] sm:$0xf]
      %v1576 = vld [vmem:[%s786 + $0xe4] sm:$0xf]
      %v1577 = vld [vmem:[%s786 + $0xe8] sm:$0xf]
      %v1578 = vld [vmem:[%s786 + $0xec] sm:$0xf]
      %v1579 = vld [vmem:[%s786 + $0xf0] sm:$0xf]
      %v1580 = vld [vmem:[%s786 + $0xf4] sm:$0xf]
      %v1581 = vld [vmem:[%s786 + $0xf8] sm:$0xf]
      %v1582 = vld [vmem:[%s786 + $0xfc] sm:$0xf]
      %v1583 = vld [vmem:[%s790] sm:$0x1]
      %v1584 = vld [vmem:[%s790 + $0x1] sm:$0x1]
      %v1585 = vld [vmem:[%s790 + $0x2] sm:$0x1]
      %v1586 = vld [vmem:[%s790 + $0x3] sm:$0x1]
      %v1591 = vperm.slane %v1583, 0
      %v1592 = vperm.slane %v1584, 0
      %v1593 = vperm.slane %v1585, 0
      %v1594 = vperm.slane %v1586, 0
      %v1615 = vunpack.c.l.b16 %v1519
      %v1616 = vunpack.c.l.b16 %v1520
      %v1617 = vunpack.c.l.b16 %v1521
      %v1618 = vunpack.c.l.b16 %v1522
      %v1619 = vunpack.c.l.b16 %v1523
      %v1620 = vunpack.c.l.b16 %v1524
      %v1621 = vunpack.c.l.b16 %v1525
      %v1622 = vunpack.c.l.b16 %v1526
      %v1623 = vunpack.c.l.b16 %v1527
      %v1624 = vunpack.c.l.b16 %v1528
      %v1625 = vunpack.c.l.b16 %v1529
      %v1626 = vunpack.c.l.b16 %v1530
      %v1627 = vunpack.c.l.b16 %v1531
      %v1628 = vunpack.c.l.b16 %v1532
      %v1629 = vunpack.c.l.b16 %v1533
      %v1630 = vunpack.c.l.b16 %v1534
      %v1631 = vpack.c.b16 %v1616, %v1615
      %v1632 = vpack.c.b16 %v1618, %v1617
      %v1633 = vpack.c.b16 %v1620, %v1619
      %v1634 = vpack.c.b16 %v1622, %v1621
      %v1635 = vpack.c.b16 %v1624, %v1623
      %v1636 = vpack.c.b16 %v1626, %v1625
      %v1637 = vpack.c.b16 %v1628, %v1627
      %v1638 = vpack.c.b16 %v1630, %v1629
      %1647 = vmatpush.bf16.msra.mxu0 %v1638
      %1648 = vmatpush.bf16.msra.mxu0 %v1637
      %1649 = vmatpush.bf16.msra.mxu0 %v1636
      %1650 = vmatpush.bf16.msra.mxu0 %v1635
      %1651 = vmatpush.bf16.msra.mxu0 %v1634
      %1652 = vmatpush.bf16.msra.mxu0 %v1633
      %1653 = vmatpush.bf16.msra.mxu0 %v1632
      %1654 = vmatpush.bf16.msra.mxu0 %v1631
      %1655 = vmatmul.bf16.gmra.mxu0 %v870
      %v1656 = vpop.f32.mrf.mxu0
      %v1657 = vadd.f32 %v1591, %v1656
      %v1658 = vpop.f32.mrf.mxu0
      %1659 = vdwg.mxu0
      %v1676 = vunpack.c.l.b16 %v1535
      %v1677 = vunpack.c.l.b16 %v1536
      %v1678 = vunpack.c.l.b16 %v1537
      %v1679 = vunpack.c.l.b16 %v1538
      %v1680 = vunpack.c.l.b16 %v1539
      %v1681 = vunpack.c.l.b16 %v1540
      %v1682 = vunpack.c.l.b16 %v1541
      %v1683 = vunpack.c.l.b16 %v1542
      %v1684 = vunpack.c.l.b16 %v1543
      %v1685 = vunpack.c.l.b16 %v1544
      %v1686 = vunpack.c.l.b16 %v1545
      %v1687 = vunpack.c.l.b16 %v1546
      %v1688 = vunpack.c.l.b16 %v1547
      %v1689 = vunpack.c.l.b16 %v1548
      %v1690 = vunpack.c.l.b16 %v1549
      %v1691 = vunpack.c.l.b16 %v1550
      %v1692 = vpack.c.b16 %v1677, %v1676
      %v1693 = vpack.c.b16 %v1679, %v1678
      %v1694 = vpack.c.b16 %v1681, %v1680
      %v1695 = vpack.c.b16 %v1683, %v1682
      %v1696 = vpack.c.b16 %v1685, %v1684
      %v1697 = vpack.c.b16 %v1687, %v1686
      %v1698 = vpack.c.b16 %v1689, %v1688
      %v1699 = vpack.c.b16 %v1691, %v1690
      %1708 = vmatpush.bf16.msra.mxu0 %v1699
      %1709 = vmatpush.bf16.msra.mxu0 %v1698
      %1710 = vmatpush.bf16.msra.mxu0 %v1697
      %1711 = vmatpush.bf16.msra.mxu0 %v1696
      %1712 = vmatpush.bf16.msra.mxu0 %v1695
      %1713 = vmatpush.bf16.msra.mxu0 %v1694
      %1714 = vmatpush.bf16.msra.mxu0 %v1693
      %1715 = vmatpush.bf16.msra.mxu0 %v1692
      %1716 = vmatmul.bf16.gmra.mxu0 %v870
      %v1717 = vpop.f32.mrf.mxu0
      %v1718 = vadd.f32 %v1592, %v1717
      %v1719 = vpop.f32.mrf.mxu0
      %1720 = vdwg.mxu0
      %v1737 = vunpack.c.l.b16 %v1551
      %v1738 = vunpack.c.l.b16 %v1552
      %v1739 = vunpack.c.l.b16 %v1553
      %v1740 = vunpack.c.l.b16 %v1554
      %v1741 = vunpack.c.l.b16 %v1555
      %v1742 = vunpack.c.l.b16 %v1556
      %v1743 = vunpack.c.l.b16 %v1557
      %v1744 = vunpack.c.l.b16 %v1558
      %v1745 = vunpack.c.l.b16 %v1559
      %v1746 = vunpack.c.l.b16 %v1560
      %v1747 = vunpack.c.l.b16 %v1561
      %v1748 = vunpack.c.l.b16 %v1562
      %v1749 = vunpack.c.l.b16 %v1563
      %v1750 = vunpack.c.l.b16 %v1564
      %v1751 = vunpack.c.l.b16 %v1565
      %v1752 = vunpack.c.l.b16 %v1566
      %v1753 = vpack.c.b16 %v1738, %v1737
      %v1754 = vpack.c.b16 %v1740, %v1739
      %v1755 = vpack.c.b16 %v1742, %v1741
      %v1756 = vpack.c.b16 %v1744, %v1743
      %v1757 = vpack.c.b16 %v1746, %v1745
      %v1758 = vpack.c.b16 %v1748, %v1747
      %v1759 = vpack.c.b16 %v1750, %v1749
      %v1760 = vpack.c.b16 %v1752, %v1751
      %1769 = vmatpush.bf16.msra.mxu0 %v1760
      %1770 = vmatpush.bf16.msra.mxu0 %v1759
      %1771 = vmatpush.bf16.msra.mxu0 %v1758
      %1772 = vmatpush.bf16.msra.mxu0 %v1757
      %1773 = vmatpush.bf16.msra.mxu0 %v1756
      %1774 = vmatpush.bf16.msra.mxu0 %v1755
      %1775 = vmatpush.bf16.msra.mxu0 %v1754
      %1776 = vmatpush.bf16.msra.mxu0 %v1753
      %1777 = vmatmul.bf16.gmra.mxu0 %v870
      %v1778 = vpop.f32.mrf.mxu0
      %v1779 = vadd.f32 %v1593, %v1778
      %v1780 = vpop.f32.mrf.mxu0
      %1781 = vdwg.mxu0
      %v1798 = vunpack.c.l.b16 %v1567
      %v1799 = vunpack.c.l.b16 %v1568
      %v1800 = vunpack.c.l.b16 %v1569
      %v1801 = vunpack.c.l.b16 %v1570
      %v1802 = vunpack.c.l.b16 %v1571
      %v1803 = vunpack.c.l.b16 %v1572
      %v1804 = vunpack.c.l.b16 %v1573
      %v1805 = vunpack.c.l.b16 %v1574
      %v1806 = vunpack.c.l.b16 %v1575
      %v1807 = vunpack.c.l.b16 %v1576
      %v1808 = vunpack.c.l.b16 %v1577
      %v1809 = vunpack.c.l.b16 %v1578
      %v1810 = vunpack.c.l.b16 %v1579
      %v1811 = vunpack.c.l.b16 %v1580
      %v1812 = vunpack.c.l.b16 %v1581
      %v1813 = vunpack.c.l.b16 %v1582
      %v1814 = vpack.c.b16 %v1799, %v1798
      %v1815 = vpack.c.b16 %v1801, %v1800
      %v1816 = vpack.c.b16 %v1803, %v1802
      %v1817 = vpack.c.b16 %v1805, %v1804
      %v1818 = vpack.c.b16 %v1807, %v1806
      %v1819 = vpack.c.b16 %v1809, %v1808
      %v1820 = vpack.c.b16 %v1811, %v1810
      %v1821 = vpack.c.b16 %v1813, %v1812
      %1830 = vmatpush.bf16.msra.mxu0 %v1821
      %1831 = vmatpush.bf16.msra.mxu0 %v1820
      %1832 = vmatpush.bf16.msra.mxu0 %v1819
      %1833 = vmatpush.bf16.msra.mxu0 %v1818
      %1834 = vmatpush.bf16.msra.mxu0 %v1817
      %1835 = vmatpush.bf16.msra.mxu0 %v1816
      %1836 = vmatpush.bf16.msra.mxu0 %v1815
      %1837 = vmatpush.bf16.msra.mxu0 %v1814
      %1838 = vmatmul.bf16.gmra.mxu0 %v870
      %v1839 = vpop.f32.mrf.mxu0
      %v1840 = vadd.f32 %v1594, %v1839
      %v1841 = vpop.f32.mrf.mxu0
      %1842 = vdwg.mxu0
      %v1843 = vpack.c.bf16 %v1009, %v1009
      %v1844 = vpack.c.bf16 %v1070, %v1070
      %v1845 = vpack.c.bf16 %v1131, %v1131
      %v1846 = vpack.c.bf16 %v1192, %v1192
      %v1847 = vpack.c.bf16 %v1333, %v1333
      %v1848 = vpack.c.bf16 %v1394, %v1394
      %v1849 = vpack.c.bf16 %v1455, %v1455
      %v1850 = vpack.c.bf16 %v1516, %v1516
      %vm1851 = vcmask 261120
      %v1853 = vsel %vm1851, %v1843, 0
      %v1856 = vsel %vm1851, %v1847, 0
      %1858 = vmatpush.bf16.xpose.msra.mxu0 0
      %1859 = vmatpush.bf16.xpose.msra.mxu0 0
      %1860 = vmatpush.bf16.xpose.msra.mxu0 0
      %1861 = vmatpush.bf16.xpose.msra.mxu0 0
      %1862 = vmatpush.bf16.xpose.msra.mxu0 0
      %1863 = vmatpush.bf16.xpose.msra.mxu0 0
      %1864 = vmatpush.bf16.xpose.msra.mxu0 0
      %1865 = vmatpush.bf16.xpose.msra.mxu0 %v1856
      %1866 = vmatmul.bf16.gmra.mxu0 %v1853
      %v1867 = vpop.f32.mrf.mxu0
      %v1868 = vadd.f32 0.0, %v1867
      %v1869 = vpop.f32.mrf.mxu0
      %1870 = vdwg.mxu0
      %v1872 = vsel %vm1851, %v1844, 0
      %v1875 = vsel %vm1851, %v1848, 0
      %1877 = vmatpush.bf16.xpose.msra.mxu0 0
      %1878 = vmatpush.bf16.xpose.msra.mxu0 0
      %1879 = vmatpush.bf16.xpose.msra.mxu0 0
      %1880 = vmatpush.bf16.xpose.msra.mxu0 0
      %1881 = vmatpush.bf16.xpose.msra.mxu0 0
      %1882 = vmatpush.bf16.xpose.msra.mxu0 0
      %1883 = vmatpush.bf16.xpose.msra.mxu0 0
      %1884 = vmatpush.bf16.xpose.msra.mxu0 %v1875
      %1885 = vmatmul.bf16.gmra.mxu0 %v1872
      %v1886 = vpop.f32.mrf.mxu0
      %v1887 = vadd.f32 0.0, %v1886
      %v1888 = vpop.f32.mrf.mxu0
      %1889 = vdwg.mxu0
      %v1891 = vsel %vm1851, %v1845, 0
      %v1894 = vsel %vm1851, %v1849, 0
      %1896 = vmatpush.bf16.xpose.msra.mxu0 0
      %1897 = vmatpush.bf16.xpose.msra.mxu0 0
      %1898 = vmatpush.bf16.xpose.msra.mxu0 0
      %1899 = vmatpush.bf16.xpose.msra.mxu0 0
      %1900 = vmatpush.bf16.xpose.msra.mxu0 0
      %1901 = vmatpush.bf16.xpose.msra.mxu0 0
      %1902 = vmatpush.bf16.xpose.msra.mxu0 0
      %1903 = vmatpush.bf16.xpose.msra.mxu0 %v1894
      %1904 = vmatmul.bf16.gmra.mxu0 %v1891
      %v1905 = vpop.f32.mrf.mxu0
      %v1906 = vadd.f32 0.0, %v1905
      %v1907 = vpop.f32.mrf.mxu0
      %1908 = vdwg.mxu0
      %v1910 = vsel %vm1851, %v1846, 0
      %v1913 = vsel %vm1851, %v1850, 0
      %1915 = vmatpush.bf16.xpose.msra.mxu0 0
      %1916 = vmatpush.bf16.xpose.msra.mxu0 0
      %1917 = vmatpush.bf16.xpose.msra.mxu0 0
      %1918 = vmatpush.bf16.xpose.msra.mxu0 0
      %1919 = vmatpush.bf16.xpose.msra.mxu0 0
      %1920 = vmatpush.bf16.xpose.msra.mxu0 0
      %1921 = vmatpush.bf16.xpose.msra.mxu0 0
      %1922 = vmatpush.bf16.xpose.msra.mxu0 %v1913
      %1923 = vmatmul.bf16.gmra.mxu0 %v1910
      %v1924 = vpop.f32.mrf.mxu0
      %v1925 = vadd.f32 0.0, %v1924
      %v1926 = vpop.f32.mrf.mxu0
      %1927 = vdwg.mxu0
      %v1928 = vmul.f32 %v1868, 0.17677669
      %v1929 = vmul.f32 %v1887, 0.17677669
      %v1930 = vmul.f32 %v1906, 0.17677669
      %v1931 = vmul.f32 %v1925, 0.17677669
      %v1932 = vlaneseq
      %v1933 = vshrl.u32 %v1932, 7
      %v1934 = vlaneseq
      %v1935 = vand.u32 %v1934, 127
      %vm1936 = vcmp.ge.s32.totalorder %v1933, %v1935
      %v1937 = vsel %vm1936, 1, 0
      %vm1938 = vcmp.eq.s32.totalorder %v1937, 1
      %v1939 = vsel %vm1938, %v1928, -1e+30
      %v1940 = vsel %vm1938, %v1929, -1e+30
      %v1941 = vsel %vm1938, %v1930, -1e+30
      %v1942 = vsel %vm1938, %v1931, -1e+30
      %vm1943 = vcmask 64512
      %v1944 = vsel %vm1943, %v1939, -inf
      %1945 = vmax.xlane.f32.xlu0 %v1944
      %v1946 = vpop.xlane.xlu0 %1945
      %v1947 = vsel %vm1943, %v1940, -inf
      %1948 = vmax.xlane.f32.xlu0 %v1947
      %v1949 = vpop.xlane.xlu0 %1948
      %v1950 = vsel %vm1943, %v1941, -inf
      %1951 = vmax.xlane.f32.xlu0 %v1950
      %v1952 = vpop.xlane.xlu0 %1951
      %v1953 = vsel %vm1943, %v1942, -inf
      %1954 = vmax.xlane.f32.xlu0 %v1953
      %v1955 = vpop.xlane.xlu0 %1954
      %v1956 = vsub.f32 %v1939, %v1946
      %v1957 = vsub.f32 %v1940, %v1949
      %v1958 = vsub.f32 %v1941, %v1952
      %v1959 = vsub.f32 %v1942, %v1955
      %v1960 = vmul.f32 %v1956, 1.442695
      %v1961 = vpow.pop %v1960
      %v1962 = vmul.f32 %v1957, 1.442695
      %v1963 = vpow.pop %v1962
      %v1964 = vmul.f32 %v1958, 1.442695
      %v1965 = vpow.pop %v1964
      %v1966 = vmul.f32 %v1959, 1.442695
      %v1967 = vpow.pop %v1966
      %v1968 = vsel %vm1943, %v1961, 0.0
      %1969 = vadd.xlane.f32.xlu0 %v1968
      %v1970 = vpop.xlane.xlu0 %1969
      %v1971 = vsel %vm1943, %v1963, 0.0
      %1972 = vadd.xlane.f32.xlu0 %v1971
      %v1973 = vpop.xlane.xlu0 %1972
      %v1974 = vsel %vm1943, %v1965, 0.0
      %1975 = vadd.xlane.f32.xlu0 %v1974
      %v1976 = vpop.xlane.xlu0 %1975
      %v1977 = vsel %vm1943, %v1967, 0.0
      %1978 = vadd.xlane.f32.xlu0 %v1977
      %v1979 = vpop.xlane.xlu0 %1978
      %v1980 = vrcp.pop %v1970
      %v1981 = vrcp.pop %v1973
      %v1982 = vrcp.pop %v1976
      %v1983 = vrcp.pop %v1979
      %v1984 = vmul.f32 %v1961, %v1980
      %v1985 = vmul.f32 %v1963, %v1981
      %v1986 = vmul.f32 %v1965, %v1982
      %v1987 = vmul.f32 %v1967, %v1983
      %v1988 = vpack.c.bf16 %v1984, %v1984
      %v1989 = vpack.c.bf16 %v1985, %v1985
      %v1990 = vpack.c.bf16 %v1986, %v1986
      %v1991 = vpack.c.bf16 %v1987, %v1987
      %v1992 = vpack.c.bf16 %v1657, %v1657
      %v1993 = vpack.c.bf16 %v1718, %v1718
      %v1994 = vpack.c.bf16 %v1779, %v1779
      %v1995 = vpack.c.bf16 %v1840, %v1840
      %v1997 = vsel %vm1943, %v1988, 0
      %vm1999 = vcmask 1043456
      %v2001 = vsel %vm1999, %v1992, 0
      %2003 = vmatpush.bf16.msra.mxu0 0
      %2004 = vmatpush.bf16.msra.mxu0 0
      %2005 = vmatpush.bf16.msra.mxu0 0
      %2006 = vmatpush.bf16.msra.mxu0 0
      %2007 = vmatpush.bf16.msra.mxu0 0
      %2008 = vmatpush.bf16.msra.mxu0 0
      %2009 = vmatpush.bf16.msra.mxu0 0
      %2010 = vmatpush.bf16.msra.mxu0 %v2001
      %2011 = vmatmul.bf16.gmra.mxu0 %v1997
      %v2012 = vpop.f32.mrf.mxu0
      %v2013 = vadd.f32 0.0, %v2012
      %v2014 = vpop.f32.mrf.mxu0
      %2015 = vdwg.mxu0
      %v2017 = vsel %vm1943, %v1989, 0
      %v2020 = vsel %vm1999, %v1993, 0
      %2022 = vmatpush.bf16.msra.mxu0 0
      %2023 = vmatpush.bf16.msra.mxu0 0
      %2024 = vmatpush.bf16.msra.mxu0 0
      %2025 = vmatpush.bf16.msra.mxu0 0
      %2026 = vmatpush.bf16.msra.mxu0 0
      %2027 = vmatpush.bf16.msra.mxu0 0
      %2028 = vmatpush.bf16.msra.mxu0 0
      %2029 = vmatpush.bf16.msra.mxu0 %v2020
      %2030 = vmatmul.bf16.gmra.mxu0 %v2017
      %v2031 = vpop.f32.mrf.mxu0
      %v2032 = vadd.f32 0.0, %v2031
      %v2033 = vpop.f32.mrf.mxu0
      %2034 = vdwg.mxu0
      %v2036 = vsel %vm1943, %v1990, 0
      %v2039 = vsel %vm1999, %v1994, 0
      %2041 = vmatpush.bf16.msra.mxu0 0
      %2042 = vmatpush.bf16.msra.mxu0 0
      %2043 = vmatpush.bf16.msra.mxu0 0
      %2044 = vmatpush.bf16.msra.mxu0 0
      %2045 = vmatpush.bf16.msra.mxu0 0
      %2046 = vmatpush.bf16.msra.mxu0 0
      %2047 = vmatpush.bf16.msra.mxu0 0
      %2048 = vmatpush.bf16.msra.mxu0 %v2039
      %2049 = vmatmul.bf16.gmra.mxu0 %v2036
      %v2050 = vpop.f32.mrf.mxu0
      %v2051 = vadd.f32 0.0, %v2050
      %v2052 = vpop.f32.mrf.mxu0
      %2053 = vdwg.mxu0
      %v2055 = vsel %vm1943, %v1991, 0
      %v2058 = vsel %vm1999, %v1995, 0
      %2060 = vmatpush.bf16.msra.mxu0 0
      %2061 = vmatpush.bf16.msra.mxu0 0
      %2062 = vmatpush.bf16.msra.mxu0 0
      %2063 = vmatpush.bf16.msra.mxu0 0
      %2064 = vmatpush.bf16.msra.mxu0 0
      %2065 = vmatpush.bf16.msra.mxu0 0
      %2066 = vmatpush.bf16.msra.mxu0 0
      %2067 = vmatpush.bf16.msra.mxu0 %v2058
      %2068 = vmatmul.bf16.gmra.mxu0 %v2055
      %v2069 = vpop.f32.mrf.mxu0
      %v2070 = vadd.f32 0.0, %v2069
      %v2071 = vpop.f32.mrf.mxu0
      %2072 = vdwg.mxu0
      %v2073 = vpack.c.bf16 %v2013, %v2013
      %v2074 = vpack.c.bf16 %v2032, %v2032
      %v2075 = vpack.c.bf16 %v2051, %v2051
      %v2076 = vpack.c.bf16 %v2070, %v2070
      %v2077 = vld [vmem:[%s795] sm:$0xf]
      %v2078 = vld [vmem:[%s795 + $0x4] sm:$0xf]
      %v2079 = vld [vmem:[%s795 + $0x8] sm:$0xf]
      %v2080 = vld [vmem:[%s795 + $0xc] sm:$0xf]
      %v2081 = vld [vmem:[%s795 + $0x10] sm:$0xf]
      %v2082 = vld [vmem:[%s795 + $0x14] sm:$0xf]
      %v2083 = vld [vmem:[%s795 + $0x18] sm:$0xf]
      %v2084 = vld [vmem:[%s795 + $0x1c] sm:$0xf]
      %v2085 = vld [vmem:[%s795 + $0x20] sm:$0xf]
      %v2086 = vld [vmem:[%s795 + $0x24] sm:$0xf]
      %v2087 = vld [vmem:[%s795 + $0x28] sm:$0xf]
      %v2088 = vld [vmem:[%s795 + $0x2c] sm:$0xf]
      %v2089 = vld [vmem:[%s795 + $0x30] sm:$0xf]
      %v2090 = vld [vmem:[%s795 + $0x34] sm:$0xf]
      %v2091 = vld [vmem:[%s795 + $0x38] sm:$0xf]
      %v2092 = vld [vmem:[%s795 + $0x3c] sm:$0xf]
      %v2097 = vunpack.c.l.b16 %v2077
      %v2098 = vunpack.c.l.b16 %v2078
      %v2099 = vunpack.c.l.b16 %v2079
      %v2100 = vunpack.c.l.b16 %v2080
      %v2101 = vpack.c.b16 %v2098, %v2097
      %v2102 = vpack.c.b16 %v2100, %v2099
      %v2106 = vsel %vm1851, %v2073, 0
      %2108 = vmatpush.bf16.msra.mxu0 0
      %2109 = vmatpush.bf16.msra.mxu0 0
      %2110 = vmatpush.bf16.msra.mxu0 0
      %2111 = vmatpush.bf16.msra.mxu0 0
      %2112 = vmatpush.bf16.msra.mxu0 0
      %2113 = vmatpush.bf16.msra.mxu0 0
      %2114 = vmatpush.bf16.msra.mxu0 %v2102
      %2115 = vmatpush.bf16.msra.mxu0 %v2101
      %2116 = vmatmul.bf16.gmra.mxu0 %v2106
      %v2117 = vpop.f32.mrf.mxu0
      %v2118 = vadd.f32 0.0, %v2117
      %v2119 = vpop.f32.mrf.mxu0
      %2120 = vdwg.mxu0
      %v2125 = vunpack.c.l.b16 %v2081
      %v2126 = vunpack.c.l.b16 %v2082
      %v2127 = vunpack.c.l.b16 %v2083
      %v2128 = vunpack.c.l.b16 %v2084
      %v2129 = vpack.c.b16 %v2126, %v2125
      %v2130 = vpack.c.b16 %v2128, %v2127
      %v2134 = vsel %vm1851, %v2074, 0
      %2136 = vmatpush.bf16.msra.mxu0 0
      %2137 = vmatpush.bf16.msra.mxu0 0
      %2138 = vmatpush.bf16.msra.mxu0 0
      %2139 = vmatpush.bf16.msra.mxu0 0
      %2140 = vmatpush.bf16.msra.mxu0 0
      %2141 = vmatpush.bf16.msra.mxu0 0
      %2142 = vmatpush.bf16.msra.mxu0 %v2130
      %2143 = vmatpush.bf16.msra.mxu0 %v2129
      %2144 = vmatmul.bf16.gmra.mxu0 %v2134
      %v2145 = vpop.f32.mrf.mxu0
      %v2146 = vadd.f32 0.0, %v2145
      %v2147 = vpop.f32.mrf.mxu0
      %2148 = vdwg.mxu0
      %v2153 = vunpack.c.l.b16 %v2085
      %v2154 = vunpack.c.l.b16 %v2086
      %v2155 = vunpack.c.l.b16 %v2087
      %v2156 = vunpack.c.l.b16 %v2088
      %v2157 = vpack.c.b16 %v2154, %v2153
      %v2158 = vpack.c.b16 %v2156, %v2155
      %v2162 = vsel %vm1851, %v2075, 0
      %2164 = vmatpush.bf16.msra.mxu0 0
      %2165 = vmatpush.bf16.msra.mxu0 0
      %2166 = vmatpush.bf16.msra.mxu0 0
      %2167 = vmatpush.bf16.msra.mxu0 0
      %2168 = vmatpush.bf16.msra.mxu0 0
      %2169 = vmatpush.bf16.msra.mxu0 0
      %2170 = vmatpush.bf16.msra.mxu0 %v2158
      %2171 = vmatpush.bf16.msra.mxu0 %v2157
      %2172 = vmatmul.bf16.gmra.mxu0 %v2162
      %v2173 = vpop.f32.mrf.mxu0
      %v2174 = vadd.f32 0.0, %v2173
      %v2175 = vpop.f32.mrf.mxu0
      %2176 = vdwg.mxu0
      %v2181 = vunpack.c.l.b16 %v2089
      %v2182 = vunpack.c.l.b16 %v2090
      %v2183 = vunpack.c.l.b16 %v2091
      %v2184 = vunpack.c.l.b16 %v2092
      %v2185 = vpack.c.b16 %v2182, %v2181
      %v2186 = vpack.c.b16 %v2184, %v2183
      %v2190 = vsel %vm1851, %v2076, 0
      %2192 = vmatpush.bf16.msra.mxu0 0
      %2193 = vmatpush.bf16.msra.mxu0 0
      %2194 = vmatpush.bf16.msra.mxu0 0
      %2195 = vmatpush.bf16.msra.mxu0 0
      %2196 = vmatpush.bf16.msra.mxu0 0
      %2197 = vmatpush.bf16.msra.mxu0 0
      %2198 = vmatpush.bf16.msra.mxu0 %v2186
      %2199 = vmatpush.bf16.msra.mxu0 %v2185
      %2200 = vmatmul.bf16.gmra.mxu0 %v2190
      %v2201 = vpop.f32.mrf.mxu0
      %v2202 = vadd.f32 0.0, %v2201
      %v2203 = vpop.f32.mrf.mxu0
      %2204 = vdwg.mxu0
      %v2205 = vadd.f32 %v2118, %v2146
      %v2206 = vadd.f32 %v2205, %v2174
      %v2207 = vadd.f32 %v2206, %v2202
      %v2208 = vld [vmem:[%s798] sm:$0x1]
      %v2210 = vperm.slane %v2208, 0
      %v2212 = vadd.f32 %v2207, %v2210
      %v2213 = vadd.f32 %v832, %v2212
      %2214 = vadd.xlane.f32.xlu0 %v2213
      %v2215 = vpop.xlane.xlu0 %2214
      %v2216 = vmul.f32 %v2215, %v841
      %v2217 = vsub.f32 %v2213, %v2216
      %v2218 = vmul.f32 %v2217, %v2217
      %2219 = vadd.xlane.f32.xlu0 %v2218
      %v2220 = vpop.xlane.xlu0 %2219
      %v2221 = vmul.f32 %v2220, %v841
      %v2222 = vadd.f32 %v2221, 1e-06
      %v2223 = vrsqrt.pop %v2222
      %v2224 = vmul.f32 %v2223, %v2222
      %v2225 = vmul.f32 %v2224, %v2223
      %v2226 = vmul.f32 0.5, %v2225
      %v2227 = vsub.f32 1.5, %v2226
      %v2228 = vmul.f32 %v2223, %v2227
      %vm2229 = vweird.f32 %v2222
      %vm2230 = vweird.f32 %v2223
      %vm2231 = vmor %vm2229, %vm2230
      %v2232 = vsel %vm2231, %v2223, %v2228
      %v2233 = vmul.f32 %v2217, %v2232
      %v2234 = vld [vmem:[%s801] sm:$0x1]
      %v2236 = vperm.slane %v2234, 0
      %v2238 = vmul.f32 %v2233, %v2236
      %v2239 = vld [vmem:[%s804] sm:$0x1]
      %v2241 = vperm.slane %v2239, 0
      %v2243 = vadd.f32 %v2238, %v2241
      %v2244 = vpack.c.bf16 %v2243, %v2243
      %v2245 = vld [vmem:[%s809] sm:$0xf]
      %v2246 = vld [vmem:[%s809 + $0x4] sm:$0xf]
      %v2247 = vld [vmem:[%s809 + $0x8] sm:$0xf]
      %v2248 = vld [vmem:[%s809 + $0xc] sm:$0xf]
      %v2249 = vld [vmem:[%s809 + $0x10] sm:$0xf]
      %v2250 = vld [vmem:[%s809 + $0x14] sm:$0xf]
      %v2251 = vld [vmem:[%s809 + $0x18] sm:$0xf]
      %v2252 = vld [vmem:[%s809 + $0x1c] sm:$0xf]
      %v2253 = vld [vmem:[%s809 + $0x20] sm:$0xf]
      %v2254 = vld [vmem:[%s809 + $0x24] sm:$0xf]
      %v2255 = vld [vmem:[%s809 + $0x28] sm:$0xf]
      %v2256 = vld [vmem:[%s809 + $0x2c] sm:$0xf]
      %v2257 = vld [vmem:[%s809 + $0x30] sm:$0xf]
      %v2258 = vld [vmem:[%s809 + $0x34] sm:$0xf]
      %v2259 = vld [vmem:[%s809 + $0x38] sm:$0xf]
      %v2260 = vld [vmem:[%s809 + $0x3c] sm:$0xf]
      %v2261 = vld [vmem:[%s812] sm:$0x1]
      %v2263 = vperm.slane %v2261, 0
      %v2281 = vunpack.c.l.b16 %v2245
      %v2282 = vunpack.c.l.b16 %v2246
      %v2283 = vunpack.c.l.b16 %v2247
      %v2284 = vunpack.c.l.b16 %v2248
      %v2285 = vunpack.c.l.b16 %v2249
      %v2286 = vunpack.c.l.b16 %v2250
      %v2287 = vunpack.c.l.b16 %v2251
      %v2288 = vunpack.c.l.b16 %v2252
      %v2289 = vunpack.c.l.b16 %v2253
      %v2290 = vunpack.c.l.b16 %v2254
      %v2291 = vunpack.c.l.b16 %v2255
      %v2292 = vunpack.c.l.b16 %v2256
      %v2293 = vunpack.c.l.b16 %v2257
      %v2294 = vunpack.c.l.b16 %v2258
      %v2295 = vunpack.c.l.b16 %v2259
      %v2296 = vunpack.c.l.b16 %v2260
      %v2297 = vpack.c.b16 %v2282, %v2281
      %v2298 = vpack.c.b16 %v2284, %v2283
      %v2299 = vpack.c.b16 %v2286, %v2285
      %v2300 = vpack.c.b16 %v2288, %v2287
      %v2301 = vpack.c.b16 %v2290, %v2289
      %v2302 = vpack.c.b16 %v2292, %v2291
      %v2303 = vpack.c.b16 %v2294, %v2293
      %v2304 = vpack.c.b16 %v2296, %v2295
      %2313 = vmatpush.bf16.msra.mxu0 %v2304
      %2314 = vmatpush.bf16.msra.mxu0 %v2303
      %2315 = vmatpush.bf16.msra.mxu0 %v2302
      %2316 = vmatpush.bf16.msra.mxu0 %v2301
      %2317 = vmatpush.bf16.msra.mxu0 %v2300
      %2318 = vmatpush.bf16.msra.mxu0 %v2299
      %2319 = vmatpush.bf16.msra.mxu0 %v2298
      %2320 = vmatpush.bf16.msra.mxu0 %v2297
      %2321 = vmatmul.bf16.gmra.mxu0 %v2244
      %v2322 = vpop.f32.mrf.mxu0
      %v2323 = vadd.f32 %v2263, %v2322
      %v2324 = vpop.f32.mrf.mxu0
      %2325 = vdwg.mxu0
      %v2326 = vmax.f32 %v2323, 0.0
      %v2327 = vpack.c.bf16 %v2326, %v2326
      %v2328 = vld [vmem:[%s817] sm:$0xf]
      %v2329 = vld [vmem:[%s817 + $0x4] sm:$0xf]
      %v2330 = vld [vmem:[%s817 + $0x8] sm:$0xf]
      %v2331 = vld [vmem:[%s817 + $0xc] sm:$0xf]
      %v2332 = vld [vmem:[%s817 + $0x10] sm:$0xf]
      %v2333 = vld [vmem:[%s817 + $0x14] sm:$0xf]
      %v2334 = vld [vmem:[%s817 + $0x18] sm:$0xf]
      %v2335 = vld [vmem:[%s817 + $0x1c] sm:$0xf]
      %v2336 = vld [vmem:[%s817 + $0x20] sm:$0xf]
      %v2337 = vld [vmem:[%s817 + $0x24] sm:$0xf]
      %v2338 = vld [vmem:[%s817 + $0x28] sm:$0xf]
      %v2339 = vld [vmem:[%s817 + $0x2c] sm:$0xf]
      %v2340 = vld [vmem:[%s817 + $0x30] sm:$0xf]
      %v2341 = vld [vmem:[%s817 + $0x34] sm:$0xf]
      %v2342 = vld [vmem:[%s817 + $0x38] sm:$0xf]
      %v2343 = vld [vmem:[%s817 + $0x3c] sm:$0xf]
      %v2344 = vld [vmem:[%s820] sm:$0x1]
      %v2346 = vperm.slane %v2344, 0
      %v2364 = vunpack.c.l.b16 %v2328
      %v2365 = vunpack.c.l.b16 %v2329
      %v2366 = vunpack.c.l.b16 %v2330
      %v2367 = vunpack.c.l.b16 %v2331
      %v2368 = vunpack.c.l.b16 %v2332
      %v2369 = vunpack.c.l.b16 %v2333
      %v2370 = vunpack.c.l.b16 %v2334
      %v2371 = vunpack.c.l.b16 %v2335
      %v2372 = vunpack.c.l.b16 %v2336
      %v2373 = vunpack.c.l.b16 %v2337
      %v2374 = vunpack.c.l.b16 %v2338
      %v2375 = vunpack.c.l.b16 %v2339
      %v2376 = vunpack.c.l.b16 %v2340
      %v2377 = vunpack.c.l.b16 %v2341
      %v2378 = vunpack.c.l.b16 %v2342
      %v2379 = vunpack.c.l.b16 %v2343
      %v2380 = vpack.c.b16 %v2365, %v2364
      %v2381 = vpack.c.b16 %v2367, %v2366
      %v2382 = vpack.c.b16 %v2369, %v2368
      %v2383 = vpack.c.b16 %v2371, %v2370
      %v2384 = vpack.c.b16 %v2373, %v2372
      %v2385 = vpack.c.b16 %v2375, %v2374
      %v2386 = vpack.c.b16 %v2377, %v2376
      %v2387 = vpack.c.b16 %v2379, %v2378
      %2396 = vmatpush.bf16.msra.mxu0 %v2387
      %2397 = vmatpush.bf16.msra.mxu0 %v2386
      %2398 = vmatpush.bf16.msra.mxu0 %v2385
      %2399 = vmatpush.bf16.msra.mxu0 %v2384
      %2400 = vmatpush.bf16.msra.mxu0 %v2383
      %2401 = vmatpush.bf16.msra.mxu0 %v2382
      %2402 = vmatpush.bf16.msra.mxu0 %v2381
      %2403 = vmatpush.bf16.msra.mxu0 %v2380
      %2404 = vmatmul.bf16.gmra.mxu0 %v2327
      %v2405 = vpop.f32.mrf.mxu0
      %v2406 = vadd.f32 %v2346, %v2405
      %v2407 = vpop.f32.mrf.mxu0
      %2408 = vdwg.mxu0
      %v2409 = vadd.f32 %v2213, %v2406
      %2410 = vst [vmem:[%s824] sm:$0xff] %v2409
      %p2411 = scmp.lt.s32.totalorder %s32, 1
      %s2412 = scalar_select %p2411, %s32, 1
      %s2413 = smul.addr %s2412, 8
      %s2414 = scalar_lea.vmem %s17, %s2413
      // Predicated region
      $region93: #{timesfm_forward.4} parent=87 // pred_check
        %p2415 = pneg %p500
      $region94: #{timesfm_forward.4} parent=87 // pred_check_branch
        %2417 = sbr.rel (%p2415) target = $region96
      $region95: #{timesfm_forward.4} parent=87 // pred_region
        _
      $region96: #{timesfm_forward.4} parent=87 // pred_fallthru
        _
    $region88: #{timesfm_forward.4} parent=5 // pred_fallthru
      _
    %p2418 = scmp.le.s32.totalorder 2, %s23
    // Predicated region
    $region97: #{timesfm_forward.4} parent=5 // pred_check
      %p2419 = pneg %p2418
    $region98: #{timesfm_forward.4} parent=5 // pred_check_branch
      %2421 = sbr.rel (%p2419) target = $region100
    $region99: #{timesfm_forward.4} parent=5 // pred_region
      %s2422 = ssub.s32 %s23, 2
      // Predicated region
      $region101: #{timesfm_forward.4} parent=99 // pred_check
        %p2423 = pneg %p506
      $region102: #{timesfm_forward.4} parent=99 // pred_check_branch
        %2425 = sbr.rel (%p2423) target = $region104
      $region103: #{timesfm_forward.4} parent=99 // pred_region
        %p2426 = scmp.lt.s32.totalorder %s34, 1
        %s2427 = scalar_select %p2426, %s34, 1
        %s2428 = smul.addr %s2427, 8
        %s2429 = scalar_lea.vmem %s17, %s2428
      $region104: #{timesfm_forward.4} parent=99 // pred_fallthru
        _
    $region100: #{timesfm_forward.4} parent=5 // pred_fallthru
      _
  $region6: #{timesfm_forward.4} parent=0 // loop_footer
    %s27 = sadd.s32 1, %s23
  $region7: #{timesfm_forward.4} parent=0 // loop_footer_branch
    %22 = sbr.rel target = $region3
  $region8: #{timesfm_forward.4} parent=0 // loop_exit
    _

</llo_original>
